<compile_context>
chip_gen: v5e
topology: v5e:2x2
jax: 0.10.0
libtpu: 0.0.40
codegen_flags: <defaults>
</compile_context>

<pallas_src>
import math

import jax
import jax.numpy as jnp
from jax.experimental import pallas as pl
from jax.experimental.pallas import tpu as pltpu

# ---------------- model hyper-params (small, consistent with the module) ---------------
VOCAB = 512          # stands in for 30522
HIDDEN = 128         # stands in for 768
NHEAD = 8
HEAD_DIM = HIDDEN // NHEAD
FFN = 256            # stands in for 2048 (dim_feedforward)
NUM_LAYERS = 2       # stands in for 12
BATCH = 4
SEQ = 8
LN_EPS = 1e-5

# batch elements folded into each encoder block; parallel axis = B // BATCH_BLOCK (>= 2
# so both v7x TensorCores get work).  At real sizes raise this so RB*S >= 256 rows.
BATCH_BLOCK = 2
# vocab tile for the final projection (multiple of 128); at real V=30522 use 1024-2048.
TILE_V = 256
# explicit scoped-VMEM limit: > v5e's 16 MiB default, < v7x's 64 MiB physical.
VMEM_LIMIT_BYTES = 48 * 1024 * 1024

WEIGHT_KEYS = ("wqkv_t", "bqkv", "wo_t", "bo", "g1", "b1ln",
               "w1_t", "b1", "w2_t", "b2", "g2", "b2ln")


def _layer_norm(h, gamma, beta):
    """Post-LN with eps=1e-5; reuses (h - mu) for the variance pass (one centered pass)."""
    mu = jnp.mean(h, axis=-1, keepdims=True)
    d = h - mu
    var = jnp.mean(d * d, axis=-1, keepdims=True)
    return d * jax.lax.rsqrt(var + LN_EPS) * gamma + beta


# ---------------------------- fused encoder-stack kernel --------------------------------
def encoder_stack_kernel(x_in_ref, wqkv_ref, bqkv_ref, wo_ref, bo_ref,
                         g1_ref, b1ln_ref, w1_ref, b1_ref, w2_ref, b2_ref,
                         g2_ref, b2ln_ref, o_ref, x_scr):
    """Grid = (batch_blocks [parallel], layers [arbitrary]).

    x_in_ref : (RB, S, H) f32 embedded input for this batch block (read at layer 0 only)
    weights  : per-layer slices of the stacked (L, ...) bf16/f32 parameter arrays
    x_scr    : (RB*S, H) f32 VMEM scratch -- the activation stays resident across layers.
    """
    layer = pl.program_id(1)
    RB, S, H = x_in_ref.shape
    N = RB * S
    HD = HEAD_DIM

    @pl.when(layer == 0)
    def _():
        x_scr[...] = x_in_ref[...].reshape(N, H)

    x = x_scr[...]                                   # (N, H) f32, VMEM-resident
    xb = x.astype(jnp.bfloat16)

    # ---- fused QKV projection: one (N,H)@(H,3H) bf16 matmul, f32 accumulation ----------
    qkv = jnp.dot(xb, wqkv_ref[0],
                  preferred_element_type=jnp.float32) + bqkv_ref[0]      # (N, 3H)
    q2 = qkv[:, 0 * H:1 * H]                         # (N, H), columns are head-major
    k2 = qkv[:, 1 * H:2 * H]
    v2 = qkv[:, 2 * H:3 * H]

    # ---- per-(batch, head) attention: no batch fold, no block-diagonal mask ------------
    def gather_heads(m):                             # (N, H) -> (RB*NHEAD, S, HD)
        return jnp.stack([m[b * S:(b + 1) * S, h * HD:(h + 1) * HD]
                          for b in range(RB) for h in range(NHEAD)], axis=0)

    q = gather_heads(q2).astype(jnp.bfloat16)        # (G, S, HD) bf16 operands
    k = gather_heads(k2).astype(jnp.bfloat16)
    v = gather_heads(v2).astype(jnp.bfloat16)

    scale = 1.0 / math.sqrt(HD)
    s = jnp.einsum("gqd,gkd->gqk", q, k,
                   preferred_element_type=jnp.float32) * scale           # (G, S, S) f32

    s = s - jnp.max(s, axis=-1, keepdims=True)
    p = jnp.exp(s)
    # approx reciprocal (EUP slot); fine for eval-mode forward. TODO(synk): exact for training.
    p = p * pl.reciprocal(jnp.sum(p, axis=-1, keepdims=True), approx=True)

    ctx = jnp.einsum("gqk,gkd->gqd", p.astype(jnp.bfloat16), v,
                     preferred_element_type=jnp.float32)                 # (G, S, HD)

    # head concat back to (N, H) rows, then ONE fused (N,H)@(H,H) out-projection
    ctx2 = jnp.concatenate(
        [jnp.concatenate([ctx[b * NHEAD + h] for h in range(NHEAD)], axis=1)
         for b in range(RB)], axis=0)                                    # (N, H) f32
    attn = jnp.dot(ctx2.astype(jnp.bfloat16), wo_ref[0],
                   preferred_element_type=jnp.float32) + bo_ref[0]       # (N, H)

    # ---- residual + LayerNorm 1 (f32, rsqrt on EUP) ------------------------------------
    y1 = _layer_norm(x + attn, g1_ref[0], b1ln_ref[0])

    # ---- feed-forward (Linear -> ReLU -> Linear), bf16 operands, f32 accumulation ------
    ff = jnp.maximum(
        jnp.dot(y1.astype(jnp.bfloat16), w1_ref[0],
                preferred_element_type=jnp.float32) + b1_ref[0], 0.0)
    ff = jnp.dot(ff.astype(jnp.bfloat16), w2_ref[0],
                 preferred_element_type=jnp.float32) + b2_ref[0]

    # ---- residual + LayerNorm 2 --------------------------------------------------------
    y2 = _layer_norm(y1 + ff, g2_ref[0], b2ln_ref[0])

    x_scr[...] = y2                                   # stays in VMEM for the next layer

    @pl.when(layer == pl.num_programs(1) - 1)
    def _():
        o_ref[...] = y2.reshape(RB, S, H)


def run_encoder_stack(x, params):
    """x: (B, S, H) f32.  Runs all NUM_LAYERS encoder layers in a single pallas_call."""
    B, S, H = x.shape
    RB = BATCH_BLOCK
    assert B % RB == 0
    weights = [params[kk] for kk in WEIGHT_KEYS]      # each stacked (L, ...)

    def layer_spec(arr):
        blk = (1,) + arr.shape[1:]
        zeros = (0,) * (arr.ndim - 1)
        return pl.BlockSpec(blk, lambda b, l, _z=zeros: (l,) + _z)

    return pl.pallas_call(
        encoder_stack_kernel,
        out_shape=jax.ShapeDtypeStruct((B, S, H), jnp.float32),
        grid=(B // RB, NUM_LAYERS),
        in_specs=[pl.BlockSpec((RB, S, H), lambda b, l: (b, 0, 0))]
                 + [layer_spec(w) for w in weights],
        out_specs=pl.BlockSpec((RB, S, H), lambda b, l: (b, 0, 0)),
        scratch_shapes=[pltpu.VMEM((RB * S, H), jnp.float32)],
        compiler_params=pltpu.CompilerParams(
            dimension_semantics=("parallel", "arbitrary"),
            vmem_limit_bytes=VMEM_LIMIT_BYTES),
    )(x, *weights)


# ---------------------------- vocab projection (tiled over V) ---------------------------
def fc_kernel(x_ref, w_ref, b_ref, o_ref):
    # x_ref is already bf16 (cast once in the wrapper, not once per vocab tile).
    o_ref[...] = (jnp.dot(x_ref[...], w_ref[...],
                          preferred_element_type=jnp.float32) + b_ref[...])


def run_fc(x2d_bf16, w_t, b):
    N, H = x2d_bf16.shape
    V = w_t.shape[1]
    v_pad = (-V) % TILE_V
    if v_pad:                                         # pad vocab to a TILE_V multiple
        w_t = jnp.pad(w_t, ((0, 0), (0, v_pad)))
        b = jnp.pad(b, ((0, 0), (0, v_pad)))
    Vp = V + v_pad
    out = pl.pallas_call(
        fc_kernel,
        out_shape=jax.ShapeDtypeStruct((N, Vp), jnp.float32),
        grid=(Vp // TILE_V,),
        in_specs=[pl.BlockSpec((N, H), lambda j: (0, 0)),
                  pl.BlockSpec((H, TILE_V), lambda j: (0, j)),
                  pl.BlockSpec((1, TILE_V), lambda j: (0, j))],
        out_specs=pl.BlockSpec((N, TILE_V), lambda j: (0, j)),
        compiler_params=pltpu.CompilerParams(
            dimension_semantics=("parallel",),
            vmem_limit_bytes=VMEM_LIMIT_BYTES),
    )(x2d_bf16, w_t, b)
    return out[:, :V] if v_pad else out


# ---------------------------- full forward ----------------------------------------------
def singapore_llm_forward(input_ids, params):
    # Embedding lookup (gather) -- glue in plain JAX.
    x = jnp.take(params["embedding"], input_ids, axis=0)          # (B, S, H) f32
    x = run_encoder_stack(x, params)                              # fused encoder stack
    B, S, H = x.shape
    # cast to bf16 ONCE here (the x block is resident across all vocab tiles in run_fc)
    x2d = x.reshape(B * S, H).astype(jnp.bfloat16)
    logits = run_fc(x2d, params["fc_w_t"], params["fc_b"])
    return logits.reshape(B, S, VOCAB)


# ---------------------------- pure-JAX f32 reference ------------------------------------
def reference_forward(input_ids, params):
    x = jnp.take(params["embedding"], input_ids, axis=0)
    B, S, H = x.shape
    for l in range(NUM_LAYERS):
        qkv = x @ params["wqkv_t"][l].astype(jnp.float32) + params["bqkv"][l][0]
        q = qkv[..., :H].reshape(B, S, NHEAD, HEAD_DIM)
        k = qkv[..., H:2 * H].reshape(B, S, NHEAD, HEAD_DIM)
        v = qkv[..., 2 * H:].reshape(B, S, NHEAD, HEAD_DIM)
        s = jnp.einsum("bqhd,bkhd->bhqk", q, k) / math.sqrt(HEAD_DIM)
        p = jax.nn.softmax(s, axis=-1)
        ctx = jnp.einsum("bhqk,bkhd->bqhd", p, v).reshape(B, S, H)
        attn = ctx @ params["wo_t"][l].astype(jnp.float32) + params["bo"][l][0]
        h1 = x + attn
        mu = h1.mean(-1, keepdims=True)
        d = h1 - mu
        y1 = d / jnp.sqrt((d * d).mean(-1, keepdims=True) + LN_EPS)
        y1 = y1 * params["g1"][l][0] + params["b1ln"][l][0]
        ff = jnp.maximum(y1 @ params["w1_t"][l].astype(jnp.float32) + params["b1"][l][0], 0.0)
        ff = ff @ params["w2_t"][l].astype(jnp.float32) + params["b2"][l][0]
        h2 = y1 + ff
        mu2 = h2.mean(-1, keepdims=True)
        d2 = h2 - mu2
        x = d2 / jnp.sqrt((d2 * d2).mean(-1, keepdims=True) + LN_EPS)
        x = x * params["g2"][l][0] + params["b2ln"][l][0]
    return x @ params["fc_w_t"].astype(jnp.float32) + params["fc_b"][0]


# ---------------------------- deterministic parameter init ------------------------------
def init_params(key):
    def dense(k, out_dim, in_dim, scale=0.02):
        return scale * jax.random.normal(k, (out_dim, in_dim), jnp.float32)

    keys = jax.random.split(key, 4 + NUM_LAYERS)
    params = {
        "embedding": 0.02 * jax.random.normal(keys[0], (VOCAB, HIDDEN), jnp.float32),
        # fc stored PyTorch-style (V, H), pre-transposed to (H, V), bf16 in HBM.
        "fc_w_t": dense(keys[1], VOCAB, HIDDEN).T.astype(jnp.bfloat16),
        "fc_b": 0.02 * jax.random.normal(keys[2], (1, VOCAB), jnp.float32),
    }

    per_layer = {kk: [] for kk in WEIGHT_KEYS}
    for l in range(NUM_LAYERS):
        k = jax.random.split(keys[4 + l], 8)
        in_proj_w = dense(k[0], 3 * HIDDEN, HIDDEN)               # (3H, H) = [Wq; Wk; Wv]
        in_proj_b = 0.02 * jax.random.normal(k[1], (3 * HIDDEN,), jnp.float32)
        w_o = dense(k[2], HIDDEN, HIDDEN)                         # out_proj.weight (H, H)
        b_o = 0.02 * jax.random.normal(k[3], (1, HIDDEN), jnp.float32)
        w_1 = dense(k[4], FFN, HIDDEN)                            # linear1.weight (FFN, H)
        b_1 = 0.02 * jax.random.normal(k[5], (1, FFN), jnp.float32)
        w_2 = dense(k[6], HIDDEN, FFN)                            # linear2.weight (H, FFN)
        b_2 = 0.02 * jax.random.normal(k[7], (1, HIDDEN), jnp.float32)

        per_layer["wqkv_t"].append(in_proj_w.T.astype(jnp.bfloat16))   # (H, 3H)
        per_layer["bqkv"].append(in_proj_b.reshape(1, 3 * HIDDEN))
        per_layer["wo_t"].append(w_o.T.astype(jnp.bfloat16))           # (H, H)
        per_layer["bo"].append(b_o)
        per_layer["g1"].append(jnp.ones((1, HIDDEN), jnp.float32))
        per_layer["b1ln"].append(jnp.zeros((1, HIDDEN), jnp.float32))
        per_layer["w1_t"].append(w_1.T.astype(jnp.bfloat16))           # (H, FFN)
        per_layer["b1"].append(b_1)
        per_layer["w2_t"].append(w_2.T.astype(jnp.bfloat16))           # (FFN, H)
        per_layer["b2"].append(b_2)
        per_layer["g2"].append(jnp.ones((1, HIDDEN), jnp.float32))
        per_layer["b2ln"].append(jnp.zeros((1, HIDDEN), jnp.float32))

    for kk, vv in per_layer.items():
        params[kk] = jnp.stack(vv, axis=0)                        # leading L (layer) dim
    return params


# ---------------------------- main ------------------------------------------------------
if __name__ == "__main__":
    key = jax.random.PRNGKey(0)
    pkey, ikey = jax.random.split(key)
    params = init_params(pkey)
    input_ids = jax.random.randint(ikey, (BATCH, SEQ), 0, VOCAB, dtype=jnp.int32)

    fwd = jax.jit(singapore_llm_forward)
    logits = jax.block_until_ready(fwd(input_ids, params))

    ref = reference_forward(input_ids, params)
    assert logits.shape == (BATCH, SEQ, VOCAB)
    max_err = float(jnp.max(jnp.abs(logits - ref)))
    # bf16 matmul operands + approx reciprocal vs f32 reference -> loosened tolerance.
    assert jnp.allclose(logits, ref, rtol=3e-2, atol=3e-2), (
        f"mismatch vs JAX reference (max abs err = {max_err})")

    print("KERNEL_OK")
</pallas_src>

<mosaic_0001>
module attributes {stable_mosaic.version = 11 : i64} {
  func.func @fc_kernel(%arg0: i32, %arg1: memref<32x128xbf16, #tpu.memory_space<vmem>>, %arg2: memref<128x256xbf16, #tpu.memory_space<vmem>>, %arg3: memref<1x256xf32, #tpu.memory_space<vmem>>, %arg4: memref<32x256xf32, #tpu.memory_space<vmem>>) attributes {dimension_semantics = [#tpu.dimension_semantics<parallel>], iteration_bounds = array<i64: 2>, scalar_prefetch = 0 : i64, scratch_operands = 0 : i64, tpu.core_type = #tpu.core_type<tc>, window_params = [{pipeline_mode = #tpu.pipeline_mode<synchronous>, transform_indices = @transform_0, window_bounds = array<i64: 32, 128>}, {transform_indices = @transform_1, window_bounds = array<i64: 128, 256>}, {transform_indices = @transform_2, window_bounds = array<i64: 1, 256>}, {transform_indices = @transform_3, window_bounds = array<i64: 32, 256>}]} {
    %c0 = arith.constant 0 : index
    %c0_0 = arith.constant 0 : index
    %0 = vector.load %arg1[%c0, %c0_0] : memref<32x128xbf16, #tpu.memory_space<vmem>>, vector<32x128xbf16>
    %c0_1 = arith.constant 0 : index
    %c0_2 = arith.constant 0 : index
    %1 = vector.load %arg2[%c0_1, %c0_2] : memref<128x256xbf16, #tpu.memory_space<vmem>>, vector<128x256xbf16>
    %cst = arith.constant dense<0.000000e+00> : vector<32x256xf32>
    %2 = tpu.matmul %0, %1, %cst {dimension_numbers = #tpu.dot_dimension_numbers<[1], [0], [0], [1], [0, 0, 1, 1], [], []>} : vector<32x128xbf16>, vector<128x256xbf16>, vector<32x256xf32> -> vector<32x256xf32>
    %c0_3 = arith.constant 0 : index
    %c0_4 = arith.constant 0 : index
    %3 = vector.load %arg3[%c0_3, %c0_4] : memref<1x256xf32, #tpu.memory_space<vmem>>, vector<1x256xf32>
    %4 = vector.broadcast %3 : vector<1x256xf32> to vector<32x256xf32>
    %5 = arith.addf %2, %4 : vector<32x256xf32>
    %c0_5 = arith.constant 0 : index
    %c0_6 = arith.constant 0 : index
    %6 = vector.load %arg4[%c0_5, %c0_6] : memref<32x256xf32, #tpu.memory_space<vmem>>, vector<32x256xf32>
    tpu.vector_store %arg4[%c0_5, %c0_6], %5 {strides = array<i32>} : memref<32x256xf32, #tpu.memory_space<vmem>>, vector<32x256xf32>,
    return
  }
  func.func @transform_0(%arg0: i32) -> (i32, i32) {
    %c0_i32 = arith.constant 0 : i32
    %c0_i32_0 = arith.constant 0 : i32
    %c0_i32_1 = arith.constant 0 : i32
    return %c0_i32, %c0_i32_0 : i32, i32
  }
  func.func @transform_1(%arg0: i32) -> (i32, i32) {
    %c0_i32 = arith.constant 0 : i32
    %c0_i32_0 = arith.constant 0 : i32
    return %c0_i32, %arg0 : i32, i32
  }
  func.func @transform_2(%arg0: i32) -> (i32, i32) {
    %c0_i32 = arith.constant 0 : i32
    %c0_i32_0 = arith.constant 0 : i32
    return %c0_i32, %arg0 : i32, i32
  }
  func.func @transform_3(%arg0: i32) -> (i32, i32) {
    %c0_i32 = arith.constant 0 : i32
    %c0_i32_0 = arith.constant 0 : i32
    return %c0_i32, %arg0 : i32, i32
  }
}

module attributes {stable_mosaic.version = 11 : i64} {
  func.func @encoder_stack_kernel(%arg0: i32, %arg1: i32, %arg2: memref<2x8x128xf32, #tpu.memory_space<vmem>>, %arg3: memref<1x128x384xbf16, #tpu.memory_space<vmem>>, %arg4: memref<1x1x384xf32, #tpu.memory_space<vmem>>, %arg5: memref<1x128x128xbf16, #tpu.memory_space<vmem>>, %arg6: memref<1x1x128xf32, #tpu.memory_space<vmem>>, %arg7: memref<1x1x128xf32, #tpu.memory_space<vmem>>, %arg8: memref<1x1x128xf32, #tpu.memory_space<vmem>>, %arg9: memref<1x128x256xbf16, #tpu.memory_space<vmem>>, %arg10: memref<1x1x256xf32, #tpu.memory_space<vmem>>, %arg11: memref<1x256x128xbf16, #tpu.memory_space<vmem>>, %arg12: memref<1x1x128xf32, #tpu.memory_space<vmem>>, %arg13: memref<1x1x128xf32, #tpu.memory_space<vmem>>, %arg14: memref<1x1x128xf32, #tpu.memory_space<vmem>>, %arg15: memref<2x8x128xf32, #tpu.memory_space<vmem>>, %arg16: memref<16x128xf32, #tpu.memory_space<vmem>>) attributes {dimension_semantics = [#tpu.dimension_semantics<parallel>, #tpu.dimension_semantics<arbitrary>], iteration_bounds = array<i64: 2, 2>, scalar_prefetch = 0 : i64, scratch_operands = 1 : i64, tpu.core_type = #tpu.core_type<tc>, window_params = [{transform_indices = @transform_0, window_bounds = array<i64: 2, 8, 128>}, {transform_indices = @transform_1, window_bounds = array<i64: 1, 128, 384>}, {transform_indices = @transform_2, window_bounds = array<i64: 1, 1, 384>}, {transform_indices = @transform_3, window_bounds = array<i64: 1, 128, 128>}, {transform_indices = @transform_4, window_bounds = array<i64: 1, 1, 128>}, {transform_indices = @transform_5, window_bounds = array<i64: 1, 1, 128>}, {transform_indices = @transform_6, window_bounds = array<i64: 1, 1, 128>}, {transform_indices = @transform_7, window_bounds = array<i64: 1, 128, 256>}, {transform_indices = @transform_8, window_bounds = array<i64: 1, 1, 256>}, {transform_indices = @transform_9, window_bounds = array<i64: 1, 256, 128>}, {transform_indices = @transform_10, window_bounds = array<i64: 1, 1, 128>}, {transform_indices = @transform_11, window_bounds = array<i64: 1, 1, 128>}, {transform_indices = @transform_12, window_bounds = array<i64: 1, 1, 128>}, {transform_indices = @transform_13, window_bounds = array<i64: 2, 8, 128>}]} {
    %c0_i32 = arith.constant 0 : i32
    %0 = arith.cmpi eq, %arg1, %c0_i32 : i32
    %1 = arith.extui %0 : i1 to i32
    %c0_i32_0 = arith.constant 0 : i32
    %2 = arith.cmpi ne, %1, %c0_i32_0 : i32
    scf.if %2 {
      %c0_60 = arith.constant 0 : index
      %c0_61 = arith.constant 0 : index
      %c0_62 = arith.constant 0 : index
      %247 = vector.load %arg2[%c0_60, %c0_61, %c0_62] : memref<2x8x128xf32, #tpu.memory_space<vmem>>, vector<2x8x128xf32>
      %248 = vector.shape_cast %247 : vector<2x8x128xf32> to vector<16x128xf32>
      %c0_63 = arith.constant 0 : index
      %c0_64 = arith.constant 0 : index
      %249 = vector.load %arg16[%c0_63, %c0_64] : memref<16x128xf32, #tpu.memory_space<vmem>>, vector<16x128xf32>
      tpu.vector_store %arg16[%c0_63, %c0_64], %248 {strides = array<i32>} : memref<16x128xf32, #tpu.memory_space<vmem>>, vector<16x128xf32>,
    } else {
    }
    %c0 = arith.constant 0 : index
    %c0_1 = arith.constant 0 : index
    %3 = vector.load %arg16[%c0, %c0_1] : memref<16x128xf32, #tpu.memory_space<vmem>>, vector<16x128xf32>
    %4 = arith.truncf %3 : vector<16x128xf32> to vector<16x128xbf16>
    %c0_2 = arith.constant 0 : index
    %c0_3 = arith.constant 0 : index
    %c0_4 = arith.constant 0 : index
    %5 = vector.load %arg3[%c0_2, %c0_3, %c0_4] : memref<1x128x384xbf16, #tpu.memory_space<vmem>>, vector<1x128x384xbf16>
    %6 = vector.shape_cast %5 : vector<1x128x384xbf16> to vector<128x384xbf16>
    %cst = arith.constant dense<0.000000e+00> : vector<16x384xf32>
    %7 = tpu.matmul %4, %6, %cst {dimension_numbers = #tpu.dot_dimension_numbers<[1], [0], [0], [1], [0, 0, 1, 1], [], []>} : vector<16x128xbf16>, vector<128x384xbf16>, vector<16x384xf32> -> vector<16x384xf32>
    %c0_5 = arith.constant 0 : index
    %c0_6 = arith.constant 0 : index
    %c0_7 = arith.constant 0 : index
    %8 = vector.load %arg4[%c0_5, %c0_6, %c0_7] : memref<1x1x384xf32, #tpu.memory_space<vmem>>, vector<1x1x384xf32>
    %9 = vector.shape_cast %8 : vector<1x1x384xf32> to vector<1x384xf32>
    %10 = vector.broadcast %9 : vector<1x384xf32> to vector<16x384xf32>
    %11 = arith.addf %7, %10 : vector<16x384xf32>
    %12 = vector.extract_strided_slice %11 {offsets = [0, 0], sizes = [16, 128], strides = [1, 1]} : vector<16x384xf32> to vector<16x128xf32>
    %13 = vector.extract_strided_slice %11 {offsets = [0, 128], sizes = [16, 128], strides = [1, 1]} : vector<16x384xf32> to vector<16x128xf32>
    %14 = vector.extract_strided_slice %11 {offsets = [0, 256], sizes = [16, 128], strides = [1, 1]} : vector<16x384xf32> to vector<16x128xf32>
    %15 = vector.extract_strided_slice %12 {offsets = [0, 0], sizes = [8, 16], strides = [1, 1]} : vector<16x128xf32> to vector<8x16xf32>
    %16 = vector.extract_strided_slice %12 {offsets = [0, 16], sizes = [8, 16], strides = [1, 1]} : vector<16x128xf32> to vector<8x16xf32>
    %17 = vector.extract_strided_slice %12 {offsets = [0, 32], sizes = [8, 16], strides = [1, 1]} : vector<16x128xf32> to vector<8x16xf32>
    %18 = vector.extract_strided_slice %12 {offsets = [0, 48], sizes = [8, 16], strides = [1, 1]} : vector<16x128xf32> to vector<8x16xf32>
    %19 = vector.extract_strided_slice %12 {offsets = [0, 64], sizes = [8, 16], strides = [1, 1]} : vector<16x128xf32> to vector<8x16xf32>
    %20 = vector.extract_strided_slice %12 {offsets = [0, 80], sizes = [8, 16], strides = [1, 1]} : vector<16x128xf32> to vector<8x16xf32>
    %21 = vector.extract_strided_slice %12 {offsets = [0, 96], sizes = [8, 16], strides = [1, 1]} : vector<16x128xf32> to vector<8x16xf32>
    %22 = vector.extract_strided_slice %12 {offsets = [0, 112], sizes = [8, 16], strides = [1, 1]} : vector<16x128xf32> to vector<8x16xf32>
    %23 = vector.extract_strided_slice %12 {offsets = [8, 0], sizes = [8, 16], strides = [1, 1]} : vector<16x128xf32> to vector<8x16xf32>
    %24 = vector.extract_strided_slice %12 {offsets = [8, 16], sizes = [8, 16], strides = [1, 1]} : vector<16x128xf32> to vector<8x16xf32>
    %25 = vector.extract_strided_slice %12 {offsets = [8, 32], sizes = [8, 16], strides = [1, 1]} : vector<16x128xf32> to vector<8x16xf32>
    %26 = vector.extract_strided_slice %12 {offsets = [8, 48], sizes = [8, 16], strides = [1, 1]} : vector<16x128xf32> to vector<8x16xf32>
    %27 = vector.extract_strided_slice %12 {offsets = [8, 64], sizes = [8, 16], strides = [1, 1]} : vector<16x128xf32> to vector<8x16xf32>
    %28 = vector.extract_strided_slice %12 {offsets = [8, 80], sizes = [8, 16], strides = [1, 1]} : vector<16x128xf32> to vector<8x16xf32>
    %29 = vector.extract_strided_slice %12 {offsets = [8, 96], sizes = [8, 16], strides = [1, 1]} : vector<16x128xf32> to vector<8x16xf32>
    %30 = vector.extract_strided_slice %12 {offsets = [8, 112], sizes = [8, 16], strides = [1, 1]} : vector<16x128xf32> to vector<8x16xf32>
    %31 = vector.shape_cast %15 : vector<8x16xf32> to vector<1x8x16xf32>
    %32 = vector.shape_cast %16 : vector<8x16xf32> to vector<1x8x16xf32>
    %33 = vector.shape_cast %17 : vector<8x16xf32> to vector<1x8x16xf32>
    %34 = vector.shape_cast %18 : vector<8x16xf32> to vector<1x8x16xf32>
    %35 = vector.shape_cast %19 : vector<8x16xf32> to vector<1x8x16xf32>
    %36 = vector.shape_cast %20 : vector<8x16xf32> to vector<1x8x16xf32>
    %37 = vector.shape_cast %21 : vector<8x16xf32> to vector<1x8x16xf32>
    %38 = vector.shape_cast %22 : vector<8x16xf32> to vector<1x8x16xf32>
    %39 = vector.shape_cast %23 : vector<8x16xf32> to vector<1x8x16xf32>
    %40 = vector.shape_cast %24 : vector<8x16xf32> to vector<1x8x16xf32>
    %41 = vector.shape_cast %25 : vector<8x16xf32> to vector<1x8x16xf32>
    %42 = vector.shape_cast %26 : vector<8x16xf32> to vector<1x8x16xf32>
    %43 = vector.shape_cast %27 : vector<8x16xf32> to vector<1x8x16xf32>
    %44 = vector.shape_cast %28 : vector<8x16xf32> to vector<1x8x16xf32>
    %45 = vector.shape_cast %29 : vector<8x16xf32> to vector<1x8x16xf32>
    %46 = vector.shape_cast %30 : vector<8x16xf32> to vector<1x8x16xf32>
    %47 = tpu.concatenate %31, %32, %33, %34, %35, %36, %37, %38, %39, %40, %41, %42, %43, %44, %45, %46 in 0 : vector<1x8x16xf32>, vector<1x8x16xf32>, vector<1x8x16xf32>, vector<1x8x16xf32>, vector<1x8x16xf32>, vector<1x8x16xf32>, vector<1x8x16xf32>, vector<1x8x16xf32>, vector<1x8x16xf32>, vector<1x8x16xf32>, vector<1x8x16xf32>, vector<1x8x16xf32>, vector<1x8x16xf32>, vector<1x8x16xf32>, vector<1x8x16xf32>, vector<1x8x16xf32> -> vector<16x8x16xf32>
    %48 = arith.truncf %47 : vector<16x8x16xf32> to vector<16x8x16xbf16>
    %49 = vector.extract_strided_slice %13 {offsets = [0, 0], sizes = [8, 16], strides = [1, 1]} : vector<16x128xf32> to vector<8x16xf32>
    %50 = vector.extract_strided_slice %13 {offsets = [0, 16], sizes = [8, 16], strides = [1, 1]} : vector<16x128xf32> to vector<8x16xf32>
    %51 = vector.extract_strided_slice %13 {offsets = [0, 32], sizes = [8, 16], strides = [1, 1]} : vector<16x128xf32> to vector<8x16xf32>
    %52 = vector.extract_strided_slice %13 {offsets = [0, 48], sizes = [8, 16], strides = [1, 1]} : vector<16x128xf32> to vector<8x16xf32>
    %53 = vector.extract_strided_slice %13 {offsets = [0, 64], sizes = [8, 16], strides = [1, 1]} : vector<16x128xf32> to vector<8x16xf32>
    %54 = vector.extract_strided_slice %13 {offsets = [0, 80], sizes = [8, 16], strides = [1, 1]} : vector<16x128xf32> to vector<8x16xf32>
    %55 = vector.extract_strided_slice %13 {offsets = [0, 96], sizes = [8, 16], strides = [1, 1]} : vector<16x128xf32> to vector<8x16xf32>
    %56 = vector.extract_strided_slice %13 {offsets = [0, 112], sizes = [8, 16], strides = [1, 1]} : vector<16x128xf32> to vector<8x16xf32>
    %57 = vector.extract_strided_slice %13 {offsets = [8, 0], sizes = [8, 16], strides = [1, 1]} : vector<16x128xf32> to vector<8x16xf32>
    %58 = vector.extract_strided_slice %13 {offsets = [8, 16], sizes = [8, 16], strides = [1, 1]} : vector<16x128xf32> to vector<8x16xf32>
    %59 = vector.extract_strided_slice %13 {offsets = [8, 32], sizes = [8, 16], strides = [1, 1]} : vector<16x128xf32> to vector<8x16xf32>
    %60 = vector.extract_strided_slice %13 {offsets = [8, 48], sizes = [8, 16], strides = [1, 1]} : vector<16x128xf32> to vector<8x16xf32>
    %61 = vector.extract_strided_slice %13 {offsets = [8, 64], sizes = [8, 16], strides = [1, 1]} : vector<16x128xf32> to vector<8x16xf32>
    %62 = vector.extract_strided_slice %13 {offsets = [8, 80], sizes = [8, 16], strides = [1, 1]} : vector<16x128xf32> to vector<8x16xf32>
    %63 = vector.extract_strided_slice %13 {offsets = [8, 96], sizes = [8, 16], strides = [1, 1]} : vector<16x128xf32> to vector<8x16xf32>
    %64 = vector.extract_strided_slice %13 {offsets = [8, 112], sizes = [8, 16], strides = [1, 1]} : vector<16x128xf32> to vector<8x16xf32>
    %65 = vector.shape_cast %49 : vector<8x16xf32> to vector<1x8x16xf32>
    %66 = vector.shape_cast %50 : vector<8x16xf32> to vector<1x8x16xf32>
    %67 = vector.shape_cast %51 : vector<8x16xf32> to vector<1x8x16xf32>
    %68 = vector.shape_cast %52 : vector<8x16xf32> to vector<1x8x16xf32>
    %69 = vector.shape_cast %53 : vector<8x16xf32> to vector<1x8x16xf32>
    %70 = vector.shape_cast %54 : vector<8x16xf32> to vector<1x8x16xf32>
    %71 = vector.shape_cast %55 : vector<8x16xf32> to vector<1x8x16xf32>
    %72 = vector.shape_cast %56 : vector<8x16xf32> to vector<1x8x16xf32>
    %73 = vector.shape_cast %57 : vector<8x16xf32> to vector<1x8x16xf32>
    %74 = vector.shape_cast %58 : vector<8x16xf32> to vector<1x8x16xf32>
    %75 = vector.shape_cast %59 : vector<8x16xf32> to vector<1x8x16xf32>
    %76 = vector.shape_cast %60 : vector<8x16xf32> to vector<1x8x16xf32>
    %77 = vector.shape_cast %61 : vector<8x16xf32> to vector<1x8x16xf32>
    %78 = vector.shape_cast %62 : vector<8x16xf32> to vector<1x8x16xf32>
    %79 = vector.shape_cast %63 : vector<8x16xf32> to vector<1x8x16xf32>
    %80 = vector.shape_cast %64 : vector<8x16xf32> to vector<1x8x16xf32>
    %81 = tpu.concatenate %65, %66, %67, %68, %69, %70, %71, %72, %73, %74, %75, %76, %77, %78, %79, %80 in 0 : vector<1x8x16xf32>, vector<1x8x16xf32>, vector<1x8x16xf32>, vector<1x8x16xf32>, vector<1x8x16xf32>, vector<1x8x16xf32>, vector<1x8x16xf32>, vector<1x8x16xf32>, vector<1x8x16xf32>, vector<1x8x16xf32>, vector<1x8x16xf32>, vector<1x8x16xf32>, vector<1x8x16xf32>, vector<1x8x16xf32>, vector<1x8x16xf32>, vector<1x8x16xf32> -> vector<16x8x16xf32>
    %82 = arith.truncf %81 : vector<16x8x16xf32> to vector<16x8x16xbf16>
    %83 = vector.extract_strided_slice %14 {offsets = [0, 0], sizes = [8, 16], strides = [1, 1]} : vector<16x128xf32> to vector<8x16xf32>
    %84 = vector.extract_strided_slice %14 {offsets = [0, 16], sizes = [8, 16], strides = [1, 1]} : vector<16x128xf32> to vector<8x16xf32>
    %85 = vector.extract_strided_slice %14 {offsets = [0, 32], sizes = [8, 16], strides = [1, 1]} : vector<16x128xf32> to vector<8x16xf32>
    %86 = vector.extract_strided_slice %14 {offsets = [0, 48], sizes = [8, 16], strides = [1, 1]} : vector<16x128xf32> to vector<8x16xf32>
    %87 = vector.extract_strided_slice %14 {offsets = [0, 64], sizes = [8, 16], strides = [1, 1]} : vector<16x128xf32> to vector<8x16xf32>
    %88 = vector.extract_strided_slice %14 {offsets = [0, 80], sizes = [8, 16], strides = [1, 1]} : vector<16x128xf32> to vector<8x16xf32>
    %89 = vector.extract_strided_slice %14 {offsets = [0, 96], sizes = [8, 16], strides = [1, 1]} : vector<16x128xf32> to vector<8x16xf32>
    %90 = vector.extract_strided_slice %14 {offsets = [0, 112], sizes = [8, 16], strides = [1, 1]} : vector<16x128xf32> to vector<8x16xf32>
    %91 = vector.extract_strided_slice %14 {offsets = [8, 0], sizes = [8, 16], strides = [1, 1]} : vector<16x128xf32> to vector<8x16xf32>
    %92 = vector.extract_strided_slice %14 {offsets = [8, 16], sizes = [8, 16], strides = [1, 1]} : vector<16x128xf32> to vector<8x16xf32>
    %93 = vector.extract_strided_slice %14 {offsets = [8, 32], sizes = [8, 16], strides = [1, 1]} : vector<16x128xf32> to vector<8x16xf32>
    %94 = vector.extract_strided_slice %14 {offsets = [8, 48], sizes = [8, 16], strides = [1, 1]} : vector<16x128xf32> to vector<8x16xf32>
    %95 = vector.extract_strided_slice %14 {offsets = [8, 64], sizes = [8, 16], strides = [1, 1]} : vector<16x128xf32> to vector<8x16xf32>
    %96 = vector.extract_strided_slice %14 {offsets = [8, 80], sizes = [8, 16], strides = [1, 1]} : vector<16x128xf32> to vector<8x16xf32>
    %97 = vector.extract_strided_slice %14 {offsets = [8, 96], sizes = [8, 16], strides = [1, 1]} : vector<16x128xf32> to vector<8x16xf32>
    %98 = vector.extract_strided_slice %14 {offsets = [8, 112], sizes = [8, 16], strides = [1, 1]} : vector<16x128xf32> to vector<8x16xf32>
    %99 = vector.shape_cast %83 : vector<8x16xf32> to vector<1x8x16xf32>
    %100 = vector.shape_cast %84 : vector<8x16xf32> to vector<1x8x16xf32>
    %101 = vector.shape_cast %85 : vector<8x16xf32> to vector<1x8x16xf32>
    %102 = vector.shape_cast %86 : vector<8x16xf32> to vector<1x8x16xf32>
    %103 = vector.shape_cast %87 : vector<8x16xf32> to vector<1x8x16xf32>
    %104 = vector.shape_cast %88 : vector<8x16xf32> to vector<1x8x16xf32>
    %105 = vector.shape_cast %89 : vector<8x16xf32> to vector<1x8x16xf32>
    %106 = vector.shape_cast %90 : vector<8x16xf32> to vector<1x8x16xf32>
    %107 = vector.shape_cast %91 : vector<8x16xf32> to vector<1x8x16xf32>
    %108 = vector.shape_cast %92 : vector<8x16xf32> to vector<1x8x16xf32>
    %109 = vector.shape_cast %93 : vector<8x16xf32> to vector<1x8x16xf32>
    %110 = vector.shape_cast %94 : vector<8x16xf32> to vector<1x8x16xf32>
    %111 = vector.shape_cast %95 : vector<8x16xf32> to vector<1x8x16xf32>
    %112 = vector.shape_cast %96 : vector<8x16xf32> to vector<1x8x16xf32>
    %113 = vector.shape_cast %97 : vector<8x16xf32> to vector<1x8x16xf32>
    %114 = vector.shape_cast %98 : vector<8x16xf32> to vector<1x8x16xf32>
    %115 = tpu.concatenate %99, %100, %101, %102, %103, %104, %105, %106, %107, %108, %109, %110, %111, %112, %113, %114 in 0 : vector<1x8x16xf32>, vector<1x8x16xf32>, vector<1x8x16xf32>, vector<1x8x16xf32>, vector<1x8x16xf32>, vector<1x8x16xf32>, vector<1x8x16xf32>, vector<1x8x16xf32>, vector<1x8x16xf32>, vector<1x8x16xf32>, vector<1x8x16xf32>, vector<1x8x16xf32>, vector<1x8x16xf32>, vector<1x8x16xf32>, vector<1x8x16xf32>, vector<1x8x16xf32> -> vector<16x8x16xf32>
    %116 = arith.truncf %115 : vector<16x8x16xf32> to vector<16x8x16xbf16>
    "tpu.trace_start"() <{level = 10 : i32, message = "gqd,gkd->gqk"}> : () -> ()
    %cst_8 = arith.constant dense<0.000000e+00> : vector<16x8x8xf32>
    %117 = tpu.matmul %48, %82, %cst_8 {dimension_numbers = #tpu.dot_dimension_numbers<[2], [2], [1], [1], [0, 0, 0, 1, 1, 1], [0], [0]>} : vector<16x8x16xbf16>, vector<16x8x16xbf16>, vector<16x8x8xf32> -> vector<16x8x8xf32>
    "tpu.trace_stop"() : () -> ()
    %cst_9 = arith.constant 2.500000e-01 : f32
    %118 = vector.broadcast %cst_9 : f32 to vector<16x8x8xf32>
    %119 = arith.mulf %117, %118 : vector<16x8x8xf32>
    %cst_10 = arith.constant dense<0xFF800000> : vector<16x8xf32>
    %120 = vector.multi_reduction <maximumf>, %119, %cst_10 [2] : vector<16x8x8xf32> to vector<16x8xf32>
    %121 = vector.shape_cast %120 : vector<16x8xf32> to vector<16x8x1xf32>
    %122 = vector.broadcast %121 : vector<16x8x1xf32> to vector<16x8x8xf32>
    %123 = arith.subf %119, %122 : vector<16x8x8xf32>
    %124 = math.exp %123 : vector<16x8x8xf32>
    %cst_11 = arith.constant dense<0.000000e+00> : vector<16x8xf32>
    %125 = vector.multi_reduction <add>, %124, %cst_11 [2] : vector<16x8x8xf32> to vector<16x8xf32>
    %126 = vector.shape_cast %125 : vector<16x8xf32> to vector<16x8x1xf32>
    %127 = tpu.reciprocal %126 {approx = true} : vector<16x8x1xf32> -> vector<16x8x1xf32>
    %128 = vector.broadcast %127 : vector<16x8x1xf32> to vector<16x8x8xf32>
    %129 = arith.mulf %124, %128 : vector<16x8x8xf32>
    %130 = arith.truncf %129 : vector<16x8x8xf32> to vector<16x8x8xbf16>
    "tpu.trace_start"() <{level = 10 : i32, message = "gqk,gkd->gqd"}> : () -> ()
    %cst_12 = arith.constant dense<0.000000e+00> : vector<16x8x16xf32>
    %131 = tpu.matmul %130, %116, %cst_12 {dimension_numbers = #tpu.dot_dimension_numbers<[2], [1], [1], [2], [0, 0, 0, 1, 1, 2], [0], [0]>} : vector<16x8x8xbf16>, vector<16x8x16xbf16>, vector<16x8x16xf32> -> vector<16x8x16xf32>
    "tpu.trace_stop"() : () -> ()
    %132 = vector.extract_strided_slice %131 {offsets = [0, 0, 0], sizes = [1, 8, 16], strides = [1, 1, 1]} : vector<16x8x16xf32> to vector<1x8x16xf32>
    %133 = vector.shape_cast %132 : vector<1x8x16xf32> to vector<8x16xf32>
    %134 = vector.extract_strided_slice %131 {offsets = [1, 0, 0], sizes = [1, 8, 16], strides = [1, 1, 1]} : vector<16x8x16xf32> to vector<1x8x16xf32>
    %135 = vector.shape_cast %134 : vector<1x8x16xf32> to vector<8x16xf32>
    %136 = vector.extract_strided_slice %131 {offsets = [2, 0, 0], sizes = [1, 8, 16], strides = [1, 1, 1]} : vector<16x8x16xf32> to vector<1x8x16xf32>
    %137 = vector.shape_cast %136 : vector<1x8x16xf32> to vector<8x16xf32>
    %138 = vector.extract_strided_slice %131 {offsets = [3, 0, 0], sizes = [1, 8, 16], strides = [1, 1, 1]} : vector<16x8x16xf32> to vector<1x8x16xf32>
    %139 = vector.shape_cast %138 : vector<1x8x16xf32> to vector<8x16xf32>
    %140 = vector.extract_strided_slice %131 {offsets = [4, 0, 0], sizes = [1, 8, 16], strides = [1, 1, 1]} : vector<16x8x16xf32> to vector<1x8x16xf32>
    %141 = vector.shape_cast %140 : vector<1x8x16xf32> to vector<8x16xf32>
    %142 = vector.extract_strided_slice %131 {offsets = [5, 0, 0], sizes = [1, 8, 16], strides = [1, 1, 1]} : vector<16x8x16xf32> to vector<1x8x16xf32>
    %143 = vector.shape_cast %142 : vector<1x8x16xf32> to vector<8x16xf32>
    %144 = vector.extract_strided_slice %131 {offsets = [6, 0, 0], sizes = [1, 8, 16], strides = [1, 1, 1]} : vector<16x8x16xf32> to vector<1x8x16xf32>
    %145 = vector.shape_cast %144 : vector<1x8x16xf32> to vector<8x16xf32>
    %146 = vector.extract_strided_slice %131 {offsets = [7, 0, 0], sizes = [1, 8, 16], strides = [1, 1, 1]} : vector<16x8x16xf32> to vector<1x8x16xf32>
    %147 = vector.shape_cast %146 : vector<1x8x16xf32> to vector<8x16xf32>
    %148 = tpu.concatenate %133, %135, %137, %139, %141, %143, %145, %147 in 1 : vector<8x16xf32>, vector<8x16xf32>, vector<8x16xf32>, vector<8x16xf32>, vector<8x16xf32>, vector<8x16xf32>, vector<8x16xf32>, vector<8x16xf32> -> vector<8x128xf32>
    %149 = vector.extract_strided_slice %131 {offsets = [8, 0, 0], sizes = [1, 8, 16], strides = [1, 1, 1]} : vector<16x8x16xf32> to vector<1x8x16xf32>
    %150 = vector.shape_cast %149 : vector<1x8x16xf32> to vector<8x16xf32>
    %151 = vector.extract_strided_slice %131 {offsets = [9, 0, 0], sizes = [1, 8, 16], strides = [1, 1, 1]} : vector<16x8x16xf32> to vector<1x8x16xf32>
    %152 = vector.shape_cast %151 : vector<1x8x16xf32> to vector<8x16xf32>
    %153 = vector.extract_strided_slice %131 {offsets = [10, 0, 0], sizes = [1, 8, 16], strides = [1, 1, 1]} : vector<16x8x16xf32> to vector<1x8x16xf32>
    %154 = vector.shape_cast %153 : vector<1x8x16xf32> to vector<8x16xf32>
    %155 = vector.extract_strided_slice %131 {offsets = [11, 0, 0], sizes = [1, 8, 16], strides = [1, 1, 1]} : vector<16x8x16xf32> to vector<1x8x16xf32>
    %156 = vector.shape_cast %155 : vector<1x8x16xf32> to vector<8x16xf32>
    %157 = vector.extract_strided_slice %131 {offsets = [12, 0, 0], sizes = [1, 8, 16], strides = [1, 1, 1]} : vector<16x8x16xf32> to vector<1x8x16xf32>
    %158 = vector.shape_cast %157 : vector<1x8x16xf32> to vector<8x16xf32>
    %159 = vector.extract_strided_slice %131 {offsets = [13, 0, 0], sizes = [1, 8, 16], strides = [1, 1, 1]} : vector<16x8x16xf32> to vector<1x8x16xf32>
    %160 = vector.shape_cast %159 : vector<1x8x16xf32> to vector<8x16xf32>
    %161 = vector.extract_strided_slice %131 {offsets = [14, 0, 0], sizes = [1, 8, 16], strides = [1, 1, 1]} : vector<16x8x16xf32> to vector<1x8x16xf32>
    %162 = vector.shape_cast %161 : vector<1x8x16xf32> to vector<8x16xf32>
    %163 = vector.extract_strided_slice %131 {offsets = [15, 0, 0], sizes = [1, 8, 16], strides = [1, 1, 1]} : vector<16x8x16xf32> to vector<1x8x16xf32>
    %164 = vector.shape_cast %163 : vector<1x8x16xf32> to vector<8x16xf32>
    %165 = tpu.concatenate %150, %152, %154, %156, %158, %160, %162, %164 in 1 : vector<8x16xf32>, vector<8x16xf32>, vector<8x16xf32>, vector<8x16xf32>, vector<8x16xf32>, vector<8x16xf32>, vector<8x16xf32>, vector<8x16xf32> -> vector<8x128xf32>
    %166 = tpu.concatenate %148, %165 in 0 : vector<8x128xf32>, vector<8x128xf32> -> vector<16x128xf32>
    %167 = arith.truncf %166 : vector<16x128xf32> to vector<16x128xbf16>
    %c0_13 = arith.constant 0 : index
    %c0_14 = arith.constant 0 : index
    %c0_15 = arith.constant 0 : index
    %168 = vector.load %arg5[%c0_13, %c0_14, %c0_15] : memref<1x128x128xbf16, #tpu.memory_space<vmem>>, vector<1x128x128xbf16>
    %169 = vector.shape_cast %168 : vector<1x128x128xbf16> to vector<128x128xbf16>
    %cst_16 = arith.constant dense<0.000000e+00> : vector<16x128xf32>
    %170 = tpu.matmul %167, %169, %cst_16 {dimension_numbers = #tpu.dot_dimension_numbers<[1], [0], [0], [1], [0, 0, 1, 1], [], []>} : vector<16x128xbf16>, vector<128x128xbf16>, vector<16x128xf32> -> vector<16x128xf32>
    %c0_17 = arith.constant 0 : index
    %c0_18 = arith.constant 0 : index
    %c0_19 = arith.constant 0 : index
    %171 = vector.load %arg6[%c0_17, %c0_18, %c0_19] : memref<1x1x128xf32, #tpu.memory_space<vmem>>, vector<1x1x128xf32>
    %172 = vector.shape_cast %171 : vector<1x1x128xf32> to vector<1x128xf32>
    %173 = vector.broadcast %172 : vector<1x128xf32> to vector<16x128xf32>
    %174 = arith.addf %170, %173 : vector<16x128xf32>
    %175 = arith.addf %3, %174 : vector<16x128xf32>
    %c0_20 = arith.constant 0 : index
    %c0_21 = arith.constant 0 : index
    %c0_22 = arith.constant 0 : index
    %176 = vector.load %arg7[%c0_20, %c0_21, %c0_22] : memref<1x1x128xf32, #tpu.memory_space<vmem>>, vector<1x1x128xf32>
    %177 = vector.shape_cast %176 : vector<1x1x128xf32> to vector<1x128xf32>
    %c0_23 = arith.constant 0 : index
    %c0_24 = arith.constant 0 : index
    %c0_25 = arith.constant 0 : index
    %178 = vector.load %arg8[%c0_23, %c0_24, %c0_25] : memref<1x1x128xf32, #tpu.memory_space<vmem>>, vector<1x1x128xf32>
    %179 = vector.shape_cast %178 : vector<1x1x128xf32> to vector<1x128xf32>
    %cst_26 = arith.constant dense<0.000000e+00> : vector<16xf32>
    %180 = vector.multi_reduction <add>, %175, %cst_26 [1] : vector<16x128xf32> to vector<16xf32>
    %181 = vector.shape_cast %180 : vector<16xf32> to vector<16x1xf32>
    %cst_27 = arith.constant 1.280000e+02 : f32
    %182 = vector.broadcast %cst_27 : f32 to vector<16x1xf32>
    %183 = arith.divf %181, %182 : vector<16x1xf32>
    %184 = vector.broadcast %183 : vector<16x1xf32> to vector<16x128xf32>
    %185 = arith.subf %175, %184 : vector<16x128xf32>
    %186 = arith.mulf %185, %185 : vector<16x128xf32>
    %cst_28 = arith.constant dense<0.000000e+00> : vector<16xf32>
    %187 = vector.multi_reduction <add>, %186, %cst_28 [1] : vector<16x128xf32> to vector<16xf32>
    %188 = vector.shape_cast %187 : vector<16xf32> to vector<16x1xf32>
    %cst_29 = arith.constant 1.280000e+02 : f32
    %189 = vector.broadcast %cst_29 : f32 to vector<16x1xf32>
    %190 = arith.divf %188, %189 : vector<16x1xf32>
    %cst_30 = arith.constant 9.99999974E-6 : f32
    %191 = vector.broadcast %cst_30 : f32 to vector<16x1xf32>
    %192 = arith.addf %190, %191 : vector<16x1xf32>
    %193 = math.rsqrt %192 : vector<16x1xf32>
    %194 = vector.broadcast %193 : vector<16x1xf32> to vector<16x128xf32>
    %195 = arith.mulf %185, %194 : vector<16x128xf32>
    %196 = vector.broadcast %177 : vector<1x128xf32> to vector<16x128xf32>
    %197 = arith.mulf %195, %196 : vector<16x128xf32>
    %198 = vector.broadcast %179 : vector<1x128xf32> to vector<16x128xf32>
    %199 = arith.addf %197, %198 : vector<16x128xf32>
    %200 = arith.truncf %199 : vector<16x128xf32> to vector<16x128xbf16>
    %c0_31 = arith.constant 0 : index
    %c0_32 = arith.constant 0 : index
    %c0_33 = arith.constant 0 : index
    %201 = vector.load %arg9[%c0_31, %c0_32, %c0_33] : memref<1x128x256xbf16, #tpu.memory_space<vmem>>, vector<1x128x256xbf16>
    %202 = vector.shape_cast %201 : vector<1x128x256xbf16> to vector<128x256xbf16>
    %cst_34 = arith.constant dense<0.000000e+00> : vector<16x256xf32>
    %203 = tpu.matmul %200, %202, %cst_34 {dimension_numbers = #tpu.dot_dimension_numbers<[1], [0], [0], [1], [0, 0, 1, 1], [], []>} : vector<16x128xbf16>, vector<128x256xbf16>, vector<16x256xf32> -> vector<16x256xf32>
    %c0_35 = arith.constant 0 : index
    %c0_36 = arith.constant 0 : index
    %c0_37 = arith.constant 0 : index
    %204 = vector.load %arg10[%c0_35, %c0_36, %c0_37] : memref<1x1x256xf32, #tpu.memory_space<vmem>>, vector<1x1x256xf32>
    %205 = vector.shape_cast %204 : vector<1x1x256xf32> to vector<1x256xf32>
    %206 = vector.broadcast %205 : vector<1x256xf32> to vector<16x256xf32>
    %207 = arith.addf %203, %206 : vector<16x256xf32>
    %cst_38 = arith.constant 0.000000e+00 : f32
    %208 = vector.broadcast %cst_38 : f32 to vector<16x256xf32>
    %209 = arith.maximumf %207, %208 : vector<16x256xf32>
    %210 = arith.truncf %209 : vector<16x256xf32> to vector<16x256xbf16>
    %c0_39 = arith.constant 0 : index
    %c0_40 = arith.constant 0 : index
    %c0_41 = arith.constant 0 : index
    %211 = vector.load %arg11[%c0_39, %c0_40, %c0_41] : memref<1x256x128xbf16, #tpu.memory_space<vmem>>, vector<1x256x128xbf16>
    %212 = vector.shape_cast %211 : vector<1x256x128xbf16> to vector<256x128xbf16>
    %cst_42 = arith.constant dense<0.000000e+00> : vector<16x128xf32>
    %213 = tpu.matmul %210, %212, %cst_42 {dimension_numbers = #tpu.dot_dimension_numbers<[1], [0], [0], [1], [0, 0, 1, 1], [], []>} : vector<16x256xbf16>, vector<256x128xbf16>, vector<16x128xf32> -> vector<16x128xf32>
    %c0_43 = arith.constant 0 : index
    %c0_44 = arith.constant 0 : index
    %c0_45 = arith.constant 0 : index
    %214 = vector.load %arg12[%c0_43, %c0_44, %c0_45] : memref<1x1x128xf32, #tpu.memory_space<vmem>>, vector<1x1x128xf32>
    %215 = vector.shape_cast %214 : vector<1x1x128xf32> to vector<1x128xf32>
    %216 = vector.broadcast %215 : vector<1x128xf32> to vector<16x128xf32>
    %217 = arith.addf %213, %216 : vector<16x128xf32>
    %218 = arith.addf %199, %217 : vector<16x128xf32>
    %c0_46 = arith.constant 0 : index
    %c0_47 = arith.constant 0 : index
    %c0_48 = arith.constant 0 : index
    %219 = vector.load %arg13[%c0_46, %c0_47, %c0_48] : memref<1x1x128xf32, #tpu.memory_space<vmem>>, vector<1x1x128xf32>
    %220 = vector.shape_cast %219 : vector<1x1x128xf32> to vector<1x128xf32>
    %c0_49 = arith.constant 0 : index
    %c0_50 = arith.constant 0 : index
    %c0_51 = arith.constant 0 : index
    %221 = vector.load %arg14[%c0_49, %c0_50, %c0_51] : memref<1x1x128xf32, #tpu.memory_space<vmem>>, vector<1x1x128xf32>
    %222 = vector.shape_cast %221 : vector<1x1x128xf32> to vector<1x128xf32>
    %cst_52 = arith.constant dense<0.000000e+00> : vector<16xf32>
    %223 = vector.multi_reduction <add>, %218, %cst_52 [1] : vector<16x128xf32> to vector<16xf32>
    %224 = vector.shape_cast %223 : vector<16xf32> to vector<16x1xf32>
    %cst_53 = arith.constant 1.280000e+02 : f32
    %225 = vector.broadcast %cst_53 : f32 to vector<16x1xf32>
    %226 = arith.divf %224, %225 : vector<16x1xf32>
    %227 = vector.broadcast %226 : vector<16x1xf32> to vector<16x128xf32>
    %228 = arith.subf %218, %227 : vector<16x128xf32>
    %229 = arith.mulf %228, %228 : vector<16x128xf32>
    %cst_54 = arith.constant dense<0.000000e+00> : vector<16xf32>
    %230 = vector.multi_reduction <add>, %229, %cst_54 [1] : vector<16x128xf32> to vector<16xf32>
    %231 = vector.shape_cast %230 : vector<16xf32> to vector<16x1xf32>
    %cst_55 = arith.constant 1.280000e+02 : f32
    %232 = vector.broadcast %cst_55 : f32 to vector<16x1xf32>
    %233 = arith.divf %231, %232 : vector<16x1xf32>
    %cst_56 = arith.constant 9.99999974E-6 : f32
    %234 = vector.broadcast %cst_56 : f32 to vector<16x1xf32>
    %235 = arith.addf %233, %234 : vector<16x1xf32>
    %236 = math.rsqrt %235 : vector<16x1xf32>
    %237 = vector.broadcast %236 : vector<16x1xf32> to vector<16x128xf32>
    %238 = arith.mulf %228, %237 : vector<16x128xf32>
    %239 = vector.broadcast %220 : vector<1x128xf32> to vector<16x128xf32>
    %240 = arith.mulf %238, %239 : vector<16x128xf32>
    %241 = vector.broadcast %222 : vector<1x128xf32> to vector<16x128xf32>
    %242 = arith.addf %240, %241 : vector<16x128xf32>
    %c0_57 = arith.constant 0 : index
    %c0_58 = arith.constant 0 : index
    %243 = vector.load %arg16[%c0_57, %c0_58] : memref<16x128xf32, #tpu.memory_space<vmem>>, vector<16x128xf32>
    tpu.vector_store %arg16[%c0_57, %c0_58], %242 {strides = array<i32>} : memref<16x128xf32, #tpu.memory_space<vmem>>, vector<16x128xf32>,
    %c1_i32 = arith.constant 1 : i32
    %244 = arith.cmpi eq, %arg1, %c1_i32 : i32
    %245 = arith.extui %244 : i1 to i32
    %c0_i32_59 = arith.constant 0 : i32
    %246 = arith.cmpi ne, %245, %c0_i32_59 : i32
    scf.if %246 {
      %247 = vector.shape_cast %242 : vector<16x128xf32> to vector<2x8x128xf32>
      %c0_60 = arith.constant 0 : index
      %c0_61 = arith.constant 0 : index
      %c0_62 = arith.constant 0 : index
      %248 = vector.load %arg15[%c0_60, %c0_61, %c0_62] : memref<2x8x128xf32, #tpu.memory_space<vmem>>, vector<2x8x128xf32>
      tpu.vector_store %arg15[%c0_60, %c0_61, %c0_62], %247 {strides = array<i32>} : memref<2x8x128xf32, #tpu.memory_space<vmem>>, vector<2x8x128xf32>,
    } else {
    }
    return
  }
  func.func @transform_0(%arg0: i32, %arg1: i32) -> (i32, i32, i32) {
    %c0_i32 = arith.constant 0 : i32
    %c0_i32_0 = arith.constant 0 : i32
    %c0_i32_1 = arith.constant 0 : i32
    return %arg0, %c0_i32, %c0_i32_0 : i32, i32, i32
  }
  func.func @transform_1(%arg0: i32, %arg1: i32) -> (i32, i32, i32) {
    %c0_i32 = arith.constant 0 : i32
    %c0_i32_0 = arith.constant 0 : i32
    %c0_i32_1 = arith.constant 0 : i32
    return %arg1, %c0_i32, %c0_i32_0 : i32, i32, i32
  }
  func.func @transform_2(%arg0: i32, %arg1: i32) -> (i32, i32, i32) {
    %c0_i32 = arith.constant 0 : i32
    %c0_i32_0 = arith.constant 0 : i32
    %c0_i32_1 = arith.constant 0 : i32
    return %arg1, %c0_i32, %c0_i32_0 : i32, i32, i32
  }
  func.func @transform_3(%arg0: i32, %arg1: i32) -> (i32, i32, i32) {
    %c0_i32 = arith.constant 0 : i32
    %c0_i32_0 = arith.constant 0 : i32
    %c0_i32_1 = arith.constant 0 : i32
    return %arg1, %c0_i32, %c0_i32_0 : i32, i32, i32
  }
  func.func @transform_4(%arg0: i32, %arg1: i32) -> (i32, i32, i32) {
    %c0_i32 = arith.constant 0 : i32
    %c0_i32_0 = arith.constant 0 : i32
    %c0_i32_1 = arith.constant 0 : i32
    return %arg1, %c0_i32, %c0_i32_0 : i32, i32, i32
  }
  func.func @transform_5(%arg0: i32, %arg1: i32) -> (i32, i32, i32) {
    %c0_i32 = arith.constant 0 : i32
    %c0_i32_0 = arith.constant 0 : i32
    %c0_i32_1 = arith.constant 0 : i32
    return %arg1, %c0_i32, %c0_i32_0 : i32, i32, i32
  }
  func.func @transform_6(%arg0: i32, %arg1: i32) -> (i32, i32, i32) {
    %c0_i32 = arith.constant 0 : i32
    %c0_i32_0 = arith.constant 0 : i32
    %c0_i32_1 = arith.constant 0 : i32
    return %arg1, %c0_i32, %c0_i32_0 : i32, i32, i32
  }
  func.func @transform_7(%arg0: i32, %arg1: i32) -> (i32, i32, i32) {
    %c0_i32 = arith.constant 0 : i32
    %c0_i32_0 = arith.constant 0 : i32
    %c0_i32_1 = arith.constant 0 : i32
    return %arg1, %c0_i32, %c0_i32_0 : i32, i32, i32
  }
  func.func @transform_8(%arg0: i32, %arg1: i32) -> (i32, i32, i32) {
    %c0_i32 = arith.constant 0 : i32
    %c0_i32_0 = arith.constant 0 : i32
    %c0_i32_1 = arith.constant 0 : i32
    return %arg1, %c0_i32, %c0_i32_0 : i32, i32, i32
  }
  func.func @transform_9(%arg0: i32, %arg1: i32) -> (i32, i32, i32) {
    %c0_i32 = arith.constant 0 : i32
    %c0_i32_0 = arith.constant 0 : i32
    %c0_i32_1 = arith.constant 0 : i32
    return %arg1, %c0_i32, %c0_i32_0 : i32, i32, i32
  }
  func.func @transform_10(%arg0: i32, %arg1: i32) -> (i32, i32, i32) {
    %c0_i32 = arith.constant 0 : i32
    %c0_i32_0 = arith.constant 0 : i32
    %c0_i32_1 = arith.constant 0 : i32
    return %arg1, %c0_i32, %c0_i32_0 : i32, i32, i32
  }
  func.func @transform_11(%arg0: i32, %arg1: i32) -> (i32, i32, i32) {
    %c0_i32 = arith.constant 0 : i32
    %c0_i32_0 = arith.constant 0 : i32
    %c0_i32_1 = arith.constant 0 : i32
    return %arg1, %c0_i32, %c0_i32_0 : i32, i32, i32
  }
  func.func @transform_12(%arg0: i32, %arg1: i32) -> (i32, i32, i32) {
    %c0_i32 = arith.constant 0 : i32
    %c0_i32_0 = arith.constant 0 : i32
    %c0_i32_1 = arith.constant 0 : i32
    return %arg1, %c0_i32, %c0_i32_0 : i32, i32, i32
  }
  func.func @transform_13(%arg0: i32, %arg1: i32) -> (i32, i32, i32) {
    %c0_i32 = arith.constant 0 : i32
    %c0_i32_0 = arith.constant 0 : i32
    %c0_i32_1 = arith.constant 0 : i32
    return %arg0, %c0_i32, %c0_i32_0 : i32, i32, i32
  }
}

</mosaic_0001>

<llo_original>
// kernel: singapore_llm_forward.3
$region0: #{singapore_llm_forward.3}
  #allocation0 [shape = 'u32[]', space=smem, size = 0x4, offset = 0x4, fixed_abs, tag = 'smem constant byte address 0x4 - core index']
  #allocation1 [shape = 'u32[72,128]{1,0:T(1,128)}', space=vmem, size = 0x9000, scoped, tag = 'internal scratch']
  %s0 = inlined_call_operand.vmem [shape: bf16[32,128], index: 0, kind: input, shape index: {}]
  %s1 = inlined_call_operand.hbm [shape: bf16[128,512], index: 1, kind: input, shape index: {}]
  %s2 = inlined_call_operand.vmem [shape: f32[1,512], index: 2, kind: input, shape index: {}]
  %s3 = inlined_call_operand.hbm [shape: f32[32,512], index: 3, kind: output, shape index: {}]
  %s4 = sld [smem:[#allocation0]]
  $region49: #{singapore_llm_forward.3} parent=0
    _
  %s6 = ssub.s32 1, %s4
  %s7 = scalar_select 0, %s6, %s4
  $region1: #{singapore_llm_forward.3} parent=0
    #allocation2 [shape = 'u8[131072]{0}', space=vmem, size = 0x20000, scoped, tag = 'input window, operand 1']
    #allocation3 [shape = 's32[2]{0}', space=sflag, size = 0x8, scoped, tag = 'scoped memory for singapore_llm_forward.3']
    #allocation4 [shape = 's32[2]{0}', space=sflag, size = 0x8, scoped, tag = 'scoped memory for singapore_llm_forward.3']
    #allocation5 [shape = 'u8[65536]{0}', space=vmem, size = 0x10000, scoped, tag = 'output window, operand 0']
    %8 = vsyncpa [#allocation3], 0
    %s9 = scalar_lea.sflag [#allocation3], 1
    %10 = vsyncpa %s9, 0
    %11 = vsyncpa [#allocation4], 0
    %s12 = scalar_lea.sflag [#allocation4], 1
    %13 = vsyncpa %s12, 0
    loop: start=0, step=1, limit=4
    $region2: #{singapore_llm_forward.3} parent=1 // loop_pre_header
      _
    $region3: #{singapore_llm_forward.3} parent=1 // loop_header
      %s15 = sphi 0, %s19
      %p16 = scmp.ge.s32.totalorder %s15, 4
      %s23 = sphi 0, %s23
      %s25 = sphi 0, %s23
      %s26 = sphi 0, %s25
      %s40 = sphi 0, %s26
      %s46 = sphi 0, %s48
      %s49 = sphi 0, %s46
      %s50 = sphi 0, %s49
      %s66 = sphi 0, %s50
      %s72 = sphi 0, %s74
      %s75 = sphi 0, %s72
      %s76 = sphi 0, %s75
      %s92 = sphi 0, %s76
      %s98 = sphi 0, %s100
      %s101 = sphi 0, %s98
      %s102 = sphi 0, %s101
      %s118 = sphi 0, %s102
    $region4: #{singapore_llm_forward.3} parent=1 // loop_header_branch
      %18 = sbr.rel (%p16) target = $region8
    $region5: #{singapore_llm_forward.3} parent=1 // loop_body
      %s20 = ssub.s32 %s15, 1
      %s21 = ssub.s32 %s15, 2
      %s22 = sadd.s32 %s15, 1
      %s24 = sadd.s32 %s23, 1
      %p27 = scmp.eq.s32.totalorder %s15, 1
      %p28 = scmp.ne.s32.totalorder %s23, %s25
      %p29 = scmp.eq.s32.totalorder %s15, 0
      %p30 = por %p28, %p29
      %p31 = scmp.ne.s32.totalorder %s23, %s25
      %p32 = scmp.eq.s32.totalorder %s20, 1
      %p33 = por %p31, %p32
      %p34 = scmp.ne.s32.totalorder %s25, %s26
      %p35 = scmp.eq.s32.totalorder %s20, 0
      %p36 = por %p34, %p35
      %p37 = scmp.ne.s32.totalorder %s25, %s26
      %p38 = scmp.eq.s32.totalorder %s21, 1
      %p39 = por %p37, %p38
      %p41 = scmp.ne.s32.totalorder %s26, %s40
      %p42 = scmp.eq.s32.totalorder %s21, 0
      %p43 = por %p41, %p42
      %s44 = ssub.s32 %s15, %s22
      %p45 = scmp.eq.s32.totalorder %s44, 0
      %s47 = sadd.s32 %s46, 1
      %s48 = scalar_select %p45, %s46, %s47
      %p51 = pneg %p45
      %p52 = scmp.eq.s32.totalorder %s15, 1
      %p53 = por %p51, %p52
      %p54 = scmp.ne.s32.totalorder %s46, %s49
      %p55 = scmp.eq.s32.totalorder %s15, 0
      %p56 = por %p54, %p55
      %p57 = scmp.ne.s32.totalorder %s46, %s49
      %p58 = scmp.eq.s32.totalorder %s20, 1
      %p59 = por %p57, %p58
      %p60 = scmp.ne.s32.totalorder %s49, %s50
      %p61 = scmp.eq.s32.totalorder %s20, 0
      %p62 = por %p60, %p61
      %p63 = scmp.ne.s32.totalorder %s49, %s50
      %p64 = scmp.eq.s32.totalorder %s21, 1
      %p65 = por %p63, %p64
      %p67 = scmp.ne.s32.totalorder %s50, %s66
      %p68 = scmp.eq.s32.totalorder %s21, 0
      %p69 = por %p67, %p68
      %s70 = ssub.s32 %s15, %s22
      %p71 = scmp.eq.s32.totalorder %s70, 0
      %s73 = sadd.s32 %s72, 1
      %s74 = scalar_select %p71, %s72, %s73
      %p77 = pneg %p71
      %p78 = scmp.eq.s32.totalorder %s15, 1
      %p79 = por %p77, %p78
      %p80 = scmp.ne.s32.totalorder %s72, %s75
      %p81 = scmp.eq.s32.totalorder %s15, 0
      %p82 = por %p80, %p81
      %p83 = scmp.ne.s32.totalorder %s72, %s75
      %p84 = scmp.eq.s32.totalorder %s20, 1
      %p85 = por %p83, %p84
      %p86 = scmp.ne.s32.totalorder %s75, %s76
      %p87 = scmp.eq.s32.totalorder %s20, 0
      %p88 = por %p86, %p87
      %p89 = scmp.ne.s32.totalorder %s75, %s76
      %p90 = scmp.eq.s32.totalorder %s21, 1
      %p91 = por %p89, %p90
      %p93 = scmp.ne.s32.totalorder %s76, %s92
      %p94 = scmp.eq.s32.totalorder %s21, 0
      %p95 = por %p93, %p94
      %s96 = ssub.s32 %s15, %s22
      %p97 = scmp.eq.s32.totalorder %s96, 0
      %s99 = sadd.s32 %s98, 1
      %s100 = scalar_select %p97, %s98, %s99
      %p103 = pneg %p97
      %p104 = scmp.eq.s32.totalorder %s15, 1
      %p105 = por %p103, %p104
      %p106 = scmp.ne.s32.totalorder %s98, %s101
      %p107 = scmp.eq.s32.totalorder %s15, 0
      %p108 = por %p106, %p107
      %p109 = scmp.ne.s32.totalorder %s98, %s101
      %p110 = scmp.eq.s32.totalorder %s20, 1
      %p111 = por %p109, %p110
      %p112 = scmp.ne.s32.totalorder %s101, %s102
      %p113 = scmp.eq.s32.totalorder %s20, 0
      %p114 = por %p112, %p113
      %p115 = scmp.ne.s32.totalorder %s101, %s102
      %p116 = scmp.eq.s32.totalorder %s21, 1
      %p117 = por %p115, %p116
      %p119 = scmp.ne.s32.totalorder %s102, %s118
      %p120 = scmp.eq.s32.totalorder %s21, 0
      %p121 = por %p119, %p120
      %p122 = scmp.le.s32.totalorder 1, %s15
      %p123 = scmp.lt.s32.totalorder %s15, 3
      %p124 = pnand %p122, %p123
      %p125 = pneg %p124
      // Predicated region
      $region9: #{singapore_llm_forward.3} parent=5 // pred_check
        _
      $region10: #{singapore_llm_forward.3} parent=5 // pred_check_branch
        %127 = sbr.rel (%p124) target = $region12
      $region11: #{singapore_llm_forward.3} parent=5 // pred_region
        %s128 = ssub.s32 %s15, 1
        // Predicated region
        $region13: #{singapore_llm_forward.3} parent=11 // pred_check
          %p129 = pneg %p36
        $region14: #{singapore_llm_forward.3} parent=11 // pred_check_branch
          %131 = sbr.rel (%p129) target = $region16
        $region15: #{singapore_llm_forward.3} parent=11 // pred_region
          _
        $region16: #{singapore_llm_forward.3} parent=11 // pred_fallthru
          _
      $region12: #{singapore_llm_forward.3} parent=5 // pred_fallthru
        _
      %p132 = scmp.lt.s32.totalorder %s15, 2
      // Predicated region
      $region17: #{singapore_llm_forward.3} parent=5 // pred_check
        %p133 = pneg %p132
      $region18: #{singapore_llm_forward.3} parent=5 // pred_check_branch
        %135 = sbr.rel (%p133) target = $region20
      $region19: #{singapore_llm_forward.3} parent=5 // pred_region
        // Predicated region
        $region21: #{singapore_llm_forward.3} parent=19 // pred_check
          %p136 = pneg %p56
        $region22: #{singapore_llm_forward.3} parent=19 // pred_check_branch
          %138 = sbr.rel (%p136) target = $region24
        $region23: #{singapore_llm_forward.3} parent=19 // pred_region
          %s139 = sand.u32 %s46, 1
          %s140 = scalar_lea.sflag [#allocation3], %s139
          %s141 = sand.u32 %s46, 1
          %s142 = smul.addr %s141, 128
          %s143 = scalar_lea.vmem [#allocation2], %s142
          %s144 = smul.u32 2, %s15
          %146 = vsyncadd %s140, 0
          %s147 = smul.addr %s144, 4
          %s148 = scalar_lea.hbm %s1, %s147
          %s149 = sshll.u32 %s148, 4
          %s150 = int_to_ptr.hbm [resolvable:$true] %s149
          %s151 = sshll.u32 %s143, 4
          %s152 = int_to_ptr.vmem [resolvable:$true] %s151
          %157 = dma.hbm_to_vmem [thread:$0]  %s150, 2048, %s152, %s140, 256, 128, 8
        $region24: #{singapore_llm_forward.3} parent=19 // pred_fallthru
          _
        // Predicated region
        $region25: #{singapore_llm_forward.3} parent=19 // pred_check
          %p158 = pneg %p82
        $region26: #{singapore_llm_forward.3} parent=19 // pred_check_branch
          %160 = sbr.rel (%p158) target = $region28
        $region27: #{singapore_llm_forward.3} parent=19 // pred_region
          %s161 = smul.u32 2, %s15
          %p162 = scmp.lt.s32.totalorder %s161, 3
          %s163 = scalar_select %p162, %s161, 3
          %s164 = scalar_lea.vmem %s2, %s163
          %s165 = smul.u32 2, %s15
        $region28: #{singapore_llm_forward.3} parent=19 // pred_fallthru
          _
      $region20: #{singapore_llm_forward.3} parent=5 // pred_fallthru
        _
      %p166 = scmp.le.s32.totalorder 1, %s15
      %p167 = scmp.lt.s32.totalorder %s15, 3
      %p168 = pnand %p166, %p167
      %p169 = pneg %p168
      // Predicated region
      $region29: #{singapore_llm_forward.3} parent=5 // pred_check
        _
      $region30: #{singapore_llm_forward.3} parent=5 // pred_check_branch
        %171 = sbr.rel (%p168) target = $region32
      $region31: #{singapore_llm_forward.3} parent=5 // pred_region
        %s172 = ssub.s32 %s15, 1
        %s173 = sand.u32 %s49, 1
        %s174 = scalar_lea.sflag [#allocation3], %s173
        %s175 = sand.u32 %s49, 1
        %s176 = smul.addr %s175, 128
        %s177 = scalar_lea.vmem [#allocation2], %s176
        // Predicated region
        $region33: #{singapore_llm_forward.3} parent=31 // pred_check
          %p178 = pneg %p62
        $region34: #{singapore_llm_forward.3} parent=31 // pred_check_branch
          %180 = sbr.rel (%p178) target = $region36
        $region35: #{singapore_llm_forward.3} parent=31 // pred_region
          %182 = dma.done %s174, 2048
        $region36: #{singapore_llm_forward.3} parent=31 // pred_fallthru
          _
        %p183 = pneg %p36
        %p184 = pneg %p33
        %s185 = sand.u32 %s49, 1
        %s186 = scalar_lea.sflag [#allocation3], %s185
        %s187 = sand.u32 %s49, 1
        %s188 = smul.addr %s187, 128
        %s189 = scalar_lea.vmem [#allocation2], %s188
        %p190 = pneg %p62
        %p191 = pneg %p59
        %s192 = smul.u32 2, %s20
        %p193 = scmp.lt.s32.totalorder %s192, 3
        %s194 = scalar_select %p193, %s192, 3
        %s195 = scalar_lea.vmem %s2, %s194
        %p196 = pneg %p88
        %p197 = pneg %p85
        %p198 = pneg %p114
        %p199 = pneg %p111
        %s200 = sand.u32 %s101, 1
        %s201 = scalar_lea.sflag [#allocation4], %s200
        %s202 = sand.u32 %s101, 1
        %s203 = smul.addr %s202, 64
        %s204 = scalar_lea.vmem [#allocation5], %s203
        %s205 = smul.u32 2, %s20
        %s206 = smul.u32 2, %s20
        %p207 = scmp.lt.s32.totalorder %s206, 3
        %s208 = scalar_select %p207, %s206, 3
        %s209 = scalar_lea.vmem %s2, %s208
        %s210 = smul.u32 2, %s20
        %s211 = smul.u32 2, %s20
        %v212 = vld [vmem:[%s0] sm:$0xf]
        %v213 = vld [vmem:[%s0 + $0x4] sm:$0xf]
        %v214 = vld [vmem:[%s0 + $0x8] sm:$0xf]
        %v215 = vld [vmem:[%s0 + $0xc] sm:$0xf]
        %v216 = vld [vmem:[%s177] sm:$0xff]
        %v217 = vld [vmem:[%s177 + $0x8] sm:$0xff]
        %v218 = vld [vmem:[%s177 + $0x10] sm:$0xff]
        %v219 = vld [vmem:[%s177 + $0x18] sm:$0xff]
        %v220 = vld [vmem:[%s177 + $0x20] sm:$0xff]
        %v221 = vld [vmem:[%s177 + $0x28] sm:$0xff]
        %v222 = vld [vmem:[%s177 + $0x30] sm:$0xff]
        %v223 = vld [vmem:[%s177 + $0x38] sm:$0xff]
        %v224 = vld [vmem:[%s177 + $0x40] sm:$0xff]
        %v225 = vld [vmem:[%s177 + $0x48] sm:$0xff]
        %v226 = vld [vmem:[%s177 + $0x50] sm:$0xff]
        %v227 = vld [vmem:[%s177 + $0x58] sm:$0xff]
        %v228 = vld [vmem:[%s177 + $0x60] sm:$0xff]
        %v229 = vld [vmem:[%s177 + $0x68] sm:$0xff]
        %v230 = vld [vmem:[%s177 + $0x70] sm:$0xff]
        %v231 = vld [vmem:[%s177 + $0x78] sm:$0xff]
        %v232 = vld [vmem:[%s209] sm:$0x3]
        %v234 = vperm.slane %v232, 0
        %v235 = vperm.slane %v232, 1
        %v242 = vunpack.c.l.b16 %v212
        %v243 = vunpack.c.l.b16 %v213
        %v244 = vunpack.c.l.b16 %v214
        %v245 = vunpack.c.l.b16 %v215
        %v246 = vpack.c.b16 %v243, %v242
        %v247 = vpack.c.b16 %v245, %v244
        %v266 = vunpack.c.l.b16 %v216
        %v267 = vunpack.c.h.b16 %v216
        %v268 = vunpack.c.l.b16 %v217
        %v269 = vunpack.c.h.b16 %v217
        %v270 = vunpack.c.l.b16 %v218
        %v271 = vunpack.c.h.b16 %v218
        %v272 = vunpack.c.l.b16 %v219
        %v273 = vunpack.c.h.b16 %v219
        %v274 = vunpack.c.l.b16 %v220
        %v275 = vunpack.c.h.b16 %v220
        %v276 = vunpack.c.l.b16 %v221
        %v277 = vunpack.c.h.b16 %v221
        %v278 = vunpack.c.l.b16 %v222
        %v279 = vunpack.c.h.b16 %v222
        %v280 = vunpack.c.l.b16 %v223
        %v281 = vunpack.c.h.b16 %v223
        %v282 = vunpack.c.l.b16 %v224
        %v283 = vunpack.c.h.b16 %v224
        %v284 = vunpack.c.l.b16 %v225
        %v285 = vunpack.c.h.b16 %v225
        %v286 = vunpack.c.l.b16 %v226
        %v287 = vunpack.c.h.b16 %v226
        %v288 = vunpack.c.l.b16 %v227
        %v289 = vunpack.c.h.b16 %v227
        %v290 = vunpack.c.l.b16 %v228
        %v291 = vunpack.c.h.b16 %v228
        %v292 = vunpack.c.l.b16 %v229
        %v293 = vunpack.c.h.b16 %v229
        %v294 = vunpack.c.l.b16 %v230
        %v295 = vunpack.c.h.b16 %v230
        %v296 = vunpack.c.l.b16 %v231
        %v297 = vunpack.c.h.b16 %v231
        %v298 = vpack.c.b16 %v268, %v266
        %v299 = vpack.c.b16 %v269, %v267
        %v300 = vpack.c.b16 %v272, %v270
        %v301 = vpack.c.b16 %v273, %v271
        %v302 = vpack.c.b16 %v276, %v274
        %v303 = vpack.c.b16 %v277, %v275
        %v304 = vpack.c.b16 %v280, %v278
        %v305 = vpack.c.b16 %v281, %v279
        %v306 = vpack.c.b16 %v284, %v282
        %v307 = vpack.c.b16 %v285, %v283
        %v308 = vpack.c.b16 %v288, %v286
        %v309 = vpack.c.b16 %v289, %v287
        %v310 = vpack.c.b16 %v292, %v290
        %v311 = vpack.c.b16 %v293, %v291
        %v312 = vpack.c.b16 %v296, %v294
        %v313 = vpack.c.b16 %v297, %v295
        %330 = vmatpush.bf16.msra.mxu0 %v312
        %331 = vmatpush.bf16.msra.mxu0 %v310
        %332 = vmatpush.bf16.msra.mxu0 %v308
        %333 = vmatpush.bf16.msra.mxu0 %v306
        %334 = vmatpush.bf16.msra.mxu0 %v304
        %335 = vmatpush.bf16.msra.mxu0 %v302
        %336 = vmatpush.bf16.msra.mxu0 %v300
        %337 = vmatpush.bf16.msra.mxu0 %v298
        %338 = vmatmul.bf16.gmra.mxu0 %v246
        %v339 = vpop.f32.mrf.mxu0
        %v340 = vadd.f32 %v234, %v339
        %v341 = vpop.f32.mrf.mxu0
        %v342 = vadd.f32 %v234, %v341
        %343 = vmatmul.bf16.gmra.mxu0 %v247
        %v344 = vpop.f32.mrf.mxu0
        %v345 = vadd.f32 %v234, %v344
        %v346 = vpop.f32.mrf.mxu0
        %v347 = vadd.f32 %v234, %v346
        %348 = vdwg.mxu0
        %349 = vmatpush.bf16.msra.mxu0 %v313
        %350 = vmatpush.bf16.msra.mxu0 %v311
        %351 = vmatpush.bf16.msra.mxu0 %v309
        %352 = vmatpush.bf16.msra.mxu0 %v307
        %353 = vmatpush.bf16.msra.mxu0 %v305
        %354 = vmatpush.bf16.msra.mxu0 %v303
        %355 = vmatpush.bf16.msra.mxu0 %v301
        %356 = vmatpush.bf16.msra.mxu0 %v299
        %357 = vmatmul.bf16.gmra.mxu0 %v246
        %v358 = vpop.f32.mrf.mxu0
        %v359 = vadd.f32 %v235, %v358
        %v360 = vpop.f32.mrf.mxu0
        %v361 = vadd.f32 %v235, %v360
        %362 = vmatmul.bf16.gmra.mxu0 %v247
        %v363 = vpop.f32.mrf.mxu0
        %v364 = vadd.f32 %v235, %v363
        %v365 = vpop.f32.mrf.mxu0
        %v366 = vadd.f32 %v235, %v365
        %367 = vdwg.mxu0
        %368 = vst [vmem:[%s204] sm:$0xff] %v340
        %369 = vst [vmem:[%s204 + $0x8] sm:$0xff] %v359
        %370 = vst [vmem:[%s204 + $0x10] sm:$0xff] %v342
        %371 = vst [vmem:[%s204 + $0x18] sm:$0xff] %v361
        %372 = vst [vmem:[%s204 + $0x20] sm:$0xff] %v345
        %373 = vst [vmem:[%s204 + $0x28] sm:$0xff] %v364
        %374 = vst [vmem:[%s204 + $0x30] sm:$0xff] %v347
        %375 = vst [vmem:[%s204 + $0x38] sm:$0xff] %v366
        %s376 = sand.u32 %s101, 1
        %s377 = scalar_lea.sflag [#allocation4], %s376
        %s378 = sand.u32 %s101, 1
        %s379 = smul.addr %s378, 64
        %s380 = scalar_lea.vmem [#allocation5], %s379
        // Predicated region
        $region37: #{singapore_llm_forward.3} parent=31 // pred_check
          %p381 = pneg %p111
        $region38: #{singapore_llm_forward.3} parent=31 // pred_check_branch
          %383 = sbr.rel (%p381) target = $region40
        $region39: #{singapore_llm_forward.3} parent=31 // pred_region
          %s384 = smul.u32 2, %s20
          %386 = vsyncadd %s377, 0
          %s387 = smul.addr %s384, 8
          %s388 = scalar_lea.hbm %s3, %s387
          %s389 = sshll.u32 %s380, 4
          %s390 = int_to_ptr.vmem [resolvable:$true] %s389
          %s391 = sshll.u32 %s388, 4
          %s392 = int_to_ptr.hbm [resolvable:$true] %s391
          %397 = dma.vmem_to_hbm [thread:$0]  %s390, 1024, %s392, %s377, 256, 512, 16
        $region40: #{singapore_llm_forward.3} parent=31 // pred_fallthru
          _
      $region32: #{singapore_llm_forward.3} parent=5 // pred_fallthru
        _
      %p398 = scmp.le.s32.totalorder 2, %s15
      // Predicated region
      $region41: #{singapore_llm_forward.3} parent=5 // pred_check
        %p399 = pneg %p398
      $region42: #{singapore_llm_forward.3} parent=5 // pred_check_branch
        %401 = sbr.rel (%p399) target = $region44
      $region43: #{singapore_llm_forward.3} parent=5 // pred_region
        %s402 = ssub.s32 %s15, 2
        // Predicated region
        $region45: #{singapore_llm_forward.3} parent=43 // pred_check
          %p403 = pneg %p117
        $region46: #{singapore_llm_forward.3} parent=43 // pred_check_branch
          %405 = sbr.rel (%p403) target = $region48
        $region47: #{singapore_llm_forward.3} parent=43 // pred_region
          %s406 = sand.u32 %s102, 1
          %s407 = scalar_lea.sflag [#allocation4], %s406
          %s408 = sand.u32 %s102, 1
          %s409 = smul.addr %s408, 64
          %s410 = scalar_lea.vmem [#allocation5], %s409
          %412 = dma.done %s407, 1024
        $region48: #{singapore_llm_forward.3} parent=43 // pred_fallthru
          _
      $region44: #{singapore_llm_forward.3} parent=5 // pred_fallthru
        _
    $region6: #{singapore_llm_forward.3} parent=1 // loop_footer
      %s19 = sadd.s32 1, %s15
    $region7: #{singapore_llm_forward.3} parent=1 // loop_footer_branch
      %14 = sbr.rel target = $region3
    $region8: #{singapore_llm_forward.3} parent=1 // loop_exit
      _
    %413 = vsyncpa [#allocation3], 1
    %s414 = scalar_lea.sflag [#allocation3], 1
    %415 = vsyncpa %s414, 1
    %416 = vsyncpa [#allocation4], 1
    %s417 = scalar_lea.sflag [#allocation4], 1
    %418 = vsyncpa %s417, 1

// kernel: singapore_llm_forward.2
$region0: #{singapore_llm_forward.2}
  #allocation0 [shape = 'u32[]', space=smem, size = 0x4, offset = 0x4, fixed_abs, tag = 'smem constant byte address 0x4 - core index']
  #allocation1 [shape = 'u32[72,128]{1,0:T(1,128)}', space=vmem, size = 0x9000, scoped, tag = 'internal scratch']
  #allocation2 [shape = 'f32[16,128]{1,0:T(8,128)}', space=vmem, size = 0x2000, scoped, tag = 'scratch operand']
  %s0 = inlined_call_operand.vmem [shape: f32[4,8,128], index: 0, kind: input, shape index: {}]
  %s1 = inlined_call_operand.vmem [shape: bf16[2,128,384], index: 1, kind: input, shape index: {}]
  %s2 = inlined_call_operand.hbm [shape: f32[2,1,384], index: 2, kind: input, shape index: {}]
  %s3 = inlined_call_operand.hbm [shape: bf16[2,128,128], index: 3, kind: input, shape index: {}]
  %s4 = inlined_call_operand.vmem [shape: f32[2,1,128], index: 4, kind: input, shape index: {}]
  %s5 = inlined_call_operand.hbm [shape: f32[2,1,128], index: 5, kind: input, shape index: {}]
  %s6 = inlined_call_operand.hbm [shape: f32[2,1,128], index: 6, kind: input, shape index: {}]
  %s7 = inlined_call_operand.hbm [shape: bf16[2,128,256], index: 7, kind: input, shape index: {}]
  %s8 = inlined_call_operand.hbm [shape: f32[2,1,256], index: 8, kind: input, shape index: {}]
  %s9 = inlined_call_operand.hbm [shape: bf16[2,256,128], index: 9, kind: input, shape index: {}]
  %s10 = inlined_call_operand.hbm [shape: f32[2,1,128], index: 10, kind: input, shape index: {}]
  %s11 = inlined_call_operand.vmem [shape: f32[2,1,128], index: 11, kind: input, shape index: {}]
  %s12 = inlined_call_operand.hbm [shape: f32[2,1,128], index: 12, kind: input, shape index: {}]
  %s13 = inlined_call_operand.vmem [shape: f32[4,8,128], index: 13, kind: output, shape index: {}]
  %s14 = sld [smem:[#allocation0]]
  $region129: #{singapore_llm_forward.2} parent=0
    _
  %s16 = ssub.s32 1, %s14
  %s17 = scalar_select 0, %s16, %s14
  $region1: #{singapore_llm_forward.2} parent=0
    #allocation3 [shape = 'u8[3072]{0}', space=vmem, size = 0xc00, scoped, tag = 'input window, operand 2']
    #allocation4 [shape = 's32[2]{0}', space=sflag, size = 0x8, scoped, tag = 'scoped memory for singapore_llm_forward.2']
    #allocation5 [shape = 'u8[65536]{0}', space=vmem, size = 0x10000, scoped, tag = 'input window, operand 3']
    #allocation6 [shape = 's32[2]{0}', space=sflag, size = 0x8, scoped, tag = 'scoped memory for singapore_llm_forward.2']
    #allocation7 [shape = 'u8[1024]{0}', space=vmem, size = 0x400, scoped, tag = 'input window, operand 5']
    #allocation8 [shape = 'u8[1024]{0}', space=vmem, size = 0x400, scoped, tag = 'input window, operand 6']
    #allocation9 [shape = 's32[2]{0}', space=sflag, size = 0x8, scoped, tag = 'scoped memory for singapore_llm_forward.2']
    #allocation10 [shape = 'u8[131072]{0}', space=vmem, size = 0x20000, scoped, tag = 'input window, operand 7']
    #allocation11 [shape = 'u8[2048]{0}', space=vmem, size = 0x800, scoped, tag = 'input window, operand 8']
    #allocation12 [shape = 's32[2]{0}', space=sflag, size = 0x8, scoped, tag = 'scoped memory for singapore_llm_forward.2']
    #allocation13 [shape = 'u8[131072]{0}', space=vmem, size = 0x20000, scoped, tag = 'input window, operand 9']
    #allocation14 [shape = 'u8[1024]{0}', space=vmem, size = 0x400, scoped, tag = 'input window, operand 10']
    #allocation15 [shape = 's32[2]{0}', space=sflag, size = 0x8, scoped, tag = 'scoped memory for singapore_llm_forward.2']
    #allocation16 [shape = 'u8[1024]{0}', space=vmem, size = 0x400, scoped, tag = 'input window, operand 12']
    %18 = vsyncpa [#allocation4], 0
    %s19 = scalar_lea.sflag [#allocation4], 1
    %20 = vsyncpa %s19, 0
    %21 = vsyncpa [#allocation6], 0
    %s22 = scalar_lea.sflag [#allocation6], 1
    %23 = vsyncpa %s22, 0
    %24 = vsyncpa [#allocation9], 0
    %s25 = scalar_lea.sflag [#allocation9], 1
    %26 = vsyncpa %s25, 0
    %27 = vsyncpa [#allocation12], 0
    %s28 = scalar_lea.sflag [#allocation12], 1
    %29 = vsyncpa %s28, 0
    %30 = vsyncpa [#allocation15], 0
    %s31 = scalar_lea.sflag [#allocation15], 1
    %32 = vsyncpa %s31, 0
    loop: start=0, step=1, limit=6
    $region2: #{singapore_llm_forward.2} parent=1 // loop_pre_header
      _
    $region3: #{singapore_llm_forward.2} parent=1 // loop_header
      %s34 = sphi 0, %s38
      %p35 = scmp.ge.s32.totalorder %s34, 6
      %s41 = sphi 0, %s53
      %s42 = sphi 0, %s49
      %s43 = sphi 0, %s41
      %s44 = sphi 0, %s42
      %s45 = sphi 0, %s43
      %s46 = sphi 0, %s44
      %s56 = sphi 0, %s58
      %s59 = sphi 0, %s56
      %s60 = sphi 0, %s59
      %s76 = sphi 0, %s60
      %s82 = sphi 0, %s84
      %s85 = sphi 0, %s82
      %s86 = sphi 0, %s85
      %s102 = sphi 0, %s86
      %s108 = sphi 0, %s110
      %s111 = sphi 0, %s108
      %s112 = sphi 0, %s111
      %s128 = sphi 0, %s112
      %s134 = sphi 0, %s136
      %s137 = sphi 0, %s134
      %s138 = sphi 0, %s137
      %s154 = sphi 0, %s138
      %s160 = sphi 0, %s162
      %s163 = sphi 0, %s160
      %s164 = sphi 0, %s163
      %s180 = sphi 0, %s164
      %s186 = sphi 0, %s188
      %s189 = sphi 0, %s186
      %s190 = sphi 0, %s189
      %s206 = sphi 0, %s190
      %s212 = sphi 0, %s214
      %s215 = sphi 0, %s212
      %s216 = sphi 0, %s215
      %s232 = sphi 0, %s216
      %s238 = sphi 0, %s240
      %s241 = sphi 0, %s238
      %s242 = sphi 0, %s241
      %s258 = sphi 0, %s242
      %s264 = sphi 0, %s266
      %s267 = sphi 0, %s264
      %s268 = sphi 0, %s267
      %s284 = sphi 0, %s268
      %s290 = sphi 0, %s292
      %s293 = sphi 0, %s290
      %s294 = sphi 0, %s293
      %s310 = sphi 0, %s294
      %s316 = sphi 0, %s318
      %s319 = sphi 0, %s316
      %s320 = sphi 0, %s319
      %s336 = sphi 0, %s320
      %s342 = sphi 0, %s344
      %s345 = sphi 0, %s342
      %s346 = sphi 0, %s345
      %s362 = sphi 0, %s346
      %s368 = sphi 0, %s370
      %s371 = sphi 0, %s368
      %s372 = sphi 0, %s371
      %s388 = sphi 0, %s372
      %s394 = sphi 0, %s396
      %s397 = sphi 0, %s394
      %s398 = sphi 0, %s397
      %s414 = sphi 0, %s398
    $region4: #{singapore_llm_forward.2} parent=1 // loop_header_branch
      %37 = sbr.rel (%p35) target = $region8
    $region5: #{singapore_llm_forward.2} parent=1 // loop_body
      %s39 = ssub.s32 %s34, 1
      %s40 = ssub.s32 %s34, 2
      %s47 = sadd.s32 1, %s42
      %p48 = scmp.ge.s32.totalorder %s47, 2
      %s49 = scalar_select %p48, 0, %s47
      %s50 = sadd.s32 1, %s41
      %s51 = scalar_select %p48, %s50, %s41
      %p52 = scmp.ge.s32.totalorder %s51, 2
      %s53 = scalar_select %p52, 0, %s51
      %s54 = ssub.s32 %s41, %s53
      %p55 = scmp.eq.s32.totalorder %s54, 0
      %s57 = sadd.s32 %s56, 1
      %s58 = scalar_select %p55, %s56, %s57
      %p61 = pneg %p55
      %p62 = scmp.eq.s32.totalorder %s34, 3
      %p63 = por %p61, %p62
      %p64 = scmp.ne.s32.totalorder %s56, %s59
      %p65 = scmp.eq.s32.totalorder %s34, 0
      %p66 = por %p64, %p65
      %p67 = scmp.ne.s32.totalorder %s56, %s59
      %p68 = scmp.eq.s32.totalorder %s39, 3
      %p69 = por %p67, %p68
      %p70 = scmp.ne.s32.totalorder %s59, %s60
      %p71 = scmp.eq.s32.totalorder %s39, 0
      %p72 = por %p70, %p71
      %p73 = scmp.ne.s32.totalorder %s59, %s60
      %p74 = scmp.eq.s32.totalorder %s40, 3
      %p75 = por %p73, %p74
      %p77 = scmp.ne.s32.totalorder %s60, %s76
      %p78 = scmp.eq.s32.totalorder %s40, 0
      %p79 = por %p77, %p78
      %s80 = ssub.s32 %s42, %s49
      %p81 = scmp.eq.s32.totalorder %s80, 0
      %s83 = sadd.s32 %s82, 1
      %s84 = scalar_select %p81, %s82, %s83
      %p87 = pneg %p81
      %p88 = scmp.eq.s32.totalorder %s34, 3
      %p89 = por %p87, %p88
      %p90 = scmp.ne.s32.totalorder %s82, %s85
      %p91 = scmp.eq.s32.totalorder %s34, 0
      %p92 = por %p90, %p91
      %p93 = scmp.ne.s32.totalorder %s82, %s85
      %p94 = scmp.eq.s32.totalorder %s39, 3
      %p95 = por %p93, %p94
      %p96 = scmp.ne.s32.totalorder %s85, %s86
      %p97 = scmp.eq.s32.totalorder %s39, 0
      %p98 = por %p96, %p97
      %p99 = scmp.ne.s32.totalorder %s85, %s86
      %p100 = scmp.eq.s32.totalorder %s40, 3
      %p101 = por %p99, %p100
      %p103 = scmp.ne.s32.totalorder %s86, %s102
      %p104 = scmp.eq.s32.totalorder %s40, 0
      %p105 = por %p103, %p104
      %s106 = ssub.s32 %s42, %s49
      %p107 = scmp.eq.s32.totalorder %s106, 0
      %s109 = sadd.s32 %s108, 1
      %s110 = scalar_select %p107, %s108, %s109
      %p113 = pneg %p107
      %p114 = scmp.eq.s32.totalorder %s34, 3
      %p115 = por %p113, %p114
      %p116 = scmp.ne.s32.totalorder %s108, %s111
      %p117 = scmp.eq.s32.totalorder %s34, 0
      %p118 = por %p116, %p117
      %p119 = scmp.ne.s32.totalorder %s108, %s111
      %p120 = scmp.eq.s32.totalorder %s39, 3
      %p121 = por %p119, %p120
      %p122 = scmp.ne.s32.totalorder %s111, %s112
      %p123 = scmp.eq.s32.totalorder %s39, 0
      %p124 = por %p122, %p123
      %p125 = scmp.ne.s32.totalorder %s111, %s112
      %p126 = scmp.eq.s32.totalorder %s40, 3
      %p127 = por %p125, %p126
      %p129 = scmp.ne.s32.totalorder %s112, %s128
      %p130 = scmp.eq.s32.totalorder %s40, 0
      %p131 = por %p129, %p130
      %s132 = ssub.s32 %s42, %s49
      %p133 = scmp.eq.s32.totalorder %s132, 0
      %s135 = sadd.s32 %s134, 1
      %s136 = scalar_select %p133, %s134, %s135
      %p139 = pneg %p133
      %p140 = scmp.eq.s32.totalorder %s34, 3
      %p141 = por %p139, %p140
      %p142 = scmp.ne.s32.totalorder %s134, %s137
      %p143 = scmp.eq.s32.totalorder %s34, 0
      %p144 = por %p142, %p143
      %p145 = scmp.ne.s32.totalorder %s134, %s137
      %p146 = scmp.eq.s32.totalorder %s39, 3
      %p147 = por %p145, %p146
      %p148 = scmp.ne.s32.totalorder %s137, %s138
      %p149 = scmp.eq.s32.totalorder %s39, 0
      %p150 = por %p148, %p149
      %p151 = scmp.ne.s32.totalorder %s137, %s138
      %p152 = scmp.eq.s32.totalorder %s40, 3
      %p153 = por %p151, %p152
      %p155 = scmp.ne.s32.totalorder %s138, %s154
      %p156 = scmp.eq.s32.totalorder %s40, 0
      %p157 = por %p155, %p156
      %s158 = ssub.s32 %s42, %s49
      %p159 = scmp.eq.s32.totalorder %s158, 0
      %s161 = sadd.s32 %s160, 1
      %s162 = scalar_select %p159, %s160, %s161
      %p165 = pneg %p159
      %p166 = scmp.eq.s32.totalorder %s34, 3
      %p167 = por %p165, %p166
      %p168 = scmp.ne.s32.totalorder %s160, %s163
      %p169 = scmp.eq.s32.totalorder %s34, 0
      %p170 = por %p168, %p169
      %p171 = scmp.ne.s32.totalorder %s160, %s163
      %p172 = scmp.eq.s32.totalorder %s39, 3
      %p173 = por %p171, %p172
      %p174 = scmp.ne.s32.totalorder %s163, %s164
      %p175 = scmp.eq.s32.totalorder %s39, 0
      %p176 = por %p174, %p175
      %p177 = scmp.ne.s32.totalorder %s163, %s164
      %p178 = scmp.eq.s32.totalorder %s40, 3
      %p179 = por %p177, %p178
      %p181 = scmp.ne.s32.totalorder %s164, %s180
      %p182 = scmp.eq.s32.totalorder %s40, 0
      %p183 = por %p181, %p182
      %s184 = ssub.s32 %s42, %s49
      %p185 = scmp.eq.s32.totalorder %s184, 0
      %s187 = sadd.s32 %s186, 1
      %s188 = scalar_select %p185, %s186, %s187
      %p191 = pneg %p185
      %p192 = scmp.eq.s32.totalorder %s34, 3
      %p193 = por %p191, %p192
      %p194 = scmp.ne.s32.totalorder %s186, %s189
      %p195 = scmp.eq.s32.totalorder %s34, 0
      %p196 = por %p194, %p195
      %p197 = scmp.ne.s32.totalorder %s186, %s189
      %p198 = scmp.eq.s32.totalorder %s39, 3
      %p199 = por %p197, %p198
      %p200 = scmp.ne.s32.totalorder %s189, %s190
      %p201 = scmp.eq.s32.totalorder %s39, 0
      %p202 = por %p200, %p201
      %p203 = scmp.ne.s32.totalorder %s189, %s190
      %p204 = scmp.eq.s32.totalorder %s40, 3
      %p205 = por %p203, %p204
      %p207 = scmp.ne.s32.totalorder %s190, %s206
      %p208 = scmp.eq.s32.totalorder %s40, 0
      %p209 = por %p207, %p208
      %s210 = ssub.s32 %s42, %s49
      %p211 = scmp.eq.s32.totalorder %s210, 0
      %s213 = sadd.s32 %s212, 1
      %s214 = scalar_select %p211, %s212, %s213
      %p217 = pneg %p211
      %p218 = scmp.eq.s32.totalorder %s34, 3
      %p219 = por %p217, %p218
      %p220 = scmp.ne.s32.totalorder %s212, %s215
      %p221 = scmp.eq.s32.totalorder %s34, 0
      %p222 = por %p220, %p221
      %p223 = scmp.ne.s32.totalorder %s212, %s215
      %p224 = scmp.eq.s32.totalorder %s39, 3
      %p225 = por %p223, %p224
      %p226 = scmp.ne.s32.totalorder %s215, %s216
      %p227 = scmp.eq.s32.totalorder %s39, 0
      %p228 = por %p226, %p227
      %p229 = scmp.ne.s32.totalorder %s215, %s216
      %p230 = scmp.eq.s32.totalorder %s40, 3
      %p231 = por %p229, %p230
      %p233 = scmp.ne.s32.totalorder %s216, %s232
      %p234 = scmp.eq.s32.totalorder %s40, 0
      %p235 = por %p233, %p234
      %s236 = ssub.s32 %s42, %s49
      %p237 = scmp.eq.s32.totalorder %s236, 0
      %s239 = sadd.s32 %s238, 1
      %s240 = scalar_select %p237, %s238, %s239
      %p243 = pneg %p237
      %p244 = scmp.eq.s32.totalorder %s34, 3
      %p245 = por %p243, %p244
      %p246 = scmp.ne.s32.totalorder %s238, %s241
      %p247 = scmp.eq.s32.totalorder %s34, 0
      %p248 = por %p246, %p247
      %p249 = scmp.ne.s32.totalorder %s238, %s241
      %p250 = scmp.eq.s32.totalorder %s39, 3
      %p251 = por %p249, %p250
      %p252 = scmp.ne.s32.totalorder %s241, %s242
      %p253 = scmp.eq.s32.totalorder %s39, 0
      %p254 = por %p252, %p253
      %p255 = scmp.ne.s32.totalorder %s241, %s242
      %p256 = scmp.eq.s32.totalorder %s40, 3
      %p257 = por %p255, %p256
      %p259 = scmp.ne.s32.totalorder %s242, %s258
      %p260 = scmp.eq.s32.totalorder %s40, 0
      %p261 = por %p259, %p260
      %s262 = ssub.s32 %s42, %s49
      %p263 = scmp.eq.s32.totalorder %s262, 0
      %s265 = sadd.s32 %s264, 1
      %s266 = scalar_select %p263, %s264, %s265
      %p269 = pneg %p263
      %p270 = scmp.eq.s32.totalorder %s34, 3
      %p271 = por %p269, %p270
      %p272 = scmp.ne.s32.totalorder %s264, %s267
      %p273 = scmp.eq.s32.totalorder %s34, 0
      %p274 = por %p272, %p273
      %p275 = scmp.ne.s32.totalorder %s264, %s267
      %p276 = scmp.eq.s32.totalorder %s39, 3
      %p277 = por %p275, %p276
      %p278 = scmp.ne.s32.totalorder %s267, %s268
      %p279 = scmp.eq.s32.totalorder %s39, 0
      %p280 = por %p278, %p279
      %p281 = scmp.ne.s32.totalorder %s267, %s268
      %p282 = scmp.eq.s32.totalorder %s40, 3
      %p283 = por %p281, %p282
      %p285 = scmp.ne.s32.totalorder %s268, %s284
      %p286 = scmp.eq.s32.totalorder %s40, 0
      %p287 = por %p285, %p286
      %s288 = ssub.s32 %s42, %s49
      %p289 = scmp.eq.s32.totalorder %s288, 0
      %s291 = sadd.s32 %s290, 1
      %s292 = scalar_select %p289, %s290, %s291
      %p295 = pneg %p289
      %p296 = scmp.eq.s32.totalorder %s34, 3
      %p297 = por %p295, %p296
      %p298 = scmp.ne.s32.totalorder %s290, %s293
      %p299 = scmp.eq.s32.totalorder %s34, 0
      %p300 = por %p298, %p299
      %p301 = scmp.ne.s32.totalorder %s290, %s293
      %p302 = scmp.eq.s32.totalorder %s39, 3
      %p303 = por %p301, %p302
      %p304 = scmp.ne.s32.totalorder %s293, %s294
      %p305 = scmp.eq.s32.totalorder %s39, 0
      %p306 = por %p304, %p305
      %p307 = scmp.ne.s32.totalorder %s293, %s294
      %p308 = scmp.eq.s32.totalorder %s40, 3
      %p309 = por %p307, %p308
      %p311 = scmp.ne.s32.totalorder %s294, %s310
      %p312 = scmp.eq.s32.totalorder %s40, 0
      %p313 = por %p311, %p312
      %s314 = ssub.s32 %s42, %s49
      %p315 = scmp.eq.s32.totalorder %s314, 0
      %s317 = sadd.s32 %s316, 1
      %s318 = scalar_select %p315, %s316, %s317
      %p321 = pneg %p315
      %p322 = scmp.eq.s32.totalorder %s34, 3
      %p323 = por %p321, %p322
      %p324 = scmp.ne.s32.totalorder %s316, %s319
      %p325 = scmp.eq.s32.totalorder %s34, 0
      %p326 = por %p324, %p325
      %p327 = scmp.ne.s32.totalorder %s316, %s319
      %p328 = scmp.eq.s32.totalorder %s39, 3
      %p329 = por %p327, %p328
      %p330 = scmp.ne.s32.totalorder %s319, %s320
      %p331 = scmp.eq.s32.totalorder %s39, 0
      %p332 = por %p330, %p331
      %p333 = scmp.ne.s32.totalorder %s319, %s320
      %p334 = scmp.eq.s32.totalorder %s40, 3
      %p335 = por %p333, %p334
      %p337 = scmp.ne.s32.totalorder %s320, %s336
      %p338 = scmp.eq.s32.totalorder %s40, 0
      %p339 = por %p337, %p338
      %s340 = ssub.s32 %s42, %s49
      %p341 = scmp.eq.s32.totalorder %s340, 0
      %s343 = sadd.s32 %s342, 1
      %s344 = scalar_select %p341, %s342, %s343
      %p347 = pneg %p341
      %p348 = scmp.eq.s32.totalorder %s34, 3
      %p349 = por %p347, %p348
      %p350 = scmp.ne.s32.totalorder %s342, %s345
      %p351 = scmp.eq.s32.totalorder %s34, 0
      %p352 = por %p350, %p351
      %p353 = scmp.ne.s32.totalorder %s342, %s345
      %p354 = scmp.eq.s32.totalorder %s39, 3
      %p355 = por %p353, %p354
      %p356 = scmp.ne.s32.totalorder %s345, %s346
      %p357 = scmp.eq.s32.totalorder %s39, 0
      %p358 = por %p356, %p357
      %p359 = scmp.ne.s32.totalorder %s345, %s346
      %p360 = scmp.eq.s32.totalorder %s40, 3
      %p361 = por %p359, %p360
      %p363 = scmp.ne.s32.totalorder %s346, %s362
      %p364 = scmp.eq.s32.totalorder %s40, 0
      %p365 = por %p363, %p364
      %s366 = ssub.s32 %s42, %s49
      %p367 = scmp.eq.s32.totalorder %s366, 0
      %s369 = sadd.s32 %s368, 1
      %s370 = scalar_select %p367, %s368, %s369
      %p373 = pneg %p367
      %p374 = scmp.eq.s32.totalorder %s34, 3
      %p375 = por %p373, %p374
      %p376 = scmp.ne.s32.totalorder %s368, %s371
      %p377 = scmp.eq.s32.totalorder %s34, 0
      %p378 = por %p376, %p377
      %p379 = scmp.ne.s32.totalorder %s368, %s371
      %p380 = scmp.eq.s32.totalorder %s39, 3
      %p381 = por %p379, %p380
      %p382 = scmp.ne.s32.totalorder %s371, %s372
      %p383 = scmp.eq.s32.totalorder %s39, 0
      %p384 = por %p382, %p383
      %p385 = scmp.ne.s32.totalorder %s371, %s372
      %p386 = scmp.eq.s32.totalorder %s40, 3
      %p387 = por %p385, %p386
      %p389 = scmp.ne.s32.totalorder %s372, %s388
      %p390 = scmp.eq.s32.totalorder %s40, 0
      %p391 = por %p389, %p390
      %s392 = ssub.s32 %s41, %s53
      %p393 = scmp.eq.s32.totalorder %s392, 0
      %s395 = sadd.s32 %s394, 1
      %s396 = scalar_select %p393, %s394, %s395
      %p399 = pneg %p393
      %p400 = scmp.eq.s32.totalorder %s34, 3
      %p401 = por %p399, %p400
      %p402 = scmp.ne.s32.totalorder %s394, %s397
      %p403 = scmp.eq.s32.totalorder %s34, 0
      %p404 = por %p402, %p403
      %p405 = scmp.ne.s32.totalorder %s394, %s397
      %p406 = scmp.eq.s32.totalorder %s39, 3
      %p407 = por %p405, %p406
      %p408 = scmp.ne.s32.totalorder %s397, %s398
      %p409 = scmp.eq.s32.totalorder %s39, 0
      %p410 = por %p408, %p409
      %p411 = scmp.ne.s32.totalorder %s397, %s398
      %p412 = scmp.eq.s32.totalorder %s40, 3
      %p413 = por %p411, %p412
      %p415 = scmp.ne.s32.totalorder %s398, %s414
      %p416 = scmp.eq.s32.totalorder %s40, 0
      %p417 = por %p415, %p416
      %p418 = scmp.le.s32.totalorder 1, %s34
      %p419 = scmp.lt.s32.totalorder %s34, 5
      %p420 = pnand %p418, %p419
      %p421 = pneg %p420
      // Predicated region
      $region9: #{singapore_llm_forward.2} parent=5 // pred_check
        _
      $region10: #{singapore_llm_forward.2} parent=5 // pred_check_branch
        %423 = sbr.rel (%p420) target = $region12
      $region11: #{singapore_llm_forward.2} parent=5 // pred_region
        %s424 = ssub.s32 %s34, 1
      $region12: #{singapore_llm_forward.2} parent=5 // pred_fallthru
        _
      %p425 = scmp.lt.s32.totalorder %s34, 4
      // Predicated region
      $region13: #{singapore_llm_forward.2} parent=5 // pred_check
        %p426 = pneg %p425
      $region14: #{singapore_llm_forward.2} parent=5 // pred_check_branch
        %428 = sbr.rel (%p426) target = $region16
      $region15: #{singapore_llm_forward.2} parent=5 // pred_region
        // Predicated region
        $region17: #{singapore_llm_forward.2} parent=15 // pred_check
          %p429 = pneg %p66
        $region18: #{singapore_llm_forward.2} parent=15 // pred_check_branch
          %431 = sbr.rel (%p429) target = $region20
        $region19: #{singapore_llm_forward.2} parent=15 // pred_region
          %s432 = smul.u32 2, %s41
          %p433 = scmp.lt.s32.totalorder %s432, 3
          %s434 = scalar_select %p433, %s432, 3
          %s435 = smul.addr %s434, 8
          %s436 = scalar_lea.vmem %s0, %s435
          %s437 = smul.u32 2, %s41
        $region20: #{singapore_llm_forward.2} parent=15 // pred_fallthru
          _
        // Predicated region
        $region21: #{singapore_llm_forward.2} parent=15 // pred_check
          %p438 = pneg %p92
        $region22: #{singapore_llm_forward.2} parent=15 // pred_check_branch
          %440 = sbr.rel (%p438) target = $region24
        $region23: #{singapore_llm_forward.2} parent=15 // pred_region
          %p441 = scmp.lt.s32.totalorder %s42, 1
          %s442 = scalar_select %p441, %s42, 1
          %s443 = smul.addr %s442, 48
          %s444 = smul.addr %s443, 4
          %s445 = scalar_lea.vmem %s1, %s444
        $region24: #{singapore_llm_forward.2} parent=15 // pred_fallthru
          _
        // Predicated region
        $region25: #{singapore_llm_forward.2} parent=15 // pred_check
          %p446 = pneg %p118
        $region26: #{singapore_llm_forward.2} parent=15 // pred_check_branch
          %448 = sbr.rel (%p446) target = $region28
        $region27: #{singapore_llm_forward.2} parent=15 // pred_region
          %s449 = sand.u32 %s108, 1
          %s450 = scalar_lea.sflag [#allocation4], %s449
          %s451 = sand.u32 %s108, 1
          %s452 = smul.addr %s451, 3
          %s453 = scalar_lea.vmem [#allocation3], %s452
          %455 = vsyncadd %s450, 0
          %s456 = smul.addr %s42, 3
          %s457 = scalar_lea.hbm %s2, %s456
          %s459 = sshll.u32 %s457, 4
          %s460 = int_to_ptr.hbm [resolvable:$true] %s459
          %s461 = sshll.u32 %s453, 4
          %s462 = int_to_ptr.vmem [resolvable:$true] %s461
          %464 = dma.hbm_to_vmem [thread:$0]  %s460, 48, %s462, %s450
        $region28: #{singapore_llm_forward.2} parent=15 // pred_fallthru
          _
        // Predicated region
        $region29: #{singapore_llm_forward.2} parent=15 // pred_check
          %p465 = pneg %p144
        $region30: #{singapore_llm_forward.2} parent=15 // pred_check_branch
          %467 = sbr.rel (%p465) target = $region32
        $region31: #{singapore_llm_forward.2} parent=15 // pred_region
          %s468 = sand.u32 %s34, 1
          %s469 = scalar_lea.sflag [#allocation6], %s468
          %s470 = sand.u32 %s134, 1
          %s471 = smul.addr %s470, 64
          %s472 = scalar_lea.vmem [#allocation5], %s471
          %474 = vsyncadd %s469, 0
          %s475 = smul.addr %s42, 16
          %s476 = smul.addr %s475, 4
          %s477 = scalar_lea.hbm %s3, %s476
          %s478 = sshll.u32 %s477, 4
          %s479 = int_to_ptr.hbm [resolvable:$true] %s478
          %s480 = sshll.u32 %s472, 4
          %s481 = int_to_ptr.vmem [resolvable:$true] %s480
          %486 = dma.hbm_to_vmem [thread:$0]  %s479, 1024, %s481, %s469, 64, 64, 4
        $region32: #{singapore_llm_forward.2} parent=15 // pred_fallthru
          _
        // Predicated region
        $region33: #{singapore_llm_forward.2} parent=15 // pred_check
          %p487 = pneg %p170
        $region34: #{singapore_llm_forward.2} parent=15 // pred_check_branch
          %489 = sbr.rel (%p487) target = $region36
        $region35: #{singapore_llm_forward.2} parent=15 // pred_region
          %p490 = scmp.lt.s32.totalorder %s42, 1
          %s491 = scalar_select %p490, %s42, 1
          %s492 = scalar_lea.vmem %s4, %s491
        $region36: #{singapore_llm_forward.2} parent=15 // pred_fallthru
          _
        // Predicated region
        $region37: #{singapore_llm_forward.2} parent=15 // pred_check
          %p493 = pneg %p196
        $region38: #{singapore_llm_forward.2} parent=15 // pred_check_branch
          %495 = sbr.rel (%p493) target = $region40
        $region39: #{singapore_llm_forward.2} parent=15 // pred_region
          %s496 = sand.u32 %s34, 1
          %s497 = scalar_lea.sflag [#allocation6], %s496
          %s498 = sand.u32 %s186, 1
          %s499 = scalar_lea.vmem [#allocation7], %s498
          %501 = vsyncadd %s497, 0
          %s502 = scalar_lea.hbm %s5, %s42
          %s504 = sshll.u32 %s502, 4
          %s505 = int_to_ptr.hbm [resolvable:$true] %s504
          %s506 = sshll.u32 %s499, 4
          %s507 = int_to_ptr.vmem [resolvable:$true] %s506
          %509 = dma.hbm_to_vmem [thread:$0]  %s505, 16, %s507, %s497
        $region40: #{singapore_llm_forward.2} parent=15 // pred_fallthru
          _
        // Predicated region
        $region41: #{singapore_llm_forward.2} parent=15 // pred_check
          %p510 = pneg %p222
        $region42: #{singapore_llm_forward.2} parent=15 // pred_check_branch
          %512 = sbr.rel (%p510) target = $region44
        $region43: #{singapore_llm_forward.2} parent=15 // pred_region
          %s513 = sand.u32 %s34, 1
          %s514 = scalar_lea.sflag [#allocation9], %s513
          %s515 = sand.u32 %s212, 1
          %s516 = scalar_lea.vmem [#allocation8], %s515
          %518 = vsyncadd %s514, 0
          %s519 = scalar_lea.hbm %s6, %s42
          %s521 = sshll.u32 %s519, 4
          %s522 = int_to_ptr.hbm [resolvable:$true] %s521
          %s523 = sshll.u32 %s516, 4
          %s524 = int_to_ptr.vmem [resolvable:$true] %s523
          %526 = dma.hbm_to_vmem [thread:$0]  %s522, 16, %s524, %s514
        $region44: #{singapore_llm_forward.2} parent=15 // pred_fallthru
          _
        // Predicated region
        $region45: #{singapore_llm_forward.2} parent=15 // pred_check
          %p527 = pneg %p248
        $region46: #{singapore_llm_forward.2} parent=15 // pred_check_branch
          %529 = sbr.rel (%p527) target = $region48
        $region47: #{singapore_llm_forward.2} parent=15 // pred_region
          %s530 = sand.u32 %s34, 1
          %s531 = scalar_lea.sflag [#allocation9], %s530
          %s532 = sand.u32 %s238, 1
          %s533 = smul.addr %s532, 128
          %s534 = scalar_lea.vmem [#allocation10], %s533
          %536 = vsyncadd %s531, 0
          %s537 = smul.addr %s42, 32
          %s538 = smul.addr %s537, 4
          %s539 = scalar_lea.hbm %s7, %s538
          %s540 = sshll.u32 %s539, 4
          %s541 = int_to_ptr.hbm [resolvable:$true] %s540
          %s542 = sshll.u32 %s534, 4
          %s543 = int_to_ptr.vmem [resolvable:$true] %s542
          %548 = dma.hbm_to_vmem [thread:$0]  %s541, 2048, %s543, %s531, 128, 128, 8
        $region48: #{singapore_llm_forward.2} parent=15 // pred_fallthru
          _
        // Predicated region
        $region49: #{singapore_llm_forward.2} parent=15 // pred_check
          %p549 = pneg %p274
        $region50: #{singapore_llm_forward.2} parent=15 // pred_check_branch
          %551 = sbr.rel (%p549) target = $region52
        $region51: #{singapore_llm_forward.2} parent=15 // pred_region
          %s552 = sand.u32 %s34, 1
          %s553 = scalar_lea.sflag [#allocation12], %s552
          %s554 = sand.u32 %s264, 1
          %s555 = smul.addr %s554, 2
          %s556 = scalar_lea.vmem [#allocation11], %s555
          %558 = vsyncadd %s553, 0
          %s559 = smul.addr %s42, 2
          %s560 = scalar_lea.hbm %s8, %s559
          %s562 = sshll.u32 %s560, 4
          %s563 = int_to_ptr.hbm [resolvable:$true] %s562
          %s564 = sshll.u32 %s556, 4
          %s565 = int_to_ptr.vmem [resolvable:$true] %s564
          %567 = dma.hbm_to_vmem [thread:$0]  %s563, 32, %s565, %s553
        $region52: #{singapore_llm_forward.2} parent=15 // pred_fallthru
          _
        // Predicated region
        $region53: #{singapore_llm_forward.2} parent=15 // pred_check
          %p568 = pneg %p300
        $region54: #{singapore_llm_forward.2} parent=15 // pred_check_branch
          %570 = sbr.rel (%p568) target = $region56
        $region55: #{singapore_llm_forward.2} parent=15 // pred_region
          %s571 = sand.u32 %s34, 1
          %s572 = scalar_lea.sflag [#allocation12], %s571
          %s573 = sand.u32 %s290, 1
          %s574 = smul.addr %s573, 128
          %s575 = scalar_lea.vmem [#allocation13], %s574
          %577 = vsyncadd %s572, 0
          %s578 = smul.addr %s42, 32
          %s579 = smul.addr %s578, 4
          %s580 = scalar_lea.hbm %s9, %s579
          %s581 = sshll.u32 %s580, 4
          %s582 = int_to_ptr.hbm [resolvable:$true] %s581
          %s583 = sshll.u32 %s575, 4
          %s584 = int_to_ptr.vmem [resolvable:$true] %s583
          %589 = dma.hbm_to_vmem [thread:$0]  %s582, 2048, %s584, %s572, 64, 64, 4
        $region56: #{singapore_llm_forward.2} parent=15 // pred_fallthru
          _
        // Predicated region
        $region57: #{singapore_llm_forward.2} parent=15 // pred_check
          %p590 = pneg %p326
        $region58: #{singapore_llm_forward.2} parent=15 // pred_check_branch
          %592 = sbr.rel (%p590) target = $region60
        $region59: #{singapore_llm_forward.2} parent=15 // pred_region
          %s593 = sand.u32 %s34, 1
          %s594 = scalar_lea.sflag [#allocation15], %s593
          %s595 = sand.u32 %s316, 1
          %s596 = scalar_lea.vmem [#allocation14], %s595
          %598 = vsyncadd %s594, 0
          %s599 = scalar_lea.hbm %s10, %s42
          %s601 = sshll.u32 %s599, 4
          %s602 = int_to_ptr.hbm [resolvable:$true] %s601
          %s603 = sshll.u32 %s596, 4
          %s604 = int_to_ptr.vmem [resolvable:$true] %s603
          %606 = dma.hbm_to_vmem [thread:$0]  %s602, 16, %s604, %s594
        $region60: #{singapore_llm_forward.2} parent=15 // pred_fallthru
          _
        // Predicated region
        $region61: #{singapore_llm_forward.2} parent=15 // pred_check
          %p607 = pneg %p352
        $region62: #{singapore_llm_forward.2} parent=15 // pred_check_branch
          %609 = sbr.rel (%p607) target = $region64
        $region63: #{singapore_llm_forward.2} parent=15 // pred_region
          %p610 = scmp.lt.s32.totalorder %s42, 1
          %s611 = scalar_select %p610, %s42, 1
          %s612 = scalar_lea.vmem %s11, %s611
        $region64: #{singapore_llm_forward.2} parent=15 // pred_fallthru
          _
        // Predicated region
        $region65: #{singapore_llm_forward.2} parent=15 // pred_check
          %p613 = pneg %p378
        $region66: #{singapore_llm_forward.2} parent=15 // pred_check_branch
          %615 = sbr.rel (%p613) target = $region68
        $region67: #{singapore_llm_forward.2} parent=15 // pred_region
          %s616 = sand.u32 %s34, 1
          %s617 = scalar_lea.sflag [#allocation15], %s616
          %s618 = sand.u32 %s368, 1
          %s619 = scalar_lea.vmem [#allocation16], %s618
          %621 = vsyncadd %s617, 0
          %s622 = scalar_lea.hbm %s12, %s42
          %s624 = sshll.u32 %s622, 4
          %s625 = int_to_ptr.hbm [resolvable:$true] %s624
          %s626 = sshll.u32 %s619, 4
          %s627 = int_to_ptr.vmem [resolvable:$true] %s626
          %629 = dma.hbm_to_vmem [thread:$0]  %s625, 16, %s627, %s617
        $region68: #{singapore_llm_forward.2} parent=15 // pred_fallthru
          _
      $region16: #{singapore_llm_forward.2} parent=5 // pred_fallthru
        _
      %p630 = scmp.le.s32.totalorder 1, %s34
      %p631 = scmp.lt.s32.totalorder %s34, 5
      %p632 = pnand %p630, %p631
      %p633 = pneg %p632
      // Predicated region
      $region69: #{singapore_llm_forward.2} parent=5 // pred_check
        _
      $region70: #{singapore_llm_forward.2} parent=5 // pred_check_branch
        %635 = sbr.rel (%p632) target = $region72
      $region71: #{singapore_llm_forward.2} parent=5 // pred_region
        %s636 = ssub.s32 %s34, 1
        %s637 = sand.u32 %s111, 1
        %s638 = scalar_lea.sflag [#allocation4], %s637
        %s639 = sand.u32 %s111, 1
        %s640 = smul.addr %s639, 3
        %s641 = scalar_lea.vmem [#allocation3], %s640
        // Predicated region
        $region73: #{singapore_llm_forward.2} parent=71 // pred_check
          %p642 = pneg %p124
        $region74: #{singapore_llm_forward.2} parent=71 // pred_check_branch
          %644 = sbr.rel (%p642) target = $region76
        $region75: #{singapore_llm_forward.2} parent=71 // pred_region
          %646 = dma.done %s638, 48
        $region76: #{singapore_llm_forward.2} parent=71 // pred_fallthru
          _
        %s647 = sand.u32 %s39, 1
        %s648 = scalar_lea.sflag [#allocation6], %s647
        %s649 = sand.u32 %s137, 1
        %s650 = smul.addr %s649, 64
        %s651 = scalar_lea.vmem [#allocation5], %s650
        // Predicated region
        $region77: #{singapore_llm_forward.2} parent=71 // pred_check
          %p652 = pneg %p150
        $region78: #{singapore_llm_forward.2} parent=71 // pred_check_branch
          %654 = sbr.rel (%p652) target = $region80
        $region79: #{singapore_llm_forward.2} parent=71 // pred_region
          %656 = dma.done %s648, 1024
        $region80: #{singapore_llm_forward.2} parent=71 // pred_fallthru
          _
        %s657 = sand.u32 %s39, 1
        %s658 = scalar_lea.sflag [#allocation6], %s657
        %s659 = sand.u32 %s189, 1
        %s660 = scalar_lea.vmem [#allocation7], %s659
        // Predicated region
        $region81: #{singapore_llm_forward.2} parent=71 // pred_check
          %p661 = pneg %p202
        $region82: #{singapore_llm_forward.2} parent=71 // pred_check_branch
          %663 = sbr.rel (%p661) target = $region84
        $region83: #{singapore_llm_forward.2} parent=71 // pred_region
          %665 = dma.done %s658, 16
        $region84: #{singapore_llm_forward.2} parent=71 // pred_fallthru
          _
        %s666 = sand.u32 %s39, 1
        %s667 = scalar_lea.sflag [#allocation9], %s666
        %s668 = sand.u32 %s215, 1
        %s669 = scalar_lea.vmem [#allocation8], %s668
        // Predicated region
        $region85: #{singapore_llm_forward.2} parent=71 // pred_check
          %p670 = pneg %p228
        $region86: #{singapore_llm_forward.2} parent=71 // pred_check_branch
          %672 = sbr.rel (%p670) target = $region88
        $region87: #{singapore_llm_forward.2} parent=71 // pred_region
          %674 = dma.done %s667, 16
        $region88: #{singapore_llm_forward.2} parent=71 // pred_fallthru
          _
        %s675 = sand.u32 %s39, 1
        %s676 = scalar_lea.sflag [#allocation9], %s675
        %s677 = sand.u32 %s241, 1
        %s678 = smul.addr %s677, 128
        %s679 = scalar_lea.vmem [#allocation10], %s678
        // Predicated region
        $region89: #{singapore_llm_forward.2} parent=71 // pred_check
          %p680 = pneg %p254
        $region90: #{singapore_llm_forward.2} parent=71 // pred_check_branch
          %682 = sbr.rel (%p680) target = $region92
        $region91: #{singapore_llm_forward.2} parent=71 // pred_region
          %684 = dma.done %s676, 2048
        $region92: #{singapore_llm_forward.2} parent=71 // pred_fallthru
          _
        %s685 = sand.u32 %s39, 1
        %s686 = scalar_lea.sflag [#allocation12], %s685
        %s687 = sand.u32 %s267, 1
        %s688 = smul.addr %s687, 2
        %s689 = scalar_lea.vmem [#allocation11], %s688
        // Predicated region
        $region93: #{singapore_llm_forward.2} parent=71 // pred_check
          %p690 = pneg %p280
        $region94: #{singapore_llm_forward.2} parent=71 // pred_check_branch
          %692 = sbr.rel (%p690) target = $region96
        $region95: #{singapore_llm_forward.2} parent=71 // pred_region
          %694 = dma.done %s686, 32
        $region96: #{singapore_llm_forward.2} parent=71 // pred_fallthru
          _
        %s695 = sand.u32 %s39, 1
        %s696 = scalar_lea.sflag [#allocation12], %s695
        %s697 = sand.u32 %s293, 1
        %s698 = smul.addr %s697, 128
        %s699 = scalar_lea.vmem [#allocation13], %s698
        // Predicated region
        $region97: #{singapore_llm_forward.2} parent=71 // pred_check
          %p700 = pneg %p306
        $region98: #{singapore_llm_forward.2} parent=71 // pred_check_branch
          %702 = sbr.rel (%p700) target = $region100
        $region99: #{singapore_llm_forward.2} parent=71 // pred_region
          %704 = dma.done %s696, 2048
        $region100: #{singapore_llm_forward.2} parent=71 // pred_fallthru
          _
        %s705 = sand.u32 %s39, 1
        %s706 = scalar_lea.sflag [#allocation15], %s705
        %s707 = sand.u32 %s319, 1
        %s708 = scalar_lea.vmem [#allocation14], %s707
        // Predicated region
        $region101: #{singapore_llm_forward.2} parent=71 // pred_check
          %p709 = pneg %p332
        $region102: #{singapore_llm_forward.2} parent=71 // pred_check_branch
          %711 = sbr.rel (%p709) target = $region104
        $region103: #{singapore_llm_forward.2} parent=71 // pred_region
          %713 = dma.done %s706, 16
        $region104: #{singapore_llm_forward.2} parent=71 // pred_fallthru
          _
        %s714 = sand.u32 %s39, 1
        %s715 = scalar_lea.sflag [#allocation15], %s714
        %s716 = sand.u32 %s371, 1
        %s717 = scalar_lea.vmem [#allocation16], %s716
        // Predicated region
        $region105: #{singapore_llm_forward.2} parent=71 // pred_check
          %p718 = pneg %p384
        $region106: #{singapore_llm_forward.2} parent=71 // pred_check_branch
          %720 = sbr.rel (%p718) target = $region108
        $region107: #{singapore_llm_forward.2} parent=71 // pred_region
          %722 = dma.done %s715, 16
        $region108: #{singapore_llm_forward.2} parent=71 // pred_fallthru
          _
        %s723 = smul.u32 2, %s43
        %p724 = scmp.lt.s32.totalorder %s723, 3
        %s725 = scalar_select %p724, %s723, 3
        %s726 = smul.addr %s725, 8
        %s727 = scalar_lea.vmem %s0, %s726
        %p728 = pneg %p72
        %p729 = pneg %p69
        %p730 = scmp.lt.s32.totalorder %s44, 1
        %s731 = scalar_select %p730, %s44, 1
        %s732 = smul.addr %s731, 48
        %s733 = smul.addr %s732, 4
        %s734 = scalar_lea.vmem %s1, %s733
        %p735 = pneg %p98
        %p736 = pneg %p95
        %s737 = sand.u32 %s111, 1
        %s738 = scalar_lea.sflag [#allocation4], %s737
        %s739 = sand.u32 %s111, 1
        %s740 = smul.addr %s739, 3
        %s741 = scalar_lea.vmem [#allocation3], %s740
        %p742 = pneg %p124
        %p743 = pneg %p121
        %s744 = sand.u32 %s39, 1
        %s745 = scalar_lea.sflag [#allocation6], %s744
        %s746 = sand.u32 %s137, 1
        %s747 = smul.addr %s746, 64
        %s748 = scalar_lea.vmem [#allocation5], %s747
        %p749 = pneg %p150
        %p750 = pneg %p147
        %p751 = scmp.lt.s32.totalorder %s44, 1
        %s752 = scalar_select %p751, %s44, 1
        %s753 = scalar_lea.vmem %s4, %s752
        %p754 = pneg %p176
        %p755 = pneg %p173
        %s756 = sand.u32 %s39, 1
        %s757 = scalar_lea.sflag [#allocation6], %s756
        %s758 = sand.u32 %s189, 1
        %s759 = scalar_lea.vmem [#allocation7], %s758
        %p760 = pneg %p202
        %p761 = pneg %p199
        %s762 = sand.u32 %s39, 1
        %s763 = scalar_lea.sflag [#allocation9], %s762
        %s764 = sand.u32 %s215, 1
        %s765 = scalar_lea.vmem [#allocation8], %s764
        %p766 = pneg %p228
        %p767 = pneg %p225
        %s768 = sand.u32 %s39, 1
        %s769 = scalar_lea.sflag [#allocation9], %s768
        %s770 = sand.u32 %s241, 1
        %s771 = smul.addr %s770, 128
        %s772 = scalar_lea.vmem [#allocation10], %s771
        %p773 = pneg %p254
        %p774 = pneg %p251
        %s775 = sand.u32 %s39, 1
        %s776 = scalar_lea.sflag [#allocation12], %s775
        %s777 = sand.u32 %s267, 1
        %s778 = smul.addr %s777, 2
        %s779 = scalar_lea.vmem [#allocation11], %s778
        %p780 = pneg %p280
        %p781 = pneg %p277
        %s782 = sand.u32 %s39, 1
        %s783 = scalar_lea.sflag [#allocation12], %s782
        %s784 = sand.u32 %s293, 1
        %s785 = smul.addr %s784, 128
        %s786 = scalar_lea.vmem [#allocation13], %s785
        %p787 = pneg %p306
        %p788 = pneg %p303
        %s789 = sand.u32 %s39, 1
        %s790 = scalar_lea.sflag [#allocation15], %s789
        %s791 = sand.u32 %s319, 1
        %s792 = scalar_lea.vmem [#allocation14], %s791
        %p793 = pneg %p332
        %p794 = pneg %p329
        %p795 = scmp.lt.s32.totalorder %s44, 1
        %s796 = scalar_select %p795, %s44, 1
        %s797 = scalar_lea.vmem %s11, %s796
        %p798 = pneg %p358
        %p799 = pneg %p355
        %s800 = sand.u32 %s39, 1
        %s801 = scalar_lea.sflag [#allocation15], %s800
        %s802 = sand.u32 %s371, 1
        %s803 = scalar_lea.vmem [#allocation16], %s802
        %p804 = pneg %p384
        %p805 = pneg %p381
        %p806 = pneg %p410
        %p807 = pneg %p407
        %s808 = smul.u32 2, %s43
        %p809 = scmp.lt.s32.totalorder %s808, 3
        %s810 = scalar_select %p809, %s808, 3
        %s811 = smul.addr %s810, 8
        %s812 = scalar_lea.vmem %s13, %s811
        %s813 = smul.u32 2, %s43
        %p814 = scmp.lt.s32.totalorder %s813, 3
        %s815 = scalar_select %p814, %s813, 3
        %s816 = smul.addr %s815, 8
        %s817 = scalar_lea.vmem %s0, %s816
        %s818 = smul.u32 2, %s43
        %p819 = scmp.lt.s32.totalorder %s44, 1
        %s820 = scalar_select %p819, %s44, 1
        %s821 = smul.addr %s820, 48
        %s822 = smul.addr %s821, 4
        %s823 = scalar_lea.vmem %s1, %s822
        %p824 = scmp.lt.s32.totalorder %s44, 1
        %s825 = scalar_select %p824, %s44, 1
        %s826 = scalar_lea.vmem %s4, %s825
        %p827 = scmp.lt.s32.totalorder %s44, 1
        %s828 = scalar_select %p827, %s44, 1
        %s829 = scalar_lea.vmem %s11, %s828
        %s830 = smul.u32 2, %s43
        %p831 = scmp.lt.s32.totalorder %s830, 3
        %s832 = scalar_select %p831, %s830, 3
        %s833 = smul.addr %s832, 8
        %s834 = scalar_lea.vmem %s13, %s833
        %s835 = smul.u32 2, %s43
        %p837 = scmp.eq.s32.totalorder %s44, 0
        // Predicated region
        $region109: #{singapore_llm_forward.2} parent=71 // pred_check
          %p838 = pneg %p837
        $region110: #{singapore_llm_forward.2} parent=71 // pred_check_branch
          %840 = sbr.rel (%p838) target = $region112
        $region111: #{singapore_llm_forward.2} parent=71 // pred_region
          %v841 = vld [vmem:[%s817] sm:$0xff]
          %v842 = vld [vmem:[%s817 + $0x8] sm:$0xff]
          %843 = vst [vmem:[#allocation2] sm:$0xff] %v841
          %844 = vst [vmem:[#allocation2 + $0x8] sm:$0xff] %v842
        $region112: #{singapore_llm_forward.2} parent=71 // pred_fallthru
          _
        %v845 = vld [vmem:[#allocation2] sm:$0xff]
        %v846 = vld [vmem:[#allocation2 + $0x8] sm:$0xff]
        %v847 = vpack.c.bf16 %v846, %v845
        %v848 = vld [vmem:[%s823] sm:$0xff]
        %v849 = vld [vmem:[%s823 + $0x8] sm:$0xf]
        %v850 = vld [vmem:[%s823 + $0xc] sm:$0xff]
        %v851 = vld [vmem:[%s823 + $0x14] sm:$0xf]
        %v852 = vld [vmem:[%s823 + $0x18] sm:$0xff]
        %v853 = vld [vmem:[%s823 + $0x20] sm:$0xf]
        %v854 = vld [vmem:[%s823 + $0x24] sm:$0xff]
        %v855 = vld [vmem:[%s823 + $0x2c] sm:$0xf]
        %v856 = vld [vmem:[%s823 + $0x30] sm:$0xff]
        %v857 = vld [vmem:[%s823 + $0x38] sm:$0xf]
        %v858 = vld [vmem:[%s823 + $0x3c] sm:$0xff]
        %v859 = vld [vmem:[%s823 + $0x44] sm:$0xf]
        %v860 = vld [vmem:[%s823 + $0x48] sm:$0xff]
        %v861 = vld [vmem:[%s823 + $0x50] sm:$0xf]
        %v862 = vld [vmem:[%s823 + $0x54] sm:$0xff]
        %v863 = vld [vmem:[%s823 + $0x5c] sm:$0xf]
        %v864 = vld [vmem:[%s823 + $0x60] sm:$0xff]
        %v865 = vld [vmem:[%s823 + $0x68] sm:$0xf]
        %v866 = vld [vmem:[%s823 + $0x6c] sm:$0xff]
        %v867 = vld [vmem:[%s823 + $0x74] sm:$0xf]
        %v868 = vld [vmem:[%s823 + $0x78] sm:$0xff]
        %v869 = vld [vmem:[%s823 + $0x80] sm:$0xf]
        %v870 = vld [vmem:[%s823 + $0x84] sm:$0xff]
        %v871 = vld [vmem:[%s823 + $0x8c] sm:$0xf]
        %v872 = vld [vmem:[%s823 + $0x90] sm:$0xff]
        %v873 = vld [vmem:[%s823 + $0x98] sm:$0xf]
        %v874 = vld [vmem:[%s823 + $0x9c] sm:$0xff]
        %v875 = vld [vmem:[%s823 + $0xa4] sm:$0xf]
        %v876 = vld [vmem:[%s823 + $0xa8] sm:$0xff]
        %v877 = vld [vmem:[%s823 + $0xb0] sm:$0xf]
        %v878 = vld [vmem:[%s823 + $0xb4] sm:$0xff]
        %v879 = vld [vmem:[%s823 + $0xbc] sm:$0xf]
        %v880 = vld [vmem:[%s641] sm:$0x7]
        %v882 = vperm.slane %v880, 0
        %v883 = vperm.slane %v880, 1
        %v884 = vperm.slane %v880, 2
        %v920 = vunpack.c.l.b16 %v848
        %v921 = vunpack.c.h.b16 %v848
        %v922 = vunpack.c.l.b16 %v849
        %v923 = vunpack.c.l.b16 %v850
        %v924 = vunpack.c.h.b16 %v850
        %v925 = vunpack.c.l.b16 %v851
        %v926 = vunpack.c.l.b16 %v852
        %v927 = vunpack.c.h.b16 %v852
        %v928 = vunpack.c.l.b16 %v853
        %v929 = vunpack.c.l.b16 %v854
        %v930 = vunpack.c.h.b16 %v854
        %v931 = vunpack.c.l.b16 %v855
        %v932 = vunpack.c.l.b16 %v856
        %v933 = vunpack.c.h.b16 %v856
        %v934 = vunpack.c.l.b16 %v857
        %v935 = vunpack.c.l.b16 %v858
        %v936 = vunpack.c.h.b16 %v858
        %v937 = vunpack.c.l.b16 %v859
        %v938 = vunpack.c.l.b16 %v860
        %v939 = vunpack.c.h.b16 %v860
        %v940 = vunpack.c.l.b16 %v861
        %v941 = vunpack.c.l.b16 %v862
        %v942 = vunpack.c.h.b16 %v862
        %v943 = vunpack.c.l.b16 %v863
        %v944 = vunpack.c.l.b16 %v864
        %v945 = vunpack.c.h.b16 %v864
        %v946 = vunpack.c.l.b16 %v865
        %v947 = vunpack.c.l.b16 %v866
        %v948 = vunpack.c.h.b16 %v866
        %v949 = vunpack.c.l.b16 %v867
        %v950 = vunpack.c.l.b16 %v868
        %v951 = vunpack.c.h.b16 %v868
        %v952 = vunpack.c.l.b16 %v869
        %v953 = vunpack.c.l.b16 %v870
        %v954 = vunpack.c.h.b16 %v870
        %v955 = vunpack.c.l.b16 %v871
        %v956 = vunpack.c.l.b16 %v872
        %v957 = vunpack.c.h.b16 %v872
        %v958 = vunpack.c.l.b16 %v873
        %v959 = vunpack.c.l.b16 %v874
        %v960 = vunpack.c.h.b16 %v874
        %v961 = vunpack.c.l.b16 %v875
        %v962 = vunpack.c.l.b16 %v876
        %v963 = vunpack.c.h.b16 %v876
        %v964 = vunpack.c.l.b16 %v877
        %v965 = vunpack.c.l.b16 %v878
        %v966 = vunpack.c.h.b16 %v878
        %v967 = vunpack.c.l.b16 %v879
        %v968 = vpack.c.b16 %v923, %v920
        %v969 = vpack.c.b16 %v924, %v921
        %v970 = vpack.c.b16 %v925, %v922
        %v971 = vpack.c.b16 %v929, %v926
        %v972 = vpack.c.b16 %v930, %v927
        %v973 = vpack.c.b16 %v931, %v928
        %v974 = vpack.c.b16 %v935, %v932
        %v975 = vpack.c.b16 %v936, %v933
        %v976 = vpack.c.b16 %v937, %v934
        %v977 = vpack.c.b16 %v941, %v938
        %v978 = vpack.c.b16 %v942, %v939
        %v979 = vpack.c.b16 %v943, %v940
        %v980 = vpack.c.b16 %v947, %v944
        %v981 = vpack.c.b16 %v948, %v945
        %v982 = vpack.c.b16 %v949, %v946
        %v983 = vpack.c.b16 %v953, %v950
        %v984 = vpack.c.b16 %v954, %v951
        %v985 = vpack.c.b16 %v955, %v952
        %v986 = vpack.c.b16 %v959, %v956
        %v987 = vpack.c.b16 %v960, %v957
        %v988 = vpack.c.b16 %v961, %v958
        %v989 = vpack.c.b16 %v965, %v962
        %v990 = vpack.c.b16 %v966, %v963
        %v991 = vpack.c.b16 %v967, %v964
        %1016 = vmatpush.bf16.msra.mxu0 %v989
        %1017 = vmatpush.bf16.msra.mxu0 %v986
        %1018 = vmatpush.bf16.msra.mxu0 %v983
        %1019 = vmatpush.bf16.msra.mxu0 %v980
        %1020 = vmatpush.bf16.msra.mxu0 %v977
        %1021 = vmatpush.bf16.msra.mxu0 %v974
        %1022 = vmatpush.bf16.msra.mxu0 %v971
        %1023 = vmatpush.bf16.msra.mxu0 %v968
        %1024 = vmatmul.bf16.gmra.mxu0 %v847
        %v1025 = vpop.f32.mrf.mxu0
        %v1026 = vadd.f32 %v882, %v1025
        %v1027 = vpop.f32.mrf.mxu0
        %v1028 = vadd.f32 %v882, %v1027
        %1029 = vdwg.mxu0
        %1030 = vmatpush.bf16.msra.mxu0 %v990
        %1031 = vmatpush.bf16.msra.mxu0 %v987
        %1032 = vmatpush.bf16.msra.mxu0 %v984
        %1033 = vmatpush.bf16.msra.mxu0 %v981
        %1034 = vmatpush.bf16.msra.mxu0 %v978
        %1035 = vmatpush.bf16.msra.mxu0 %v975
        %1036 = vmatpush.bf16.msra.mxu0 %v972
        %1037 = vmatpush.bf16.msra.mxu0 %v969
        %1038 = vmatmul.bf16.gmra.mxu0 %v847
        %v1039 = vpop.f32.mrf.mxu0
        %v1040 = vadd.f32 %v883, %v1039
        %v1041 = vpop.f32.mrf.mxu0
        %v1042 = vadd.f32 %v883, %v1041
        %1043 = vdwg.mxu0
        %1044 = vmatpush.bf16.msra.mxu0 %v991
        %1045 = vmatpush.bf16.msra.mxu0 %v988
        %1046 = vmatpush.bf16.msra.mxu0 %v985
        %1047 = vmatpush.bf16.msra.mxu0 %v982
        %1048 = vmatpush.bf16.msra.mxu0 %v979
        %1049 = vmatpush.bf16.msra.mxu0 %v976
        %1050 = vmatpush.bf16.msra.mxu0 %v973
        %1051 = vmatpush.bf16.msra.mxu0 %v970
        %1052 = vmatmul.bf16.gmra.mxu0 %v847
        %v1053 = vpop.f32.mrf.mxu0
        %v1054 = vadd.f32 %v884, %v1053
        %v1055 = vpop.f32.mrf.mxu0
        %v1056 = vadd.f32 %v884, %v1055
        %1057 = vdwg.mxu0
        %1059 = vrot.lane.b32.xlu0 %v1026, 112
        %v1060 = vpop.permute.xlu0 %1059
        %1062 = vrot.lane.b32.xlu0 %v1026, 96
        %v1063 = vpop.permute.xlu0 %1062
        %1065 = vrot.lane.b32.xlu0 %v1026, 80
        %v1066 = vpop.permute.xlu0 %1065
        %1068 = vrot.lane.b32.xlu0 %v1026, 64
        %v1069 = vpop.permute.xlu0 %1068
        %1071 = vrot.lane.b32.xlu0 %v1026, 48
        %v1072 = vpop.permute.xlu0 %1071
        %1074 = vrot.lane.b32.xlu0 %v1026, 32
        %v1075 = vpop.permute.xlu0 %1074
        %1077 = vrot.lane.b32.xlu0 %v1026, 16
        %v1078 = vpop.permute.xlu0 %1077
        %1081 = vrot.lane.b32.xlu0 %v1028, 112
        %v1082 = vpop.permute.xlu0 %1081
        %1084 = vrot.lane.b32.xlu0 %v1028, 96
        %v1085 = vpop.permute.xlu0 %1084
        %1087 = vrot.lane.b32.xlu0 %v1028, 80
        %v1088 = vpop.permute.xlu0 %1087
        %1090 = vrot.lane.b32.xlu0 %v1028, 64
        %v1091 = vpop.permute.xlu0 %1090
        %1093 = vrot.lane.b32.xlu0 %v1028, 48
        %v1094 = vpop.permute.xlu0 %1093
        %1096 = vrot.lane.b32.xlu0 %v1028, 32
        %v1097 = vpop.permute.xlu0 %1096
        %1099 = vrot.lane.b32.xlu0 %v1028, 16
        %v1100 = vpop.permute.xlu0 %1099
        %v1102 = vpack.c.bf16 %v1026, %v1026
        %v1103 = vpack.c.bf16 %v1060, %v1060
        %v1104 = vpack.c.bf16 %v1063, %v1063
        %v1105 = vpack.c.bf16 %v1066, %v1066
        %v1106 = vpack.c.bf16 %v1069, %v1069
        %v1107 = vpack.c.bf16 %v1072, %v1072
        %v1108 = vpack.c.bf16 %v1075, %v1075
        %v1109 = vpack.c.bf16 %v1078, %v1078
        %v1110 = vpack.c.bf16 %v1028, %v1028
        %v1111 = vpack.c.bf16 %v1082, %v1082
        %v1112 = vpack.c.bf16 %v1085, %v1085
        %v1113 = vpack.c.bf16 %v1088, %v1088
        %v1114 = vpack.c.bf16 %v1091, %v1091
        %v1115 = vpack.c.bf16 %v1094, %v1094
        %v1116 = vpack.c.bf16 %v1097, %v1097
        %v1117 = vpack.c.bf16 %v1100, %v1100
        %1119 = vrot.lane.b32.xlu0 %v1040, 112
        %v1120 = vpop.permute.xlu0 %1119
        %1122 = vrot.lane.b32.xlu0 %v1040, 96
        %v1123 = vpop.permute.xlu0 %1122
        %1125 = vrot.lane.b32.xlu0 %v1040, 80
        %v1126 = vpop.permute.xlu0 %1125
        %1128 = vrot.lane.b32.xlu0 %v1040, 64
        %v1129 = vpop.permute.xlu0 %1128
        %1131 = vrot.lane.b32.xlu0 %v1040, 48
        %v1132 = vpop.permute.xlu0 %1131
        %1134 = vrot.lane.b32.xlu0 %v1040, 32
        %v1135 = vpop.permute.xlu0 %1134
        %1137 = vrot.lane.b32.xlu0 %v1040, 16
        %v1138 = vpop.permute.xlu0 %1137
        %1141 = vrot.lane.b32.xlu0 %v1042, 112
        %v1142 = vpop.permute.xlu0 %1141
        %1144 = vrot.lane.b32.xlu0 %v1042, 96
        %v1145 = vpop.permute.xlu0 %1144
        %1147 = vrot.lane.b32.xlu0 %v1042, 80
        %v1148 = vpop.permute.xlu0 %1147
        %1150 = vrot.lane.b32.xlu0 %v1042, 64
        %v1151 = vpop.permute.xlu0 %1150
        %1153 = vrot.lane.b32.xlu0 %v1042, 48
        %v1154 = vpop.permute.xlu0 %1153
        %1156 = vrot.lane.b32.xlu0 %v1042, 32
        %v1157 = vpop.permute.xlu0 %1156
        %1159 = vrot.lane.b32.xlu0 %v1042, 16
        %v1160 = vpop.permute.xlu0 %1159
        %v1162 = vpack.c.bf16 %v1040, %v1040
        %v1163 = vpack.c.bf16 %v1120, %v1120
        %v1164 = vpack.c.bf16 %v1123, %v1123
        %v1165 = vpack.c.bf16 %v1126, %v1126
        %v1166 = vpack.c.bf16 %v1129, %v1129
        %v1167 = vpack.c.bf16 %v1132, %v1132
        %v1168 = vpack.c.bf16 %v1135, %v1135
        %v1169 = vpack.c.bf16 %v1138, %v1138
        %v1170 = vpack.c.bf16 %v1042, %v1042
        %v1171 = vpack.c.bf16 %v1142, %v1142
        %v1172 = vpack.c.bf16 %v1145, %v1145
        %v1173 = vpack.c.bf16 %v1148, %v1148
        %v1174 = vpack.c.bf16 %v1151, %v1151
        %v1175 = vpack.c.bf16 %v1154, %v1154
        %v1176 = vpack.c.bf16 %v1157, %v1157
        %v1177 = vpack.c.bf16 %v1160, %v1160
        %1179 = vrot.lane.b32.xlu0 %v1054, 112
        %v1180 = vpop.permute.xlu0 %1179
        %1182 = vrot.lane.b32.xlu0 %v1054, 96
        %v1183 = vpop.permute.xlu0 %1182
        %1185 = vrot.lane.b32.xlu0 %v1054, 80
        %v1186 = vpop.permute.xlu0 %1185
        %1188 = vrot.lane.b32.xlu0 %v1054, 64
        %v1189 = vpop.permute.xlu0 %1188
        %1191 = vrot.lane.b32.xlu0 %v1054, 48
        %v1192 = vpop.permute.xlu0 %1191
        %1194 = vrot.lane.b32.xlu0 %v1054, 32
        %v1195 = vpop.permute.xlu0 %1194
        %1197 = vrot.lane.b32.xlu0 %v1054, 16
        %v1198 = vpop.permute.xlu0 %1197
        %1201 = vrot.lane.b32.xlu0 %v1056, 112
        %v1202 = vpop.permute.xlu0 %1201
        %1204 = vrot.lane.b32.xlu0 %v1056, 96
        %v1205 = vpop.permute.xlu0 %1204
        %1207 = vrot.lane.b32.xlu0 %v1056, 80
        %v1208 = vpop.permute.xlu0 %1207
        %1210 = vrot.lane.b32.xlu0 %v1056, 64
        %v1211 = vpop.permute.xlu0 %1210
        %1213 = vrot.lane.b32.xlu0 %v1056, 48
        %v1214 = vpop.permute.xlu0 %1213
        %1216 = vrot.lane.b32.xlu0 %v1056, 32
        %v1217 = vpop.permute.xlu0 %1216
        %1219 = vrot.lane.b32.xlu0 %v1056, 16
        %v1220 = vpop.permute.xlu0 %1219
        %v1222 = vpack.c.bf16 %v1054, %v1054
        %v1223 = vpack.c.bf16 %v1180, %v1180
        %v1224 = vpack.c.bf16 %v1183, %v1183
        %v1225 = vpack.c.bf16 %v1186, %v1186
        %v1226 = vpack.c.bf16 %v1189, %v1189
        %v1227 = vpack.c.bf16 %v1192, %v1192
        %v1228 = vpack.c.bf16 %v1195, %v1195
        %v1229 = vpack.c.bf16 %v1198, %v1198
        %v1230 = vpack.c.bf16 %v1056, %v1056
        %v1231 = vpack.c.bf16 %v1202, %v1202
        %v1232 = vpack.c.bf16 %v1205, %v1205
        %v1233 = vpack.c.bf16 %v1208, %v1208
        %v1234 = vpack.c.bf16 %v1211, %v1211
        %v1235 = vpack.c.bf16 %v1214, %v1214
        %v1236 = vpack.c.bf16 %v1217, %v1217
        %v1237 = vpack.c.bf16 %v1220, %v1220
        %vm1238 = vcmask 130048
        %v1240 = vsel %vm1238, %v1102, 0
        %v1243 = vsel %vm1238, %v1162, 0
        %1245 = vmatpush.bf16.xpose.msra.mxu0 0
        %1246 = vmatpush.bf16.xpose.msra.mxu0 0
        %1247 = vmatpush.bf16.xpose.msra.mxu0 0
        %1248 = vmatpush.bf16.xpose.msra.mxu0 0
        %1249 = vmatpush.bf16.xpose.msra.mxu0 0
        %1250 = vmatpush.bf16.xpose.msra.mxu0 0
        %1251 = vmatpush.bf16.xpose.msra.mxu0 0
        %1252 = vmatpush.bf16.xpose.msra.mxu0 %v1243
        %1253 = vmatmul.bf16.gmra.mxu0 %v1240
        %v1254 = vpop.f32.mrf.mxu0
        %v1255 = vadd.f32 0.0, %v1254
        %v1256 = vpop.f32.mrf.mxu0
        %1257 = vdwg.mxu0
        %v1259 = vsel %vm1238, %v1103, 0
        %v1262 = vsel %vm1238, %v1163, 0
        %1264 = vmatpush.bf16.xpose.msra.mxu0 0
        %1265 = vmatpush.bf16.xpose.msra.mxu0 0
        %1266 = vmatpush.bf16.xpose.msra.mxu0 0
        %1267 = vmatpush.bf16.xpose.msra.mxu0 0
        %1268 = vmatpush.bf16.xpose.msra.mxu0 0
        %1269 = vmatpush.bf16.xpose.msra.mxu0 0
        %1270 = vmatpush.bf16.xpose.msra.mxu0 0
        %1271 = vmatpush.bf16.xpose.msra.mxu0 %v1262
        %1272 = vmatmul.bf16.gmra.mxu0 %v1259
        %v1273 = vpop.f32.mrf.mxu0
        %v1274 = vadd.f32 0.0, %v1273
        %v1275 = vpop.f32.mrf.mxu0
        %1276 = vdwg.mxu0
        %v1278 = vsel %vm1238, %v1104, 0
        %v1281 = vsel %vm1238, %v1164, 0
        %1283 = vmatpush.bf16.xpose.msra.mxu0 0
        %1284 = vmatpush.bf16.xpose.msra.mxu0 0
        %1285 = vmatpush.bf16.xpose.msra.mxu0 0
        %1286 = vmatpush.bf16.xpose.msra.mxu0 0
        %1287 = vmatpush.bf16.xpose.msra.mxu0 0
        %1288 = vmatpush.bf16.xpose.msra.mxu0 0
        %1289 = vmatpush.bf16.xpose.msra.mxu0 0
        %1290 = vmatpush.bf16.xpose.msra.mxu0 %v1281
        %1291 = vmatmul.bf16.gmra.mxu0 %v1278
        %v1292 = vpop.f32.mrf.mxu0
        %v1293 = vadd.f32 0.0, %v1292
        %v1294 = vpop.f32.mrf.mxu0
        %1295 = vdwg.mxu0
        %v1297 = vsel %vm1238, %v1105, 0
        %v1300 = vsel %vm1238, %v1165, 0
        %1302 = vmatpush.bf16.xpose.msra.mxu0 0
        %1303 = vmatpush.bf16.xpose.msra.mxu0 0
        %1304 = vmatpush.bf16.xpose.msra.mxu0 0
        %1305 = vmatpush.bf16.xpose.msra.mxu0 0
        %1306 = vmatpush.bf16.xpose.msra.mxu0 0
        %1307 = vmatpush.bf16.xpose.msra.mxu0 0
        %1308 = vmatpush.bf16.xpose.msra.mxu0 0
        %1309 = vmatpush.bf16.xpose.msra.mxu0 %v1300
        %1310 = vmatmul.bf16.gmra.mxu0 %v1297
        %v1311 = vpop.f32.mrf.mxu0
        %v1312 = vadd.f32 0.0, %v1311
        %v1313 = vpop.f32.mrf.mxu0
        %1314 = vdwg.mxu0
        %v1316 = vsel %vm1238, %v1106, 0
        %v1319 = vsel %vm1238, %v1166, 0
        %1321 = vmatpush.bf16.xpose.msra.mxu0 0
        %1322 = vmatpush.bf16.xpose.msra.mxu0 0
        %1323 = vmatpush.bf16.xpose.msra.mxu0 0
        %1324 = vmatpush.bf16.xpose.msra.mxu0 0
        %1325 = vmatpush.bf16.xpose.msra.mxu0 0
        %1326 = vmatpush.bf16.xpose.msra.mxu0 0
        %1327 = vmatpush.bf16.xpose.msra.mxu0 0
        %1328 = vmatpush.bf16.xpose.msra.mxu0 %v1319
        %1329 = vmatmul.bf16.gmra.mxu0 %v1316
        %v1330 = vpop.f32.mrf.mxu0
        %v1331 = vadd.f32 0.0, %v1330
        %v1332 = vpop.f32.mrf.mxu0
        %1333 = vdwg.mxu0
        %v1335 = vsel %vm1238, %v1107, 0
        %v1338 = vsel %vm1238, %v1167, 0
        %1340 = vmatpush.bf16.xpose.msra.mxu0 0
        %1341 = vmatpush.bf16.xpose.msra.mxu0 0
        %1342 = vmatpush.bf16.xpose.msra.mxu0 0
        %1343 = vmatpush.bf16.xpose.msra.mxu0 0
        %1344 = vmatpush.bf16.xpose.msra.mxu0 0
        %1345 = vmatpush.bf16.xpose.msra.mxu0 0
        %1346 = vmatpush.bf16.xpose.msra.mxu0 0
        %1347 = vmatpush.bf16.xpose.msra.mxu0 %v1338
        %1348 = vmatmul.bf16.gmra.mxu0 %v1335
        %v1349 = vpop.f32.mrf.mxu0
        %v1350 = vadd.f32 0.0, %v1349
        %v1351 = vpop.f32.mrf.mxu0
        %1352 = vdwg.mxu0
        %v1354 = vsel %vm1238, %v1108, 0
        %v1357 = vsel %vm1238, %v1168, 0
        %1359 = vmatpush.bf16.xpose.msra.mxu0 0
        %1360 = vmatpush.bf16.xpose.msra.mxu0 0
        %1361 = vmatpush.bf16.xpose.msra.mxu0 0
        %1362 = vmatpush.bf16.xpose.msra.mxu0 0
        %1363 = vmatpush.bf16.xpose.msra.mxu0 0
        %1364 = vmatpush.bf16.xpose.msra.mxu0 0
        %1365 = vmatpush.bf16.xpose.msra.mxu0 0
        %1366 = vmatpush.bf16.xpose.msra.mxu0 %v1357
        %1367 = vmatmul.bf16.gmra.mxu0 %v1354
        %v1368 = vpop.f32.mrf.mxu0
        %v1369 = vadd.f32 0.0, %v1368
        %v1370 = vpop.f32.mrf.mxu0
        %1371 = vdwg.mxu0
        %v1373 = vsel %vm1238, %v1109, 0
        %v1376 = vsel %vm1238, %v1169, 0
        %1378 = vmatpush.bf16.xpose.msra.mxu0 0
        %1379 = vmatpush.bf16.xpose.msra.mxu0 0
        %1380 = vmatpush.bf16.xpose.msra.mxu0 0
        %1381 = vmatpush.bf16.xpose.msra.mxu0 0
        %1382 = vmatpush.bf16.xpose.msra.mxu0 0
        %1383 = vmatpush.bf16.xpose.msra.mxu0 0
        %1384 = vmatpush.bf16.xpose.msra.mxu0 0
        %1385 = vmatpush.bf16.xpose.msra.mxu0 %v1376
        %1386 = vmatmul.bf16.gmra.mxu0 %v1373
        %v1387 = vpop.f32.mrf.mxu0
        %v1388 = vadd.f32 0.0, %v1387
        %v1389 = vpop.f32.mrf.mxu0
        %1390 = vdwg.mxu0
        %v1392 = vsel %vm1238, %v1110, 0
        %v1395 = vsel %vm1238, %v1170, 0
        %1397 = vmatpush.bf16.xpose.msra.mxu0 0
        %1398 = vmatpush.bf16.xpose.msra.mxu0 0
        %1399 = vmatpush.bf16.xpose.msra.mxu0 0
        %1400 = vmatpush.bf16.xpose.msra.mxu0 0
        %1401 = vmatpush.bf16.xpose.msra.mxu0 0
        %1402 = vmatpush.bf16.xpose.msra.mxu0 0
        %1403 = vmatpush.bf16.xpose.msra.mxu0 0
        %1404 = vmatpush.bf16.xpose.msra.mxu0 %v1395
        %1405 = vmatmul.bf16.gmra.mxu0 %v1392
        %v1406 = vpop.f32.mrf.mxu0
        %v1407 = vadd.f32 0.0, %v1406
        %v1408 = vpop.f32.mrf.mxu0
        %1409 = vdwg.mxu0
        %v1411 = vsel %vm1238, %v1111, 0
        %v1414 = vsel %vm1238, %v1171, 0
        %1416 = vmatpush.bf16.xpose.msra.mxu0 0
        %1417 = vmatpush.bf16.xpose.msra.mxu0 0
        %1418 = vmatpush.bf16.xpose.msra.mxu0 0
        %1419 = vmatpush.bf16.xpose.msra.mxu0 0
        %1420 = vmatpush.bf16.xpose.msra.mxu0 0
        %1421 = vmatpush.bf16.xpose.msra.mxu0 0
        %1422 = vmatpush.bf16.xpose.msra.mxu0 0
        %1423 = vmatpush.bf16.xpose.msra.mxu0 %v1414
        %1424 = vmatmul.bf16.gmra.mxu0 %v1411
        %v1425 = vpop.f32.mrf.mxu0
        %v1426 = vadd.f32 0.0, %v1425
        %v1427 = vpop.f32.mrf.mxu0
        %1428 = vdwg.mxu0
        %v1430 = vsel %vm1238, %v1112, 0
        %v1433 = vsel %vm1238, %v1172, 0
        %1435 = vmatpush.bf16.xpose.msra.mxu0 0
        %1436 = vmatpush.bf16.xpose.msra.mxu0 0
        %1437 = vmatpush.bf16.xpose.msra.mxu0 0
        %1438 = vmatpush.bf16.xpose.msra.mxu0 0
        %1439 = vmatpush.bf16.xpose.msra.mxu0 0
        %1440 = vmatpush.bf16.xpose.msra.mxu0 0
        %1441 = vmatpush.bf16.xpose.msra.mxu0 0
        %1442 = vmatpush.bf16.xpose.msra.mxu0 %v1433
        %1443 = vmatmul.bf16.gmra.mxu0 %v1430
        %v1444 = vpop.f32.mrf.mxu0
        %v1445 = vadd.f32 0.0, %v1444
        %v1446 = vpop.f32.mrf.mxu0
        %1447 = vdwg.mxu0
        %v1449 = vsel %vm1238, %v1113, 0
        %v1452 = vsel %vm1238, %v1173, 0
        %1454 = vmatpush.bf16.xpose.msra.mxu0 0
        %1455 = vmatpush.bf16.xpose.msra.mxu0 0
        %1456 = vmatpush.bf16.xpose.msra.mxu0 0
        %1457 = vmatpush.bf16.xpose.msra.mxu0 0
        %1458 = vmatpush.bf16.xpose.msra.mxu0 0
        %1459 = vmatpush.bf16.xpose.msra.mxu0 0
        %1460 = vmatpush.bf16.xpose.msra.mxu0 0
        %1461 = vmatpush.bf16.xpose.msra.mxu0 %v1452
        %1462 = vmatmul.bf16.gmra.mxu0 %v1449
        %v1463 = vpop.f32.mrf.mxu0
        %v1464 = vadd.f32 0.0, %v1463
        %v1465 = vpop.f32.mrf.mxu0
        %1466 = vdwg.mxu0
        %v1468 = vsel %vm1238, %v1114, 0
        %v1471 = vsel %vm1238, %v1174, 0
        %1473 = vmatpush.bf16.xpose.msra.mxu0 0
        %1474 = vmatpush.bf16.xpose.msra.mxu0 0
        %1475 = vmatpush.bf16.xpose.msra.mxu0 0
        %1476 = vmatpush.bf16.xpose.msra.mxu0 0
        %1477 = vmatpush.bf16.xpose.msra.mxu0 0
        %1478 = vmatpush.bf16.xpose.msra.mxu0 0
        %1479 = vmatpush.bf16.xpose.msra.mxu0 0
        %1480 = vmatpush.bf16.xpose.msra.mxu0 %v1471
        %1481 = vmatmul.bf16.gmra.mxu0 %v1468
        %v1482 = vpop.f32.mrf.mxu0
        %v1483 = vadd.f32 0.0, %v1482
        %v1484 = vpop.f32.mrf.mxu0
        %1485 = vdwg.mxu0
        %v1487 = vsel %vm1238, %v1115, 0
        %v1490 = vsel %vm1238, %v1175, 0
        %1492 = vmatpush.bf16.xpose.msra.mxu0 0
        %1493 = vmatpush.bf16.xpose.msra.mxu0 0
        %1494 = vmatpush.bf16.xpose.msra.mxu0 0
        %1495 = vmatpush.bf16.xpose.msra.mxu0 0
        %1496 = vmatpush.bf16.xpose.msra.mxu0 0
        %1497 = vmatpush.bf16.xpose.msra.mxu0 0
        %1498 = vmatpush.bf16.xpose.msra.mxu0 0
        %1499 = vmatpush.bf16.xpose.msra.mxu0 %v1490
        %1500 = vmatmul.bf16.gmra.mxu0 %v1487
        %v1501 = vpop.f32.mrf.mxu0
        %v1502 = vadd.f32 0.0, %v1501
        %v1503 = vpop.f32.mrf.mxu0
        %1504 = vdwg.mxu0
        %v1506 = vsel %vm1238, %v1116, 0
        %v1509 = vsel %vm1238, %v1176, 0
        %1511 = vmatpush.bf16.xpose.msra.mxu0 0
        %1512 = vmatpush.bf16.xpose.msra.mxu0 0
        %1513 = vmatpush.bf16.xpose.msra.mxu0 0
        %1514 = vmatpush.bf16.xpose.msra.mxu0 0
        %1515 = vmatpush.bf16.xpose.msra.mxu0 0
        %1516 = vmatpush.bf16.xpose.msra.mxu0 0
        %1517 = vmatpush.bf16.xpose.msra.mxu0 0
        %1518 = vmatpush.bf16.xpose.msra.mxu0 %v1509
        %1519 = vmatmul.bf16.gmra.mxu0 %v1506
        %v1520 = vpop.f32.mrf.mxu0
        %v1521 = vadd.f32 0.0, %v1520
        %v1522 = vpop.f32.mrf.mxu0
        %1523 = vdwg.mxu0
        %v1525 = vsel %vm1238, %v1117, 0
        %v1528 = vsel %vm1238, %v1177, 0
        %1530 = vmatpush.bf16.xpose.msra.mxu0 0
        %1531 = vmatpush.bf16.xpose.msra.mxu0 0
        %1532 = vmatpush.bf16.xpose.msra.mxu0 0
        %1533 = vmatpush.bf16.xpose.msra.mxu0 0
        %1534 = vmatpush.bf16.xpose.msra.mxu0 0
        %1535 = vmatpush.bf16.xpose.msra.mxu0 0
        %1536 = vmatpush.bf16.xpose.msra.mxu0 0
        %1537 = vmatpush.bf16.xpose.msra.mxu0 %v1528
        %1538 = vmatmul.bf16.gmra.mxu0 %v1525
        %v1539 = vpop.f32.mrf.mxu0
        %v1540 = vadd.f32 0.0, %v1539
        %v1541 = vpop.f32.mrf.mxu0
        %1542 = vdwg.mxu0
        %v1543 = vmul.f32 %v1255, 0.25
        %v1544 = vmul.f32 %v1274, 0.25
        %v1545 = vmul.f32 %v1293, 0.25
        %v1546 = vmul.f32 %v1312, 0.25
        %v1547 = vmul.f32 %v1331, 0.25
        %v1548 = vmul.f32 %v1350, 0.25
        %v1549 = vmul.f32 %v1369, 0.25
        %v1550 = vmul.f32 %v1388, 0.25
        %v1551 = vmul.f32 %v1407, 0.25
        %v1552 = vmul.f32 %v1426, 0.25
        %v1553 = vmul.f32 %v1445, 0.25
        %v1554 = vmul.f32 %v1464, 0.25
        %v1555 = vmul.f32 %v1483, 0.25
        %v1556 = vmul.f32 %v1502, 0.25
        %v1557 = vmul.f32 %v1521, 0.25
        %v1558 = vmul.f32 %v1540, 0.25
        %vm1559 = vcmask 64512
        %v1560 = vsel %vm1559, %v1543, -inf
        %1561 = vmax.xlane.f32.xlu0 %v1560
        %v1562 = vpop.xlane.xlu0 %1561
        %v1563 = vsel %vm1559, %v1544, -inf
        %1564 = vmax.xlane.f32.xlu0 %v1563
        %v1565 = vpop.xlane.xlu0 %1564
        %v1566 = vsel %vm1559, %v1545, -inf
        %1567 = vmax.xlane.f32.xlu0 %v1566
        %v1568 = vpop.xlane.xlu0 %1567
        %v1569 = vsel %vm1559, %v1546, -inf
        %1570 = vmax.xlane.f32.xlu0 %v1569
        %v1571 = vpop.xlane.xlu0 %1570
        %v1572 = vsel %vm1559, %v1547, -inf
        %1573 = vmax.xlane.f32.xlu0 %v1572
        %v1574 = vpop.xlane.xlu0 %1573
        %v1575 = vsel %vm1559, %v1548, -inf
        %1576 = vmax.xlane.f32.xlu0 %v1575
        %v1577 = vpop.xlane.xlu0 %1576
        %v1578 = vsel %vm1559, %v1549, -inf
        %1579 = vmax.xlane.f32.xlu0 %v1578
        %v1580 = vpop.xlane.xlu0 %1579
        %v1581 = vsel %vm1559, %v1550, -inf
        %1582 = vmax.xlane.f32.xlu0 %v1581
        %v1583 = vpop.xlane.xlu0 %1582
        %v1584 = vsel %vm1559, %v1551, -inf
        %1585 = vmax.xlane.f32.xlu0 %v1584
        %v1586 = vpop.xlane.xlu0 %1585
        %v1587 = vsel %vm1559, %v1552, -inf
        %1588 = vmax.xlane.f32.xlu0 %v1587
        %v1589 = vpop.xlane.xlu0 %1588
        %v1590 = vsel %vm1559, %v1553, -inf
        %1591 = vmax.xlane.f32.xlu0 %v1590
        %v1592 = vpop.xlane.xlu0 %1591
        %v1593 = vsel %vm1559, %v1554, -inf
        %1594 = vmax.xlane.f32.xlu0 %v1593
        %v1595 = vpop.xlane.xlu0 %1594
        %v1596 = vsel %vm1559, %v1555, -inf
        %1597 = vmax.xlane.f32.xlu0 %v1596
        %v1598 = vpop.xlane.xlu0 %1597
        %v1599 = vsel %vm1559, %v1556, -inf
        %1600 = vmax.xlane.f32.xlu0 %v1599
        %v1601 = vpop.xlane.xlu0 %1600
        %v1602 = vsel %vm1559, %v1557, -inf
        %1603 = vmax.xlane.f32.xlu0 %v1602
        %v1604 = vpop.xlane.xlu0 %1603
        %v1605 = vsel %vm1559, %v1558, -inf
        %1606 = vmax.xlane.f32.xlu0 %v1605
        %v1607 = vpop.xlane.xlu0 %1606
        %v1608 = vsub.f32 %v1543, %v1562
        %v1609 = vsub.f32 %v1544, %v1565
        %v1610 = vsub.f32 %v1545, %v1568
        %v1611 = vsub.f32 %v1546, %v1571
        %v1612 = vsub.f32 %v1547, %v1574
        %v1613 = vsub.f32 %v1548, %v1577
        %v1614 = vsub.f32 %v1549, %v1580
        %v1615 = vsub.f32 %v1550, %v1583
        %v1616 = vsub.f32 %v1551, %v1586
        %v1617 = vsub.f32 %v1552, %v1589
        %v1618 = vsub.f32 %v1553, %v1592
        %v1619 = vsub.f32 %v1554, %v1595
        %v1620 = vsub.f32 %v1555, %v1598
        %v1621 = vsub.f32 %v1556, %v1601
        %v1622 = vsub.f32 %v1557, %v1604
        %v1623 = vsub.f32 %v1558, %v1607
        %v1624 = vmul.f32 %v1608, 1.442695
        %v1625 = vpow.pop %v1624
        %v1626 = vmul.f32 %v1609, 1.442695
        %v1627 = vpow.pop %v1626
        %v1628 = vmul.f32 %v1610, 1.442695
        %v1629 = vpow.pop %v1628
        %v1630 = vmul.f32 %v1611, 1.442695
        %v1631 = vpow.pop %v1630
        %v1632 = vmul.f32 %v1612, 1.442695
        %v1633 = vpow.pop %v1632
        %v1634 = vmul.f32 %v1613, 1.442695
        %v1635 = vpow.pop %v1634
        %v1636 = vmul.f32 %v1614, 1.442695
        %v1637 = vpow.pop %v1636
        %v1638 = vmul.f32 %v1615, 1.442695
        %v1639 = vpow.pop %v1638
        %v1640 = vmul.f32 %v1616, 1.442695
        %v1641 = vpow.pop %v1640
        %v1642 = vmul.f32 %v1617, 1.442695
        %v1643 = vpow.pop %v1642
        %v1644 = vmul.f32 %v1618, 1.442695
        %v1645 = vpow.pop %v1644
        %v1646 = vmul.f32 %v1619, 1.442695
        %v1647 = vpow.pop %v1646
        %v1648 = vmul.f32 %v1620, 1.442695
        %v1649 = vpow.pop %v1648
        %v1650 = vmul.f32 %v1621, 1.442695
        %v1651 = vpow.pop %v1650
        %v1652 = vmul.f32 %v1622, 1.442695
        %v1653 = vpow.pop %v1652
        %v1654 = vmul.f32 %v1623, 1.442695
        %v1655 = vpow.pop %v1654
        %v1656 = vsel %vm1559, %v1625, 0.0
        %1657 = vadd.xlane.f32.xlu0 %v1656
        %v1658 = vpop.xlane.xlu0 %1657
        %v1659 = vsel %vm1559, %v1627, 0.0
        %1660 = vadd.xlane.f32.xlu0 %v1659
        %v1661 = vpop.xlane.xlu0 %1660
        %v1662 = vsel %vm1559, %v1629, 0.0
        %1663 = vadd.xlane.f32.xlu0 %v1662
        %v1664 = vpop.xlane.xlu0 %1663
        %v1665 = vsel %vm1559, %v1631, 0.0
        %1666 = vadd.xlane.f32.xlu0 %v1665
        %v1667 = vpop.xlane.xlu0 %1666
        %v1668 = vsel %vm1559, %v1633, 0.0
        %1669 = vadd.xlane.f32.xlu0 %v1668
        %v1670 = vpop.xlane.xlu0 %1669
        %v1671 = vsel %vm1559, %v1635, 0.0
        %1672 = vadd.xlane.f32.xlu0 %v1671
        %v1673 = vpop.xlane.xlu0 %1672
        %v1674 = vsel %vm1559, %v1637, 0.0
        %1675 = vadd.xlane.f32.xlu0 %v1674
        %v1676 = vpop.xlane.xlu0 %1675
        %v1677 = vsel %vm1559, %v1639, 0.0
        %1678 = vadd.xlane.f32.xlu0 %v1677
        %v1679 = vpop.xlane.xlu0 %1678
        %v1680 = vsel %vm1559, %v1641, 0.0
        %1681 = vadd.xlane.f32.xlu0 %v1680
        %v1682 = vpop.xlane.xlu0 %1681
        %v1683 = vsel %vm1559, %v1643, 0.0
        %1684 = vadd.xlane.f32.xlu0 %v1683
        %v1685 = vpop.xlane.xlu0 %1684
        %v1686 = vsel %vm1559, %v1645, 0.0
        %1687 = vadd.xlane.f32.xlu0 %v1686
        %v1688 = vpop.xlane.xlu0 %1687
        %v1689 = vsel %vm1559, %v1647, 0.0
        %1690 = vadd.xlane.f32.xlu0 %v1689
        %v1691 = vpop.xlane.xlu0 %1690
        %v1692 = vsel %vm1559, %v1649, 0.0
        %1693 = vadd.xlane.f32.xlu0 %v1692
        %v1694 = vpop.xlane.xlu0 %1693
        %v1695 = vsel %vm1559, %v1651, 0.0
        %1696 = vadd.xlane.f32.xlu0 %v1695
        %v1697 = vpop.xlane.xlu0 %1696
        %v1698 = vsel %vm1559, %v1653, 0.0
        %1699 = vadd.xlane.f32.xlu0 %v1698
        %v1700 = vpop.xlane.xlu0 %1699
        %v1701 = vsel %vm1559, %v1655, 0.0
        %1702 = vadd.xlane.f32.xlu0 %v1701
        %v1703 = vpop.xlane.xlu0 %1702
        %v1704 = vrcp.pop %v1658
        %v1705 = vrcp.pop %v1661
        %v1706 = vrcp.pop %v1664
        %v1707 = vrcp.pop %v1667
        %v1708 = vrcp.pop %v1670
        %v1709 = vrcp.pop %v1673
        %v1710 = vrcp.pop %v1676
        %v1711 = vrcp.pop %v1679
        %v1712 = vrcp.pop %v1682
        %v1713 = vrcp.pop %v1685
        %v1714 = vrcp.pop %v1688
        %v1715 = vrcp.pop %v1691
        %v1716 = vrcp.pop %v1694
        %v1717 = vrcp.pop %v1697
        %v1718 = vrcp.pop %v1700
        %v1719 = vrcp.pop %v1703
        %v1720 = vmul.f32 %v1625, %v1704
        %v1721 = vmul.f32 %v1627, %v1705
        %v1722 = vmul.f32 %v1629, %v1706
        %v1723 = vmul.f32 %v1631, %v1707
        %v1724 = vmul.f32 %v1633, %v1708
        %v1725 = vmul.f32 %v1635, %v1709
        %v1726 = vmul.f32 %v1637, %v1710
        %v1727 = vmul.f32 %v1639, %v1711
        %v1728 = vmul.f32 %v1641, %v1712
        %v1729 = vmul.f32 %v1643, %v1713
        %v1730 = vmul.f32 %v1645, %v1714
        %v1731 = vmul.f32 %v1647, %v1715
        %v1732 = vmul.f32 %v1649, %v1716
        %v1733 = vmul.f32 %v1651, %v1717
        %v1734 = vmul.f32 %v1653, %v1718
        %v1735 = vmul.f32 %v1655, %v1719
        %v1736 = vpack.c.bf16 %v1720, %v1720
        %v1737 = vpack.c.bf16 %v1721, %v1721
        %v1738 = vpack.c.bf16 %v1722, %v1722
        %v1739 = vpack.c.bf16 %v1723, %v1723
        %v1740 = vpack.c.bf16 %v1724, %v1724
        %v1741 = vpack.c.bf16 %v1725, %v1725
        %v1742 = vpack.c.bf16 %v1726, %v1726
        %v1743 = vpack.c.bf16 %v1727, %v1727
        %v1744 = vpack.c.bf16 %v1728, %v1728
        %v1745 = vpack.c.bf16 %v1729, %v1729
        %v1746 = vpack.c.bf16 %v1730, %v1730
        %v1747 = vpack.c.bf16 %v1731, %v1731
        %v1748 = vpack.c.bf16 %v1732, %v1732
        %v1749 = vpack.c.bf16 %v1733, %v1733
        %v1750 = vpack.c.bf16 %v1734, %v1734
        %v1751 = vpack.c.bf16 %v1735, %v1735
        %v1753 = vsel %vm1559, %v1736, 0
        %vm1755 = vcmask 1043456
        %v1757 = vsel %vm1755, %v1222, 0
        %1759 = vmatpush.bf16.msra.mxu0 0
        %1760 = vmatpush.bf16.msra.mxu0 0
        %1761 = vmatpush.bf16.msra.mxu0 0
        %1762 = vmatpush.bf16.msra.mxu0 0
        %1763 = vmatpush.bf16.msra.mxu0 0
        %1764 = vmatpush.bf16.msra.mxu0 0
        %1765 = vmatpush.bf16.msra.mxu0 0
        %1766 = vmatpush.bf16.msra.mxu0 %v1757
        %1767 = vmatmul.bf16.gmra.mxu0 %v1753
        %v1768 = vpop.f32.mrf.mxu0
        %v1769 = vadd.f32 0.0, %v1768
        %v1770 = vpop.f32.mrf.mxu0
        %1771 = vdwg.mxu0
        %v1773 = vsel %vm1559, %v1737, 0
        %v1776 = vsel %vm1755, %v1223, 0
        %1778 = vmatpush.bf16.msra.mxu0 0
        %1779 = vmatpush.bf16.msra.mxu0 0
        %1780 = vmatpush.bf16.msra.mxu0 0
        %1781 = vmatpush.bf16.msra.mxu0 0
        %1782 = vmatpush.bf16.msra.mxu0 0
        %1783 = vmatpush.bf16.msra.mxu0 0
        %1784 = vmatpush.bf16.msra.mxu0 0
        %1785 = vmatpush.bf16.msra.mxu0 %v1776
        %1786 = vmatmul.bf16.gmra.mxu0 %v1773
        %v1787 = vpop.f32.mrf.mxu0
        %v1788 = vadd.f32 0.0, %v1787
        %v1789 = vpop.f32.mrf.mxu0
        %1790 = vdwg.mxu0
        %v1792 = vsel %vm1559, %v1738, 0
        %v1795 = vsel %vm1755, %v1224, 0
        %1797 = vmatpush.bf16.msra.mxu0 0
        %1798 = vmatpush.bf16.msra.mxu0 0
        %1799 = vmatpush.bf16.msra.mxu0 0
        %1800 = vmatpush.bf16.msra.mxu0 0
        %1801 = vmatpush.bf16.msra.mxu0 0
        %1802 = vmatpush.bf16.msra.mxu0 0
        %1803 = vmatpush.bf16.msra.mxu0 0
        %1804 = vmatpush.bf16.msra.mxu0 %v1795
        %1805 = vmatmul.bf16.gmra.mxu0 %v1792
        %v1806 = vpop.f32.mrf.mxu0
        %v1807 = vadd.f32 0.0, %v1806
        %v1808 = vpop.f32.mrf.mxu0
        %1809 = vdwg.mxu0
        %v1811 = vsel %vm1559, %v1739, 0
        %v1814 = vsel %vm1755, %v1225, 0
        %1816 = vmatpush.bf16.msra.mxu0 0
        %1817 = vmatpush.bf16.msra.mxu0 0
        %1818 = vmatpush.bf16.msra.mxu0 0
        %1819 = vmatpush.bf16.msra.mxu0 0
        %1820 = vmatpush.bf16.msra.mxu0 0
        %1821 = vmatpush.bf16.msra.mxu0 0
        %1822 = vmatpush.bf16.msra.mxu0 0
        %1823 = vmatpush.bf16.msra.mxu0 %v1814
        %1824 = vmatmul.bf16.gmra.mxu0 %v1811
        %v1825 = vpop.f32.mrf.mxu0
        %v1826 = vadd.f32 0.0, %v1825
        %v1827 = vpop.f32.mrf.mxu0
        %1828 = vdwg.mxu0
        %v1830 = vsel %vm1559, %v1740, 0
        %v1833 = vsel %vm1755, %v1226, 0
        %1835 = vmatpush.bf16.msra.mxu0 0
        %1836 = vmatpush.bf16.msra.mxu0 0
        %1837 = vmatpush.bf16.msra.mxu0 0
        %1838 = vmatpush.bf16.msra.mxu0 0
        %1839 = vmatpush.bf16.msra.mxu0 0
        %1840 = vmatpush.bf16.msra.mxu0 0
        %1841 = vmatpush.bf16.msra.mxu0 0
        %1842 = vmatpush.bf16.msra.mxu0 %v1833
        %1843 = vmatmul.bf16.gmra.mxu0 %v1830
        %v1844 = vpop.f32.mrf.mxu0
        %v1845 = vadd.f32 0.0, %v1844
        %v1846 = vpop.f32.mrf.mxu0
        %1847 = vdwg.mxu0
        %v1849 = vsel %vm1559, %v1741, 0
        %v1852 = vsel %vm1755, %v1227, 0
        %1854 = vmatpush.bf16.msra.mxu0 0
        %1855 = vmatpush.bf16.msra.mxu0 0
        %1856 = vmatpush.bf16.msra.mxu0 0
        %1857 = vmatpush.bf16.msra.mxu0 0
        %1858 = vmatpush.bf16.msra.mxu0 0
        %1859 = vmatpush.bf16.msra.mxu0 0
        %1860 = vmatpush.bf16.msra.mxu0 0
        %1861 = vmatpush.bf16.msra.mxu0 %v1852
        %1862 = vmatmul.bf16.gmra.mxu0 %v1849
        %v1863 = vpop.f32.mrf.mxu0
        %v1864 = vadd.f32 0.0, %v1863
        %v1865 = vpop.f32.mrf.mxu0
        %1866 = vdwg.mxu0
        %v1868 = vsel %vm1559, %v1742, 0
        %v1871 = vsel %vm1755, %v1228, 0
        %1873 = vmatpush.bf16.msra.mxu0 0
        %1874 = vmatpush.bf16.msra.mxu0 0
        %1875 = vmatpush.bf16.msra.mxu0 0
        %1876 = vmatpush.bf16.msra.mxu0 0
        %1877 = vmatpush.bf16.msra.mxu0 0
        %1878 = vmatpush.bf16.msra.mxu0 0
        %1879 = vmatpush.bf16.msra.mxu0 0
        %1880 = vmatpush.bf16.msra.mxu0 %v1871
        %1881 = vmatmul.bf16.gmra.mxu0 %v1868
        %v1882 = vpop.f32.mrf.mxu0
        %v1883 = vadd.f32 0.0, %v1882
        %v1884 = vpop.f32.mrf.mxu0
        %1885 = vdwg.mxu0
        %v1887 = vsel %vm1559, %v1743, 0
        %v1890 = vsel %vm1755, %v1229, 0
        %1892 = vmatpush.bf16.msra.mxu0 0
        %1893 = vmatpush.bf16.msra.mxu0 0
        %1894 = vmatpush.bf16.msra.mxu0 0
        %1895 = vmatpush.bf16.msra.mxu0 0
        %1896 = vmatpush.bf16.msra.mxu0 0
        %1897 = vmatpush.bf16.msra.mxu0 0
        %1898 = vmatpush.bf16.msra.mxu0 0
        %1899 = vmatpush.bf16.msra.mxu0 %v1890
        %1900 = vmatmul.bf16.gmra.mxu0 %v1887
        %v1901 = vpop.f32.mrf.mxu0
        %v1902 = vadd.f32 0.0, %v1901
        %v1903 = vpop.f32.mrf.mxu0
        %1904 = vdwg.mxu0
        %v1906 = vsel %vm1559, %v1744, 0
        %v1909 = vsel %vm1755, %v1230, 0
        %1911 = vmatpush.bf16.msra.mxu0 0
        %1912 = vmatpush.bf16.msra.mxu0 0
        %1913 = vmatpush.bf16.msra.mxu0 0
        %1914 = vmatpush.bf16.msra.mxu0 0
        %1915 = vmatpush.bf16.msra.mxu0 0
        %1916 = vmatpush.bf16.msra.mxu0 0
        %1917 = vmatpush.bf16.msra.mxu0 0
        %1918 = vmatpush.bf16.msra.mxu0 %v1909
        %1919 = vmatmul.bf16.gmra.mxu0 %v1906
        %v1920 = vpop.f32.mrf.mxu0
        %v1921 = vadd.f32 0.0, %v1920
        %v1922 = vpop.f32.mrf.mxu0
        %1923 = vdwg.mxu0
        %v1925 = vsel %vm1559, %v1745, 0
        %v1928 = vsel %vm1755, %v1231, 0
        %1930 = vmatpush.bf16.msra.mxu0 0
        %1931 = vmatpush.bf16.msra.mxu0 0
        %1932 = vmatpush.bf16.msra.mxu0 0
        %1933 = vmatpush.bf16.msra.mxu0 0
        %1934 = vmatpush.bf16.msra.mxu0 0
        %1935 = vmatpush.bf16.msra.mxu0 0
        %1936 = vmatpush.bf16.msra.mxu0 0
        %1937 = vmatpush.bf16.msra.mxu0 %v1928
        %1938 = vmatmul.bf16.gmra.mxu0 %v1925
        %v1939 = vpop.f32.mrf.mxu0
        %v1940 = vadd.f32 0.0, %v1939
        %v1941 = vpop.f32.mrf.mxu0
        %1942 = vdwg.mxu0
        %v1944 = vsel %vm1559, %v1746, 0
        %v1947 = vsel %vm1755, %v1232, 0
        %1949 = vmatpush.bf16.msra.mxu0 0
        %1950 = vmatpush.bf16.msra.mxu0 0
        %1951 = vmatpush.bf16.msra.mxu0 0
        %1952 = vmatpush.bf16.msra.mxu0 0
        %1953 = vmatpush.bf16.msra.mxu0 0
        %1954 = vmatpush.bf16.msra.mxu0 0
        %1955 = vmatpush.bf16.msra.mxu0 0
        %1956 = vmatpush.bf16.msra.mxu0 %v1947
        %1957 = vmatmul.bf16.gmra.mxu0 %v1944
        %v1958 = vpop.f32.mrf.mxu0
        %v1959 = vadd.f32 0.0, %v1958
        %v1960 = vpop.f32.mrf.mxu0
        %1961 = vdwg.mxu0
        %v1963 = vsel %vm1559, %v1747, 0
        %v1966 = vsel %vm1755, %v1233, 0
        %1968 = vmatpush.bf16.msra.mxu0 0
        %1969 = vmatpush.bf16.msra.mxu0 0
        %1970 = vmatpush.bf16.msra.mxu0 0
        %1971 = vmatpush.bf16.msra.mxu0 0
        %1972 = vmatpush.bf16.msra.mxu0 0
        %1973 = vmatpush.bf16.msra.mxu0 0
        %1974 = vmatpush.bf16.msra.mxu0 0
        %1975 = vmatpush.bf16.msra.mxu0 %v1966
        %1976 = vmatmul.bf16.gmra.mxu0 %v1963
        %v1977 = vpop.f32.mrf.mxu0
        %v1978 = vadd.f32 0.0, %v1977
        %v1979 = vpop.f32.mrf.mxu0
        %1980 = vdwg.mxu0
        %v1982 = vsel %vm1559, %v1748, 0
        %v1985 = vsel %vm1755, %v1234, 0
        %1987 = vmatpush.bf16.msra.mxu0 0
        %1988 = vmatpush.bf16.msra.mxu0 0
        %1989 = vmatpush.bf16.msra.mxu0 0
        %1990 = vmatpush.bf16.msra.mxu0 0
        %1991 = vmatpush.bf16.msra.mxu0 0
        %1992 = vmatpush.bf16.msra.mxu0 0
        %1993 = vmatpush.bf16.msra.mxu0 0
        %1994 = vmatpush.bf16.msra.mxu0 %v1985
        %1995 = vmatmul.bf16.gmra.mxu0 %v1982
        %v1996 = vpop.f32.mrf.mxu0
        %v1997 = vadd.f32 0.0, %v1996
        %v1998 = vpop.f32.mrf.mxu0
        %1999 = vdwg.mxu0
        %v2001 = vsel %vm1559, %v1749, 0
        %v2004 = vsel %vm1755, %v1235, 0
        %2006 = vmatpush.bf16.msra.mxu0 0
        %2007 = vmatpush.bf16.msra.mxu0 0
        %2008 = vmatpush.bf16.msra.mxu0 0
        %2009 = vmatpush.bf16.msra.mxu0 0
        %2010 = vmatpush.bf16.msra.mxu0 0
        %2011 = vmatpush.bf16.msra.mxu0 0
        %2012 = vmatpush.bf16.msra.mxu0 0
        %2013 = vmatpush.bf16.msra.mxu0 %v2004
        %2014 = vmatmul.bf16.gmra.mxu0 %v2001
        %v2015 = vpop.f32.mrf.mxu0
        %v2016 = vadd.f32 0.0, %v2015
        %v2017 = vpop.f32.mrf.mxu0
        %2018 = vdwg.mxu0
        %v2020 = vsel %vm1559, %v1750, 0
        %v2023 = vsel %vm1755, %v1236, 0
        %2025 = vmatpush.bf16.msra.mxu0 0
        %2026 = vmatpush.bf16.msra.mxu0 0
        %2027 = vmatpush.bf16.msra.mxu0 0
        %2028 = vmatpush.bf16.msra.mxu0 0
        %2029 = vmatpush.bf16.msra.mxu0 0
        %2030 = vmatpush.bf16.msra.mxu0 0
        %2031 = vmatpush.bf16.msra.mxu0 0
        %2032 = vmatpush.bf16.msra.mxu0 %v2023
        %2033 = vmatmul.bf16.gmra.mxu0 %v2020
        %v2034 = vpop.f32.mrf.mxu0
        %v2035 = vadd.f32 0.0, %v2034
        %v2036 = vpop.f32.mrf.mxu0
        %2037 = vdwg.mxu0
        %v2039 = vsel %vm1559, %v1751, 0
        %v2042 = vsel %vm1755, %v1237, 0
        %2044 = vmatpush.bf16.msra.mxu0 0
        %2045 = vmatpush.bf16.msra.mxu0 0
        %2046 = vmatpush.bf16.msra.mxu0 0
        %2047 = vmatpush.bf16.msra.mxu0 0
        %2048 = vmatpush.bf16.msra.mxu0 0
        %2049 = vmatpush.bf16.msra.mxu0 0
        %2050 = vmatpush.bf16.msra.mxu0 0
        %2051 = vmatpush.bf16.msra.mxu0 %v2042
        %2052 = vmatmul.bf16.gmra.mxu0 %v2039
        %v2053 = vpop.f32.mrf.mxu0
        %v2054 = vadd.f32 0.0, %v2053
        %v2055 = vpop.f32.mrf.mxu0
        %2056 = vdwg.mxu0
        %2058 = vrot.lane.b32.xlu0 %v1788, 16
        %v2059 = vpop.permute.xlu0 %2058
        %2062 = vrot.lane.b32.xlu0 %v1807, 32
        %v2063 = vpop.permute.xlu0 %2062
        %2066 = vrot.lane.b32.xlu0 %v1826, 48
        %v2067 = vpop.permute.xlu0 %2066
        %2070 = vrot.lane.b32.xlu0 %v1845, 64
        %v2071 = vpop.permute.xlu0 %2070
        %2074 = vrot.lane.b32.xlu0 %v1864, 80
        %v2075 = vpop.permute.xlu0 %2074
        %2078 = vrot.lane.b32.xlu0 %v1883, 96
        %v2079 = vpop.permute.xlu0 %2078
        %2082 = vrot.lane.b32.xlu0 %v1902, 112
        %v2083 = vpop.permute.xlu0 %2082
        %v2085 = vsel %vm1238, %v1769, %v2059
        %vm2086 = vcmask 261120
        %v2087 = vsel %vm2086, %v2085, %v2063
        %vm2088 = vcmask 392192
        %v2089 = vsel %vm2088, %v2087, %v2067
        %vm2090 = vcmask 523264
        %v2091 = vsel %vm2090, %v2089, %v2071
        %vm2092 = vcmask 654336
        %v2093 = vsel %vm2092, %v2091, %v2075
        %vm2094 = vcmask 785408
        %v2095 = vsel %vm2094, %v2093, %v2079
        %vm2096 = vcmask 916480
        %v2097 = vsel %vm2096, %v2095, %v2083
        %2099 = vrot.lane.b32.xlu0 %v1940, 16
        %v2100 = vpop.permute.xlu0 %2099
        %2103 = vrot.lane.b32.xlu0 %v1959, 32
        %v2104 = vpop.permute.xlu0 %2103
        %2107 = vrot.lane.b32.xlu0 %v1978, 48
        %v2108 = vpop.permute.xlu0 %2107
        %2111 = vrot.lane.b32.xlu0 %v1997, 64
        %v2112 = vpop.permute.xlu0 %2111
        %2115 = vrot.lane.b32.xlu0 %v2016, 80
        %v2116 = vpop.permute.xlu0 %2115
        %2119 = vrot.lane.b32.xlu0 %v2035, 96
        %v2120 = vpop.permute.xlu0 %2119
        %2123 = vrot.lane.b32.xlu0 %v2054, 112
        %v2124 = vpop.permute.xlu0 %2123
        %v2126 = vsel %vm1238, %v1921, %v2100
        %v2127 = vsel %vm2086, %v2126, %v2104
        %v2128 = vsel %vm2088, %v2127, %v2108
        %v2129 = vsel %vm2090, %v2128, %v2112
        %v2130 = vsel %vm2092, %v2129, %v2116
        %v2131 = vsel %vm2094, %v2130, %v2120
        %v2132 = vsel %vm2096, %v2131, %v2124
        %v2133 = vpack.c.bf16 %v2132, %v2097
        %v2134 = vld [vmem:[%s651] sm:$0xf]
        %v2135 = vld [vmem:[%s651 + $0x4] sm:$0xf]
        %v2136 = vld [vmem:[%s651 + $0x8] sm:$0xf]
        %v2137 = vld [vmem:[%s651 + $0xc] sm:$0xf]
        %v2138 = vld [vmem:[%s651 + $0x10] sm:$0xf]
        %v2139 = vld [vmem:[%s651 + $0x14] sm:$0xf]
        %v2140 = vld [vmem:[%s651 + $0x18] sm:$0xf]
        %v2141 = vld [vmem:[%s651 + $0x1c] sm:$0xf]
        %v2142 = vld [vmem:[%s651 + $0x20] sm:$0xf]
        %v2143 = vld [vmem:[%s651 + $0x24] sm:$0xf]
        %v2144 = vld [vmem:[%s651 + $0x28] sm:$0xf]
        %v2145 = vld [vmem:[%s651 + $0x2c] sm:$0xf]
        %v2146 = vld [vmem:[%s651 + $0x30] sm:$0xf]
        %v2147 = vld [vmem:[%s651 + $0x34] sm:$0xf]
        %v2148 = vld [vmem:[%s651 + $0x38] sm:$0xf]
        %v2149 = vld [vmem:[%s651 + $0x3c] sm:$0xf]
        %v2150 = vld [vmem:[%s826] sm:$0x1]
        %v2152 = vperm.slane %v2150, 0
        %v2170 = vunpack.c.l.b16 %v2134
        %v2171 = vunpack.c.l.b16 %v2135
        %v2172 = vunpack.c.l.b16 %v2136
        %v2173 = vunpack.c.l.b16 %v2137
        %v2174 = vunpack.c.l.b16 %v2138
        %v2175 = vunpack.c.l.b16 %v2139
        %v2176 = vunpack.c.l.b16 %v2140
        %v2177 = vunpack.c.l.b16 %v2141
        %v2178 = vunpack.c.l.b16 %v2142
        %v2179 = vunpack.c.l.b16 %v2143
        %v2180 = vunpack.c.l.b16 %v2144
        %v2181 = vunpack.c.l.b16 %v2145
        %v2182 = vunpack.c.l.b16 %v2146
        %v2183 = vunpack.c.l.b16 %v2147
        %v2184 = vunpack.c.l.b16 %v2148
        %v2185 = vunpack.c.l.b16 %v2149
        %v2186 = vpack.c.b16 %v2171, %v2170
        %v2187 = vpack.c.b16 %v2173, %v2172
        %v2188 = vpack.c.b16 %v2175, %v2174
        %v2189 = vpack.c.b16 %v2177, %v2176
        %v2190 = vpack.c.b16 %v2179, %v2178
        %v2191 = vpack.c.b16 %v2181, %v2180
        %v2192 = vpack.c.b16 %v2183, %v2182
        %v2193 = vpack.c.b16 %v2185, %v2184
        %2202 = vmatpush.bf16.msra.mxu0 %v2193
        %2203 = vmatpush.bf16.msra.mxu0 %v2192
        %2204 = vmatpush.bf16.msra.mxu0 %v2191
        %2205 = vmatpush.bf16.msra.mxu0 %v2190
        %2206 = vmatpush.bf16.msra.mxu0 %v2189
        %2207 = vmatpush.bf16.msra.mxu0 %v2188
        %2208 = vmatpush.bf16.msra.mxu0 %v2187
        %2209 = vmatpush.bf16.msra.mxu0 %v2186
        %2210 = vmatmul.bf16.gmra.mxu0 %v2133
        %v2211 = vpop.f32.mrf.mxu0
        %v2212 = vadd.f32 %v2152, %v2211
        %v2213 = vpop.f32.mrf.mxu0
        %v2214 = vadd.f32 %v2152, %v2213
        %2215 = vdwg.mxu0
        %v2216 = vadd.f32 %v845, %v2212
        %v2217 = vadd.f32 %v846, %v2214
        %v2218 = vld [vmem:[%s660] sm:$0x1]
        %v2219 = vld [vmem:[%s669] sm:$0x1]
        %2220 = vadd.xlane.f32.xlu0 %v2216
        %v2221 = vpop.xlane.xlu0 %2220
        %2222 = vadd.xlane.f32.xlu0 %v2217
        %v2223 = vpop.xlane.xlu0 %2222
        %v2224 = vrcp.pop 128.0
        %v2225 = vmul.f32 128.0, %v2224
        %v2226 = vsub.f32 1.0, %v2225
        %v2227 = vmul.f32 %v2224, %v2226
        %v2228 = vadd.f32 %v2224, %v2227
        %vm2229 = vweird.f32 %v2224
        %v2230 = vsel %vm2229, %v2224, %v2228
        %v2231 = vmul.f32 %v2221, %v2230
        %v2232 = vmul.f32 %v2223, %v2230
        %v2233 = vsub.f32 %v2216, %v2231
        %v2234 = vsub.f32 %v2217, %v2232
        %v2235 = vmul.f32 %v2233, %v2233
        %v2236 = vmul.f32 %v2234, %v2234
        %2237 = vadd.xlane.f32.xlu0 %v2235
        %v2238 = vpop.xlane.xlu0 %2237
        %2239 = vadd.xlane.f32.xlu0 %v2236
        %v2240 = vpop.xlane.xlu0 %2239
        %v2241 = vmul.f32 %v2238, %v2230
        %v2242 = vmul.f32 %v2240, %v2230
        %v2243 = vadd.f32 %v2241, 1e-05
        %v2244 = vadd.f32 %v2242, 1e-05
        %v2245 = vrsqrt.pop %v2243
        %v2246 = vmul.f32 %v2245, %v2243
        %v2247 = vmul.f32 %v2246, %v2245
        %v2248 = vmul.f32 0.5, %v2247
        %v2249 = vsub.f32 1.5, %v2248
        %v2250 = vmul.f32 %v2245, %v2249
        %vm2251 = vweird.f32 %v2243
        %vm2252 = vweird.f32 %v2245
        %vm2253 = vmor %vm2251, %vm2252
        %v2254 = vsel %vm2253, %v2245, %v2250
        %v2255 = vrsqrt.pop %v2244
        %v2256 = vmul.f32 %v2255, %v2244
        %v2257 = vmul.f32 %v2256, %v2255
        %v2258 = vmul.f32 0.5, %v2257
        %v2259 = vsub.f32 1.5, %v2258
        %v2260 = vmul.f32 %v2255, %v2259
        %vm2261 = vweird.f32 %v2244
        %vm2262 = vweird.f32 %v2255
        %vm2263 = vmor %vm2261, %vm2262
        %v2264 = vsel %vm2263, %v2255, %v2260
        %v2265 = vmul.f32 %v2233, %v2254
        %v2266 = vmul.f32 %v2234, %v2264
        %v2268 = vperm.slane %v2218, 0
        %v2270 = vmul.f32 %v2265, %v2268
        %v2271 = vmul.f32 %v2266, %v2268
        %v2273 = vperm.slane %v2219, 0
        %v2275 = vadd.f32 %v2270, %v2273
        %v2276 = vadd.f32 %v2271, %v2273
        %v2277 = vpack.c.bf16 %v2276, %v2275
        %v2278 = vld [vmem:[%s679] sm:$0xff]
        %v2279 = vld [vmem:[%s679 + $0x8] sm:$0xff]
        %v2280 = vld [vmem:[%s679 + $0x10] sm:$0xff]
        %v2281 = vld [vmem:[%s679 + $0x18] sm:$0xff]
        %v2282 = vld [vmem:[%s679 + $0x20] sm:$0xff]
        %v2283 = vld [vmem:[%s679 + $0x28] sm:$0xff]
        %v2284 = vld [vmem:[%s679 + $0x30] sm:$0xff]
        %v2285 = vld [vmem:[%s679 + $0x38] sm:$0xff]
        %v2286 = vld [vmem:[%s679 + $0x40] sm:$0xff]
        %v2287 = vld [vmem:[%s679 + $0x48] sm:$0xff]
        %v2288 = vld [vmem:[%s679 + $0x50] sm:$0xff]
        %v2289 = vld [vmem:[%s679 + $0x58] sm:$0xff]
        %v2290 = vld [vmem:[%s679 + $0x60] sm:$0xff]
        %v2291 = vld [vmem:[%s679 + $0x68] sm:$0xff]
        %v2292 = vld [vmem:[%s679 + $0x70] sm:$0xff]
        %v2293 = vld [vmem:[%s679 + $0x78] sm:$0xff]
        %v2294 = vld [vmem:[%s689] sm:$0x3]
        %v2296 = vperm.slane %v2294, 0
        %v2297 = vperm.slane %v2294, 1
        %v2316 = vunpack.c.l.b16 %v2278
        %v2317 = vunpack.c.h.b16 %v2278
        %v2318 = vunpack.c.l.b16 %v2279
        %v2319 = vunpack.c.h.b16 %v2279
        %v2320 = vunpack.c.l.b16 %v2280
        %v2321 = vunpack.c.h.b16 %v2280
        %v2322 = vunpack.c.l.b16 %v2281
        %v2323 = vunpack.c.h.b16 %v2281
        %v2324 = vunpack.c.l.b16 %v2282
        %v2325 = vunpack.c.h.b16 %v2282
        %v2326 = vunpack.c.l.b16 %v2283
        %v2327 = vunpack.c.h.b16 %v2283
        %v2328 = vunpack.c.l.b16 %v2284
        %v2329 = vunpack.c.h.b16 %v2284
        %v2330 = vunpack.c.l.b16 %v2285
        %v2331 = vunpack.c.h.b16 %v2285
        %v2332 = vunpack.c.l.b16 %v2286
        %v2333 = vunpack.c.h.b16 %v2286
        %v2334 = vunpack.c.l.b16 %v2287
        %v2335 = vunpack.c.h.b16 %v2287
        %v2336 = vunpack.c.l.b16 %v2288
        %v2337 = vunpack.c.h.b16 %v2288
        %v2338 = vunpack.c.l.b16 %v2289
        %v2339 = vunpack.c.h.b16 %v2289
        %v2340 = vunpack.c.l.b16 %v2290
        %v2341 = vunpack.c.h.b16 %v2290
        %v2342 = vunpack.c.l.b16 %v2291
        %v2343 = vunpack.c.h.b16 %v2291
        %v2344 = vunpack.c.l.b16 %v2292
        %v2345 = vunpack.c.h.b16 %v2292
        %v2346 = vunpack.c.l.b16 %v2293
        %v2347 = vunpack.c.h.b16 %v2293
        %v2348 = vpack.c.b16 %v2318, %v2316
        %v2349 = vpack.c.b16 %v2319, %v2317
        %v2350 = vpack.c.b16 %v2322, %v2320
        %v2351 = vpack.c.b16 %v2323, %v2321
        %v2352 = vpack.c.b16 %v2326, %v2324
        %v2353 = vpack.c.b16 %v2327, %v2325
        %v2354 = vpack.c.b16 %v2330, %v2328
        %v2355 = vpack.c.b16 %v2331, %v2329
        %v2356 = vpack.c.b16 %v2334, %v2332
        %v2357 = vpack.c.b16 %v2335, %v2333
        %v2358 = vpack.c.b16 %v2338, %v2336
        %v2359 = vpack.c.b16 %v2339, %v2337
        %v2360 = vpack.c.b16 %v2342, %v2340
        %v2361 = vpack.c.b16 %v2343, %v2341
        %v2362 = vpack.c.b16 %v2346, %v2344
        %v2363 = vpack.c.b16 %v2347, %v2345
        %2380 = vmatpush.bf16.msra.mxu0 %v2362
        %2381 = vmatpush.bf16.msra.mxu0 %v2360
        %2382 = vmatpush.bf16.msra.mxu0 %v2358
        %2383 = vmatpush.bf16.msra.mxu0 %v2356
        %2384 = vmatpush.bf16.msra.mxu0 %v2354
        %2385 = vmatpush.bf16.msra.mxu0 %v2352
        %2386 = vmatpush.bf16.msra.mxu0 %v2350
        %2387 = vmatpush.bf16.msra.mxu0 %v2348
        %2388 = vmatmul.bf16.gmra.mxu0 %v2277
        %v2389 = vpop.f32.mrf.mxu0
        %v2390 = vadd.f32 %v2296, %v2389
        %v2391 = vpop.f32.mrf.mxu0
        %v2392 = vadd.f32 %v2296, %v2391
        %2393 = vdwg.mxu0
        %2394 = vmatpush.bf16.msra.mxu0 %v2363
        %2395 = vmatpush.bf16.msra.mxu0 %v2361
        %2396 = vmatpush.bf16.msra.mxu0 %v2359
        %2397 = vmatpush.bf16.msra.mxu0 %v2357
        %2398 = vmatpush.bf16.msra.mxu0 %v2355
        %2399 = vmatpush.bf16.msra.mxu0 %v2353
        %2400 = vmatpush.bf16.msra.mxu0 %v2351
        %2401 = vmatpush.bf16.msra.mxu0 %v2349
        %2402 = vmatmul.bf16.gmra.mxu0 %v2277
        %v2403 = vpop.f32.mrf.mxu0
        %v2404 = vadd.f32 %v2297, %v2403
        %v2405 = vpop.f32.mrf.mxu0
        %v2406 = vadd.f32 %v2297, %v2405
        %2407 = vdwg.mxu0
        %v2408 = vmax.f32 %v2390, 0.0
        %v2409 = vmax.f32 %v2404, 0.0
        %v2410 = vmax.f32 %v2392, 0.0
        %v2411 = vmax.f32 %v2406, 0.0
        %v2412 = vpack.c.bf16 %v2410, %v2408
        %v2413 = vpack.c.bf16 %v2411, %v2409
        %v2414 = vld [vmem:[%s699] sm:$0xf]
        %v2415 = vld [vmem:[%s699 + $0x4] sm:$0xf]
        %v2416 = vld [vmem:[%s699 + $0x8] sm:$0xf]
        %v2417 = vld [vmem:[%s699 + $0xc] sm:$0xf]
        %v2418 = vld [vmem:[%s699 + $0x10] sm:$0xf]
        %v2419 = vld [vmem:[%s699 + $0x14] sm:$0xf]
        %v2420 = vld [vmem:[%s699 + $0x18] sm:$0xf]
        %v2421 = vld [vmem:[%s699 + $0x1c] sm:$0xf]
        %v2422 = vld [vmem:[%s699 + $0x20] sm:$0xf]
        %v2423 = vld [vmem:[%s699 + $0x24] sm:$0xf]
        %v2424 = vld [vmem:[%s699 + $0x28] sm:$0xf]
        %v2425 = vld [vmem:[%s699 + $0x2c] sm:$0xf]
        %v2426 = vld [vmem:[%s699 + $0x30] sm:$0xf]
        %v2427 = vld [vmem:[%s699 + $0x34] sm:$0xf]
        %v2428 = vld [vmem:[%s699 + $0x38] sm:$0xf]
        %v2429 = vld [vmem:[%s699 + $0x3c] sm:$0xf]
        %v2430 = vld [vmem:[%s699 + $0x40] sm:$0xf]
        %v2431 = vld [vmem:[%s699 + $0x44] sm:$0xf]
        %v2432 = vld [vmem:[%s699 + $0x48] sm:$0xf]
        %v2433 = vld [vmem:[%s699 + $0x4c] sm:$0xf]
        %v2434 = vld [vmem:[%s699 + $0x50] sm:$0xf]
        %v2435 = vld [vmem:[%s699 + $0x54] sm:$0xf]
        %v2436 = vld [vmem:[%s699 + $0x58] sm:$0xf]
        %v2437 = vld [vmem:[%s699 + $0x5c] sm:$0xf]
        %v2438 = vld [vmem:[%s699 + $0x60] sm:$0xf]
        %v2439 = vld [vmem:[%s699 + $0x64] sm:$0xf]
        %v2440 = vld [vmem:[%s699 + $0x68] sm:$0xf]
        %v2441 = vld [vmem:[%s699 + $0x6c] sm:$0xf]
        %v2442 = vld [vmem:[%s699 + $0x70] sm:$0xf]
        %v2443 = vld [vmem:[%s699 + $0x74] sm:$0xf]
        %v2444 = vld [vmem:[%s699 + $0x78] sm:$0xf]
        %v2445 = vld [vmem:[%s699 + $0x7c] sm:$0xf]
        %v2446 = vld [vmem:[%s708] sm:$0x1]
        %v2448 = vperm.slane %v2446, 0
        %v2482 = vunpack.c.l.b16 %v2414
        %v2483 = vunpack.c.l.b16 %v2415
        %v2484 = vunpack.c.l.b16 %v2416
        %v2485 = vunpack.c.l.b16 %v2417
        %v2486 = vunpack.c.l.b16 %v2418
        %v2487 = vunpack.c.l.b16 %v2419
        %v2488 = vunpack.c.l.b16 %v2420
        %v2489 = vunpack.c.l.b16 %v2421
        %v2490 = vunpack.c.l.b16 %v2422
        %v2491 = vunpack.c.l.b16 %v2423
        %v2492 = vunpack.c.l.b16 %v2424
        %v2493 = vunpack.c.l.b16 %v2425
        %v2494 = vunpack.c.l.b16 %v2426
        %v2495 = vunpack.c.l.b16 %v2427
        %v2496 = vunpack.c.l.b16 %v2428
        %v2497 = vunpack.c.l.b16 %v2429
        %v2498 = vunpack.c.l.b16 %v2430
        %v2499 = vunpack.c.l.b16 %v2431
        %v2500 = vunpack.c.l.b16 %v2432
        %v2501 = vunpack.c.l.b16 %v2433
        %v2502 = vunpack.c.l.b16 %v2434
        %v2503 = vunpack.c.l.b16 %v2435
        %v2504 = vunpack.c.l.b16 %v2436
        %v2505 = vunpack.c.l.b16 %v2437
        %v2506 = vunpack.c.l.b16 %v2438
        %v2507 = vunpack.c.l.b16 %v2439
        %v2508 = vunpack.c.l.b16 %v2440
        %v2509 = vunpack.c.l.b16 %v2441
        %v2510 = vunpack.c.l.b16 %v2442
        %v2511 = vunpack.c.l.b16 %v2443
        %v2512 = vunpack.c.l.b16 %v2444
        %v2513 = vunpack.c.l.b16 %v2445
        %v2514 = vpack.c.b16 %v2483, %v2482
        %v2515 = vpack.c.b16 %v2485, %v2484
        %v2516 = vpack.c.b16 %v2487, %v2486
        %v2517 = vpack.c.b16 %v2489, %v2488
        %v2518 = vpack.c.b16 %v2491, %v2490
        %v2519 = vpack.c.b16 %v2493, %v2492
        %v2520 = vpack.c.b16 %v2495, %v2494
        %v2521 = vpack.c.b16 %v2497, %v2496
        %v2522 = vpack.c.b16 %v2499, %v2498
        %v2523 = vpack.c.b16 %v2501, %v2500
        %v2524 = vpack.c.b16 %v2503, %v2502
        %v2525 = vpack.c.b16 %v2505, %v2504
        %v2526 = vpack.c.b16 %v2507, %v2506
        %v2527 = vpack.c.b16 %v2509, %v2508
        %v2528 = vpack.c.b16 %v2511, %v2510
        %v2529 = vpack.c.b16 %v2513, %v2512
        %2546 = vmatpush.bf16.msra.mxu0 %v2521
        %2547 = vmatpush.bf16.msra.mxu0 %v2520
        %2548 = vmatpush.bf16.msra.mxu0 %v2519
        %2549 = vmatpush.bf16.msra.mxu0 %v2518
        %2550 = vmatpush.bf16.msra.mxu0 %v2517
        %2551 = vmatpush.bf16.msra.mxu0 %v2516
        %2552 = vmatpush.bf16.msra.mxu0 %v2515
        %2553 = vmatpush.bf16.msra.mxu0 %v2514
        %2554 = vmatmul.bf16.gmra.mxu0 %v2412
        %v2555 = vpop.f32.mrf.mxu0
        %v2556 = vadd.f32 %v2448, %v2555
        %v2557 = vpop.f32.mrf.mxu0
        %v2558 = vadd.f32 %v2448, %v2557
        %2559 = vdwg.mxu0
        %2560 = vmatpush.bf16.msra.mxu0 %v2529
        %2561 = vmatpush.bf16.msra.mxu0 %v2528
        %2562 = vmatpush.bf16.msra.mxu0 %v2527
        %2563 = vmatpush.bf16.msra.mxu0 %v2526
        %2564 = vmatpush.bf16.msra.mxu0 %v2525
        %2565 = vmatpush.bf16.msra.mxu0 %v2524
        %2566 = vmatpush.bf16.msra.mxu0 %v2523
        %2567 = vmatpush.bf16.msra.mxu0 %v2522
        %2568 = vmatmul.bf16.gmra.mxu0 %v2413
        %v2569 = vpop.f32.mrf.mxu0
        %v2570 = vadd.f32 %v2556, %v2569
        %v2571 = vpop.f32.mrf.mxu0
        %v2572 = vadd.f32 %v2558, %v2571
        %2573 = vdwg.mxu0
        %v2574 = vadd.f32 %v2275, %v2570
        %v2575 = vadd.f32 %v2276, %v2572
        %v2576 = vld [vmem:[%s829] sm:$0x1]
        %v2577 = vld [vmem:[%s717] sm:$0x1]
        %2578 = vadd.xlane.f32.xlu0 %v2574
        %v2579 = vpop.xlane.xlu0 %2578
        %2580 = vadd.xlane.f32.xlu0 %v2575
        %v2581 = vpop.xlane.xlu0 %2580
        %v2582 = vmul.f32 %v2579, %v2230
        %v2583 = vmul.f32 %v2581, %v2230
        %v2584 = vsub.f32 %v2574, %v2582
        %v2585 = vsub.f32 %v2575, %v2583
        %v2586 = vmul.f32 %v2584, %v2584
        %v2587 = vmul.f32 %v2585, %v2585
        %2588 = vadd.xlane.f32.xlu0 %v2586
        %v2589 = vpop.xlane.xlu0 %2588
        %2590 = vadd.xlane.f32.xlu0 %v2587
        %v2591 = vpop.xlane.xlu0 %2590
        %v2592 = vmul.f32 %v2589, %v2230
        %v2593 = vmul.f32 %v2591, %v2230
        %v2594 = vadd.f32 %v2592, 1e-05
        %v2595 = vadd.f32 %v2593, 1e-05
        %v2596 = vrsqrt.pop %v2594
        %v2597 = vmul.f32 %v2596, %v2594
        %v2598 = vmul.f32 %v2597, %v2596
        %v2599 = vmul.f32 0.5, %v2598
        %v2600 = vsub.f32 1.5, %v2599
        %v2601 = vmul.f32 %v2596, %v2600
        %vm2602 = vweird.f32 %v2594
        %vm2603 = vweird.f32 %v2596
        %vm2604 = vmor %vm2602, %vm2603
        %v2605 = vsel %vm2604, %v2596, %v2601
        %v2606 = vrsqrt.pop %v2595
        %v2607 = vmul.f32 %v2606, %v2595
        %v2608 = vmul.f32 %v2607, %v2606
        %v2609 = vmul.f32 0.5, %v2608
        %v2610 = vsub.f32 1.5, %v2609
        %v2611 = vmul.f32 %v2606, %v2610
        %vm2612 = vweird.f32 %v2595
        %vm2613 = vweird.f32 %v2606
        %vm2614 = vmor %vm2612, %vm2613
        %v2615 = vsel %vm2614, %v2606, %v2611
        %v2616 = vmul.f32 %v2584, %v2605
        %v2617 = vmul.f32 %v2585, %v2615
        %v2619 = vperm.slane %v2576, 0
        %v2621 = vmul.f32 %v2616, %v2619
        %v2622 = vmul.f32 %v2617, %v2619
        %v2624 = vperm.slane %v2577, 0
        %v2626 = vadd.f32 %v2621, %v2624
        %v2627 = vadd.f32 %v2622, %v2624
        %2628 = vst [vmem:[#allocation2] sm:$0xff] %v2626
        %2629 = vst [vmem:[#allocation2 + $0x8] sm:$0xff] %v2627
        %p2630 = scmp.eq.s32.totalorder %s44, 1
        // Predicated region
        $region113: #{singapore_llm_forward.2} parent=71 // pred_check
          %p2631 = pneg %p2630
        $region114: #{singapore_llm_forward.2} parent=71 // pred_check_branch
          %2633 = sbr.rel (%p2631) target = $region116
        $region115: #{singapore_llm_forward.2} parent=71 // pred_region
          %2634 = vst [vmem:[%s834] sm:$0xff] %v2626
          %2635 = vst [vmem:[%s834 + $0x8] sm:$0xff] %v2627
        $region116: #{singapore_llm_forward.2} parent=71 // pred_fallthru
          _
        %s2636 = smul.u32 2, %s43
        %p2637 = scmp.lt.s32.totalorder %s2636, 3
        %s2638 = scalar_select %p2637, %s2636, 3
        %s2639 = smul.addr %s2638, 8
        %s2640 = scalar_lea.vmem %s13, %s2639
        // Predicated region
        $region117: #{singapore_llm_forward.2} parent=71 // pred_check
          %p2641 = pneg %p407
        $region118: #{singapore_llm_forward.2} parent=71 // pred_check_branch
          %2643 = sbr.rel (%p2641) target = $region120
        $region119: #{singapore_llm_forward.2} parent=71 // pred_region
          %s2644 = smul.u32 2, %s43
        $region120: #{singapore_llm_forward.2} parent=71 // pred_fallthru
          _
      $region72: #{singapore_llm_forward.2} parent=5 // pred_fallthru
        _
      %p2645 = scmp.le.s32.totalorder 2, %s34
      // Predicated region
      $region121: #{singapore_llm_forward.2} parent=5 // pred_check
        %p2646 = pneg %p2645
      $region122: #{singapore_llm_forward.2} parent=5 // pred_check_branch
        %2648 = sbr.rel (%p2646) target = $region124
      $region123: #{singapore_llm_forward.2} parent=5 // pred_region
        %s2649 = ssub.s32 %s34, 2
        // Predicated region
        $region125: #{singapore_llm_forward.2} parent=123 // pred_check
          %p2650 = pneg %p413
        $region126: #{singapore_llm_forward.2} parent=123 // pred_check_branch
          %2652 = sbr.rel (%p2650) target = $region128
        $region127: #{singapore_llm_forward.2} parent=123 // pred_region
          %s2653 = smul.u32 2, %s45
          %p2654 = scmp.lt.s32.totalorder %s2653, 3
          %s2655 = scalar_select %p2654, %s2653, 3
          %s2656 = smul.addr %s2655, 8
          %s2657 = scalar_lea.vmem %s13, %s2656
        $region128: #{singapore_llm_forward.2} parent=123 // pred_fallthru
          _
      $region124: #{singapore_llm_forward.2} parent=5 // pred_fallthru
        _
    $region6: #{singapore_llm_forward.2} parent=1 // loop_footer
      %s38 = sadd.s32 1, %s34
    $region7: #{singapore_llm_forward.2} parent=1 // loop_footer_branch
      %33 = sbr.rel target = $region3
    $region8: #{singapore_llm_forward.2} parent=1 // loop_exit
      _
    %2658 = vsyncpa [#allocation4], 1
    %s2659 = scalar_lea.sflag [#allocation4], 1
    %2660 = vsyncpa %s2659, 1
    %2661 = vsyncpa [#allocation6], 1
    %s2662 = scalar_lea.sflag [#allocation6], 1
    %2663 = vsyncpa %s2662, 1
    %2664 = vsyncpa [#allocation9], 1
    %s2665 = scalar_lea.sflag [#allocation9], 1
    %2666 = vsyncpa %s2665, 1
    %2667 = vsyncpa [#allocation12], 1
    %s2668 = scalar_lea.sflag [#allocation12], 1
    %2669 = vsyncpa %s2668, 1
    %2670 = vsyncpa [#allocation15], 1
    %s2671 = scalar_lea.sflag [#allocation15], 1
    %2672 = vsyncpa %s2671, 1

</llo_original>
